<compile_context>
chip_gen: v6e
topology: v6e:2x2x1
jax: 0.10.0
libtpu: 0.0.40
codegen_flags: <defaults>
</compile_context>

<pallas_src>
import numpy as np
import jax
import jax.numpy as jnp
from jax.experimental import pallas as pl
from jax.experimental.pallas import tpu as pltpu

GRID = 9                 # 9x9 spatial grid of nodes
IN_DIM = 6               # node feature channels
OUT_CH = 6               # NNConv / final conv output channels
HID = 64                 # edge-MLP hidden width
CONV_CH = 64             # conv stack channel width (padded everywhere)
N_CONV = 6               # number of conv layers
C6P = 8                  # sublane-padded width for 6-wide channels
KTAPS = 9                # 3x3 taps
N_NODES = GRID * GRID    # 81
LANES = 128              # spatial lane width (81 real + 47 pad lanes)


# ----------------------------------------------------------------------------
# Fused Pallas kernel: NNConv + 6x conv3x3, channel-major, VMEM resident
# ----------------------------------------------------------------------------
def fused_gnn_kernel(x_ref, ea_ref, gat_ref, scat_ref,
                     w1_ref, b1_ref, w2_ref, b2_ref,
                     rt_ref, st_ref, wroot_ref, bias_ref,
                     mask_ref, cw_ref, cb_ref,
                     out_ref,
                     act_ref):
    """One grid step == one conv layer (step 0 also runs the NNConv).

    Channel-major layouts (channels on sublanes, spatial/edge index on lanes):
      x_ref:    [6, 81]      node features, x_ref[c, i] = x[i, c]
      ea_ref:   [1, E]       edge attributes
      gat_ref:  [81, E]      one-hot gather  (gat[src(e), e] = 1)
      scat_ref: [E, 81]      one-hot scatter (scat[e, dst(e)] = 1)
      w1/b1:    [64, 1]      edge MLP layer 1 (Linear(1, 64))
      w2/b2:    [48, 64]/[48, 1]  edge MLP layer 2, row index = cin*8 + cout (padded)
      rt_ref:   [48, 6]      constant expand (x_src -> per-cin blocks)
      st_ref:   [8, 48]      constant reduce (sum over cin blocks)
      wroot:    [8, 6]       root weight (transposed, sublane-padded 6->8)
      bias:     [8, 1]       NNConv bias (sublane-padded)
      mask_ref: [9, 1, 128]  per-tap border masks over the 81 spatial lanes
      cw_ref:   [9, 64, 64]  this layer's conv weights [tap, cout, cin] (bf16)
      cb_ref:   [64, 1]      this layer's conv bias
      out_ref:  [6, 81]      final channel-major output
      act_ref:  [64, 128]    persistent channel-major activation scratch
    """
    f32 = jnp.float32
    layer = pl.program_id(0)
    last = pl.num_programs(0) - 1

    # ---------------- NNConv (aggr='add'), step 0 only ----------------
    @pl.when(layer == 0)
    def _nnconv():
        x_cm = x_ref[...]                                                # [6, 81]
        # edge MLP: ReLU(Linear(1,64)) -> Linear(64,36) (rows padded to 48)
        h = jnp.maximum(w1_ref[...] * ea_ref[...] + b1_ref[...], 0.0)    # [64, E]
        theta = (jnp.dot(w2_ref[...], h, preferred_element_type=f32)
                 + b2_ref[...])                                          # [48, E]
        # expand BEFORE the gather so the big matmul runs with M=48 (review #7)
        xr = jnp.dot(rt_ref[...], x_cm, preferred_element_type=f32)      # [48, 81]
        xsrc = jnp.dot(xr, gat_ref[...], preferred_element_type=f32)     # [48, E]
        msg = jnp.dot(st_ref[...], theta * xsrc,
                      preferred_element_type=f32)                        # [8, E]
        agg = jnp.dot(msg, scat_ref[...], preferred_element_type=f32)    # [8, 81]
        root = jnp.dot(wroot_ref[...], x_cm, preferred_element_type=f32) # [8, 81]
        node_out = agg + root + bias_ref[...]                            # [8, 81]
        # init activation scratch: channels 0..5 real, everything else zero
        act_ref[...] = jnp.zeros((CONV_CH, LANES), f32)
        act_ref[0:C6P, 0:N_NODES] = node_out

    # ---------------- conv3x3 layer `layer` ----------------
    a = act_ref[...]                                                     # [64, 128]
    masks = mask_ref[...]                                                # [9, 1, 128]
    acc = jnp.zeros((CONV_CH, LANES), f32)
    for t in range(KTAPS):
        dy, dx = t // 3 - 1, t % 3 - 1
        off = dy * GRID + dx                    # lane offset of this tap's source
        sh = (-off) % LANES                     # np.roll shift: rolled[p] = a[p + off]
        rolled = a if sh == 0 else pltpu.roll(a, sh, 1)
        rm = rolled * masks[t]                  # zero out-of-bounds taps (== zero pad)
        acc = acc + jnp.dot(cw_ref[t], rm.astype(jnp.bfloat16),
                            preferred_element_type=f32)                 # [64, 128]
    acc = acc + cb_ref[...]

    @pl.when(layer < last)
    def _relu_store():
        act_ref[...] = jnp.maximum(acc, 0.0)

    @pl.when(layer == last)
    def _final_store():
        out_ref[...] = acc[0:OUT_CH, 0:N_NODES]


# ----------------------------------------------------------------------------
# Wrapper
# ----------------------------------------------------------------------------
def _full_spec(shape):
    n = len(shape)
    return pl.BlockSpec(shape, lambda l, n=n: (0,) * n)


def gnn_forward(x, edge_attr, gatT, scatT, masks, params):
    """x: [81, 6], edge_attr: [E, 1]  ->  [1, 6, 9, 9] NCHW (like the PyTorch module)."""
    x_cm = x.T                                 # [6, 81] channel-major
    ea_row = edge_attr.T                       # [1, E]
    e = ea_row.shape[1]

    in_specs = [
        _full_spec((IN_DIM, N_NODES)),         # x (channel-major)
        _full_spec((1, e)),                    # edge attr
        _full_spec((N_NODES, e)),              # gather one-hot
        _full_spec((e, N_NODES)),              # scatter one-hot
        _full_spec((HID, 1)),                  # w1
        _full_spec((HID, 1)),                  # b1
        _full_spec((IN_DIM * C6P, HID)),       # w2 (padded, transposed)
        _full_spec((IN_DIM * C6P, 1)),         # b2 (padded)
        _full_spec((IN_DIM * C6P, IN_DIM)),    # RT expand
        _full_spec((C6P, IN_DIM * C6P)),       # ST reduce
        _full_spec((C6P, IN_DIM)),             # wroot^T (padded)
        _full_spec((C6P, 1)),                  # NNConv bias (padded)
        _full_spec((KTAPS, 1, LANES)),         # tap masks
        # per-layer conv weights / bias: streamed (double-buffered) per grid step
        pl.BlockSpec((None, KTAPS, CONV_CH, CONV_CH), lambda l: (l, 0, 0, 0)),
        pl.BlockSpec((None, CONV_CH, 1), lambda l: (l, 0, 0)),
    ]

    out = pl.pallas_call(
        fused_gnn_kernel,
        out_shape=jax.ShapeDtypeStruct((OUT_CH, N_NODES), jnp.float32),
        grid=(N_CONV,),
        in_specs=in_specs,
        out_specs=pl.BlockSpec((OUT_CH, N_NODES), lambda l: (0, 0)),
        scratch_shapes=[pltpu.VMEM((CONV_CH, LANES), jnp.float32)],
        compiler_params=pltpu.CompilerParams(
            dimension_semantics=("arbitrary",)),
        cost_estimate=pl.CostEstimate(
            flops=61_000_000, transcendentals=0, bytes_accessed=660_000),
    )(x_cm, ea_row, gatT, scatT,
      params["w1c"], params["b1c"], params["w2pT"], params["b2pc"],
      params["RT"], params["ST"], params["wrootpT"], params["biaspc"],
      masks, params["convw"], params["convb"])

    # channel-major [6, 81] -> NCHW [1, 6, 9, 9]: a free reshape, no transpose.
    return out.reshape(1, OUT_CH, GRID, GRID)


# ----------------------------------------------------------------------------
# Deterministic parameter / input construction (host-side packing)
# ----------------------------------------------------------------------------
def make_params(key):
    ks = jax.random.split(key, 20)
    scale = 0.05

    # edge MLP: Linear(1, 64) -> ReLU -> Linear(64, 36)
    w1c = scale * jax.random.normal(ks[0], (HID, 1), jnp.float32)
    b1c = scale * jax.random.normal(ks[1], (HID, 1), jnp.float32)
    w2 = np.asarray(scale * jax.random.normal(ks[2], (IN_DIM * OUT_CH, HID), jnp.float32))
    b2 = np.asarray(scale * jax.random.normal(ks[3], (IN_DIM * OUT_CH,), jnp.float32))
    wroot = np.asarray(scale * jax.random.normal(ks[4], (IN_DIM, OUT_CH), jnp.float32))
    bias = np.asarray(scale * jax.random.normal(ks[5], (OUT_CH,), jnp.float32))

    # sublane-padded (6 -> 8) edge-MLP layer 2, stored transposed / channel-major.
    # Row index = cin * 8 + cout; rows with cout in {6, 7} stay exactly zero.
    w2pT = np.zeros((IN_DIM * C6P, HID), np.float32)
    b2pc = np.zeros((IN_DIM * C6P, 1), np.float32)
    for ci in range(IN_DIM):
        w2pT[ci * C6P:ci * C6P + OUT_CH, :] = w2[ci * OUT_CH:(ci + 1) * OUT_CH, :]
        b2pc[ci * C6P:ci * C6P + OUT_CH, 0] = b2[ci * OUT_CH:(ci + 1) * OUT_CH]
    wrootpT = np.zeros((C6P, IN_DIM), np.float32)
    wrootpT[:OUT_CH, :] = wroot.T
    biaspc = np.zeros((C6P, 1), np.float32)
    biaspc[:OUT_CH, 0] = bias

    # constant expand / reduce matrices for the per-edge message contraction
    RT = np.kron(np.eye(IN_DIM, dtype=np.float32), np.ones((C6P, 1), np.float32))  # [48, 6]
    ST = np.tile(np.eye(C6P, dtype=np.float32), (1, IN_DIM))                       # [8, 48]

    # conv stack: channel-major per-tap layout cw[l, t, cout, cin], zero-padded
    # on the narrow Cin (layer 0) / Cout (layer 5) dims.  Stored in bf16.
    conv_dims = [(OUT_CH, CONV_CH)] + [(CONV_CH, CONV_CH)] * 4 + [(CONV_CH, OUT_CH)]
    convw = np.zeros((N_CONV, KTAPS, CONV_CH, CONV_CH), np.float32)
    convb = np.zeros((N_CONV, CONV_CH, 1), np.float32)
    for li, (cin, cout) in enumerate(conv_dims):
        w = np.asarray(scale * jax.random.normal(ks[6 + 2 * li], (3, 3, cin, cout), jnp.float32))
        b = np.asarray(scale * jax.random.normal(ks[7 + 2 * li], (cout,), jnp.float32))
        for dy in range(3):
            for dx in range(3):
                convw[li, dy * 3 + dx, :cout, :cin] = w[dy, dx].T
        convb[li, :cout, 0] = b

    return {
        "w1c": w1c, "b1c": b1c,
        "w2pT": jnp.asarray(w2pT), "b2pc": jnp.asarray(b2pc),
        "RT": jnp.asarray(RT), "ST": jnp.asarray(ST),
        "wrootpT": jnp.asarray(wrootpT), "biaspc": jnp.asarray(biaspc),
        "convw": jnp.asarray(convw, jnp.bfloat16),
        "convb": jnp.asarray(convb),
    }


def make_grid_edges(g):
    edges = []
    for r in range(g):
        for c in range(g):
            i = r * g + c
            for dr, dc in ((0, 1), (0, -1), (1, 0), (-1, 0)):
                rr, cc = r + dr, c + dc
                if 0 <= rr < g and 0 <= cc < g:
                    edges.append((i, rr * g + cc))
    return np.asarray(edges, dtype=np.int32).T  # [2, E], rows = (src, dst)


def make_edge_matrices(edge_index, n):
    src, dst = edge_index[0], edge_index[1]
    e = edge_index.shape[1]
    gatT = np.zeros((n, e), np.float32)
    gatT[src, np.arange(e)] = 1.0            # x_cm @ gatT == x_src (channel-major)
    scatT = np.zeros((e, n), np.float32)
    scatT[np.arange(e), dst] = 1.0           # msg @ scatT == scatter-add to dst
    return jnp.asarray(gatT), jnp.asarray(scatT)


def make_masks():
    m = np.zeros((KTAPS, 1, LANES), np.float32)
    for t in range(KTAPS):
        dy, dx = t // 3 - 1, t % 3 - 1
        for p in range(N_NODES):
            r, c = p // GRID, p % GRID
            if 0 <= r + dy < GRID and 0 <= c + dx < GRID:
                m[t, 0, p] = 1.0
    return jnp.asarray(m)


if __name__ == "__main__":
    key = jax.random.PRNGKey(0)
    k_param, k_x, k_e = jax.random.split(key, 3)

    params = make_params(k_param)

    edge_index_np = make_grid_edges(GRID)                       # static topology
    n_edges = edge_index_np.shape[1]
    gatT, scatT = make_edge_matrices(edge_index_np, N_NODES)    # host-precomputed
    masks = make_masks()

    x = jax.random.normal(k_x, (N_NODES, IN_DIM), jnp.float32)          # data.x
    edge_attr = jax.random.uniform(k_e, (n_edges, 1), jnp.float32)      # data.edge_attr

    fwd = jax.jit(lambda xx, ea: gnn_forward(xx, ea, gatT, scatT, masks, params))
    out = jax.block_until_ready(fwd(x, edge_attr))

    assert out.shape == (1, OUT_CH, GRID, GRID)
    assert out.dtype == jnp.float32
    print("KERNEL_OK")
</pallas_src>

<mosaic_0001>
module attributes {stable_mosaic.version = 11 : i64} {
  func.func @fused_gnn_kernel(%arg0: i32, %arg1: memref<6x81xf32, #tpu.memory_space<vmem>>, %arg2: memref<1x288xf32, #tpu.memory_space<vmem>>, %arg3: memref<81x288xf32, #tpu.memory_space<vmem>>, %arg4: memref<288x81xf32, #tpu.memory_space<vmem>>, %arg5: memref<64x1xf32, #tpu.memory_space<vmem>>, %arg6: memref<64x1xf32, #tpu.memory_space<vmem>>, %arg7: memref<48x64xf32, #tpu.memory_space<vmem>>, %arg8: memref<48x1xf32, #tpu.memory_space<vmem>>, %arg9: memref<48x6xf32, #tpu.memory_space<vmem>>, %arg10: memref<8x48xf32, #tpu.memory_space<vmem>>, %arg11: memref<8x6xf32, #tpu.memory_space<vmem>>, %arg12: memref<8x1xf32, #tpu.memory_space<vmem>>, %arg13: memref<9x1x128xf32, #tpu.memory_space<vmem>>, %arg14: memref<1x9x64x64xbf16, #tpu.memory_space<vmem>>, %arg15: memref<1x64x1xf32, #tpu.memory_space<vmem>>, %arg16: memref<6x81xf32, #tpu.memory_space<vmem>>, %arg17: memref<64x128xf32, #tpu.memory_space<vmem>>) attributes {dimension_semantics = [#tpu.dimension_semantics<arbitrary>], iteration_bounds = array<i64: 6>, scalar_prefetch = 0 : i64, scratch_operands = 1 : i64, tpu.core_type = #tpu.core_type<tc>, window_params = [{pipeline_mode = #tpu.pipeline_mode<synchronous>, transform_indices = @transform_0, window_bounds = array<i64: 6, 81>}, {pipeline_mode = #tpu.pipeline_mode<synchronous>, transform_indices = @transform_1, window_bounds = array<i64: 1, 288>}, {pipeline_mode = #tpu.pipeline_mode<synchronous>, transform_indices = @transform_2, window_bounds = array<i64: 81, 288>}, {pipeline_mode = #tpu.pipeline_mode<synchronous>, transform_indices = @transform_3, window_bounds = array<i64: 288, 81>}, {pipeline_mode = #tpu.pipeline_mode<synchronous>, transform_indices = @transform_4, window_bounds = array<i64: 64, 1>}, {pipeline_mode = #tpu.pipeline_mode<synchronous>, transform_indices = @transform_5, window_bounds = array<i64: 64, 1>}, {pipeline_mode = #tpu.pipeline_mode<synchronous>, transform_indices = @transform_6, window_bounds = array<i64: 48, 64>}, {pipeline_mode = #tpu.pipeline_mode<synchronous>, transform_indices = @transform_7, window_bounds = array<i64: 48, 1>}, {pipeline_mode = #tpu.pipeline_mode<synchronous>, transform_indices = @transform_8, window_bounds = array<i64: 48, 6>}, {pipeline_mode = #tpu.pipeline_mode<synchronous>, transform_indices = @transform_9, window_bounds = array<i64: 8, 48>}, {pipeline_mode = #tpu.pipeline_mode<synchronous>, transform_indices = @transform_10, window_bounds = array<i64: 8, 6>}, {pipeline_mode = #tpu.pipeline_mode<synchronous>, transform_indices = @transform_11, window_bounds = array<i64: 8, 1>}, {pipeline_mode = #tpu.pipeline_mode<synchronous>, transform_indices = @transform_12, window_bounds = array<i64: 9, 1, 128>}, {transform_indices = @transform_13, window_bounds = array<i64: 1, 9, 64, 64>}, {transform_indices = @transform_14, window_bounds = array<i64: 1, 64, 1>}, {pipeline_mode = #tpu.pipeline_mode<synchronous>, transform_indices = @transform_15, window_bounds = array<i64: 6, 81>}]} {
    %c0_i32 = arith.constant 0 : i32
    %0 = arith.cmpi eq, %arg0, %c0_i32 : i32
    %1 = arith.extui %0 : i1 to i32
    %c0_i32_0 = arith.constant 0 : i32
    %2 = arith.cmpi ne, %1, %c0_i32_0 : i32
    scf.if %2 {
      %c0_48 = arith.constant 0 : index
      %c0_49 = arith.constant 0 : index
      %105 = vector.load %arg1[%c0_48, %c0_49] : memref<6x81xf32, #tpu.memory_space<vmem>>, vector<6x81xf32>
      %c0_50 = arith.constant 0 : index
      %c0_51 = arith.constant 0 : index
      %106 = vector.load %arg5[%c0_50, %c0_51] : memref<64x1xf32, #tpu.memory_space<vmem>>, vector<64x1xf32>
      %c0_52 = arith.constant 0 : index
      %c0_53 = arith.constant 0 : index
      %107 = vector.load %arg2[%c0_52, %c0_53] : memref<1x288xf32, #tpu.memory_space<vmem>>, vector<1x288xf32>
      %108 = vector.broadcast %106 : vector<64x1xf32> to vector<64x288xf32>
      %109 = vector.broadcast %107 : vector<1x288xf32> to vector<64x288xf32>
      %110 = arith.mulf %108, %109 : vector<64x288xf32>
      %c0_54 = arith.constant 0 : index
      %c0_55 = arith.constant 0 : index
      %111 = vector.load %arg6[%c0_54, %c0_55] : memref<64x1xf32, #tpu.memory_space<vmem>>, vector<64x1xf32>
      %112 = vector.broadcast %111 : vector<64x1xf32> to vector<64x288xf32>
      %113 = arith.addf %110, %112 : vector<64x288xf32>
      %cst_56 = arith.constant 0.000000e+00 : f32
      %114 = vector.broadcast %cst_56 : f32 to vector<64x288xf32>
      %115 = arith.maximumf %113, %114 : vector<64x288xf32>
      %c0_57 = arith.constant 0 : index
      %c0_58 = arith.constant 0 : index
      %116 = vector.load %arg7[%c0_57, %c0_58] : memref<48x64xf32, #tpu.memory_space<vmem>>, vector<48x64xf32>
      %cst_59 = arith.constant dense<0.000000e+00> : vector<48x288xf32>
      %117 = tpu.matmul %116, %115, %cst_59 {dimension_numbers = #tpu.dot_dimension_numbers<[1], [0], [0], [1], [0, 0, 1, 1], [], []>} : vector<48x64xf32>, vector<64x288xf32>, vector<48x288xf32> -> vector<48x288xf32>
      %c0_60 = arith.constant 0 : index
      %c0_61 = arith.constant 0 : index
      %118 = vector.load %arg8[%c0_60, %c0_61] : memref<48x1xf32, #tpu.memory_space<vmem>>, vector<48x1xf32>
      %119 = vector.broadcast %118 : vector<48x1xf32> to vector<48x288xf32>
      %120 = arith.addf %117, %119 : vector<48x288xf32>
      %c0_62 = arith.constant 0 : index
      %c0_63 = arith.constant 0 : index
      %121 = vector.load %arg9[%c0_62, %c0_63] : memref<48x6xf32, #tpu.memory_space<vmem>>, vector<48x6xf32>
      %cst_64 = arith.constant dense<0.000000e+00> : vector<48x81xf32>
      %122 = tpu.matmul %121, %105, %cst_64 {dimension_numbers = #tpu.dot_dimension_numbers<[1], [0], [0], [1], [0, 0, 1, 1], [], []>} : vector<48x6xf32>, vector<6x81xf32>, vector<48x81xf32> -> vector<48x81xf32>
      %c0_65 = arith.constant 0 : index
      %c0_66 = arith.constant 0 : index
      %123 = vector.load %arg3[%c0_65, %c0_66] : memref<81x288xf32, #tpu.memory_space<vmem>>, vector<81x288xf32>
      %cst_67 = arith.constant dense<0.000000e+00> : vector<48x288xf32>
      %124 = tpu.matmul %122, %123, %cst_67 {dimension_numbers = #tpu.dot_dimension_numbers<[1], [0], [0], [1], [0, 0, 1, 1], [], []>} : vector<48x81xf32>, vector<81x288xf32>, vector<48x288xf32> -> vector<48x288xf32>
      %c0_68 = arith.constant 0 : index
      %c0_69 = arith.constant 0 : index
      %125 = vector.load %arg10[%c0_68, %c0_69] : memref<8x48xf32, #tpu.memory_space<vmem>>, vector<8x48xf32>
      %126 = arith.mulf %120, %124 : vector<48x288xf32>
      %cst_70 = arith.constant dense<0.000000e+00> : vector<8x288xf32>
      %127 = tpu.matmul %125, %126, %cst_70 {dimension_numbers = #tpu.dot_dimension_numbers<[1], [0], [0], [1], [0, 0, 1, 1], [], []>} : vector<8x48xf32>, vector<48x288xf32>, vector<8x288xf32> -> vector<8x288xf32>
      %c0_71 = arith.constant 0 : index
      %c0_72 = arith.constant 0 : index
      %128 = vector.load %arg4[%c0_71, %c0_72] : memref<288x81xf32, #tpu.memory_space<vmem>>, vector<288x81xf32>
      %cst_73 = arith.constant dense<0.000000e+00> : vector<8x81xf32>
      %129 = tpu.matmul %127, %128, %cst_73 {dimension_numbers = #tpu.dot_dimension_numbers<[1], [0], [0], [1], [0, 0, 1, 1], [], []>} : vector<8x288xf32>, vector<288x81xf32>, vector<8x81xf32> -> vector<8x81xf32>
      %c0_74 = arith.constant 0 : index
      %c0_75 = arith.constant 0 : index
      %130 = vector.load %arg11[%c0_74, %c0_75] : memref<8x6xf32, #tpu.memory_space<vmem>>, vector<8x6xf32>
      %cst_76 = arith.constant dense<0.000000e+00> : vector<8x81xf32>
      %131 = tpu.matmul %130, %105, %cst_76 {dimension_numbers = #tpu.dot_dimension_numbers<[1], [0], [0], [1], [0, 0, 1, 1], [], []>} : vector<8x6xf32>, vector<6x81xf32>, vector<8x81xf32> -> vector<8x81xf32>
      %132 = arith.addf %129, %131 : vector<8x81xf32>
      %c0_77 = arith.constant 0 : index
      %c0_78 = arith.constant 0 : index
      %133 = vector.load %arg12[%c0_77, %c0_78] : memref<8x1xf32, #tpu.memory_space<vmem>>, vector<8x1xf32>
      %134 = vector.broadcast %133 : vector<8x1xf32> to vector<8x81xf32>
      %135 = arith.addf %132, %134 : vector<8x81xf32>
      %cst_79 = arith.constant 0.000000e+00 : f32
      %136 = vector.broadcast %cst_79 : f32 to vector<64x128xf32>
      %c0_80 = arith.constant 0 : index
      %c0_81 = arith.constant 0 : index
      %137 = vector.load %arg17[%c0_80, %c0_81] : memref<64x128xf32, #tpu.memory_space<vmem>>, vector<64x128xf32>
      tpu.vector_store %arg17[%c0_80, %c0_81], %136 {strides = array<i32>} : memref<64x128xf32, #tpu.memory_space<vmem>>, vector<64x128xf32>,
      %c0_82 = arith.constant 0 : index
      %c0_83 = arith.constant 0 : index
      %138 = vector.load %arg17[%c0_82, %c0_83] : memref<64x128xf32, #tpu.memory_space<vmem>>, vector<8x81xf32>
      tpu.vector_store %arg17[%c0_82, %c0_83], %135 {strides = array<i32>} : memref<64x128xf32, #tpu.memory_space<vmem>>, vector<8x81xf32>,
    } else {
    }
    %c0 = arith.constant 0 : index
    %c0_1 = arith.constant 0 : index
    %3 = vector.load %arg17[%c0, %c0_1] : memref<64x128xf32, #tpu.memory_space<vmem>>, vector<64x128xf32>
    %c0_2 = arith.constant 0 : index
    %c0_3 = arith.constant 0 : index
    %c0_4 = arith.constant 0 : index
    %4 = vector.load %arg13[%c0_2, %c0_3, %c0_4] : memref<9x1x128xf32, #tpu.memory_space<vmem>>, vector<9x1x128xf32>
    %cst = arith.constant 0.000000e+00 : f32
    %5 = vector.broadcast %cst : f32 to vector<64x128xf32>
    %c10_i32 = arith.constant 10 : i32
    %6 = tpu.dynamic_rotate %3 by %c10_i32 dim 1 : vector<64x128xf32>, i32 -> vector<64x128xf32>
    %7 = vector.extract_strided_slice %4 {offsets = [0, 0, 0], sizes = [1, 1, 128], strides = [1, 1, 1]} : vector<9x1x128xf32> to vector<1x1x128xf32>
    %8 = vector.shape_cast %7 : vector<1x1x128xf32> to vector<1x128xf32>
    %9 = vector.broadcast %8 : vector<1x128xf32> to vector<64x128xf32>
    %10 = arith.mulf %6, %9 : vector<64x128xf32>
    %c0_5 = arith.constant 0 : index
    %c0_6 = arith.constant 0 : index
    %c0_7 = arith.constant 0 : index
    %c0_8 = arith.constant 0 : index
    %11 = vector.load %arg14[%c0_5, %c0_6, %c0_7, %c0_8] : memref<1x9x64x64xbf16, #tpu.memory_space<vmem>>, vector<1x1x64x64xbf16>
    %12 = vector.shape_cast %11 : vector<1x1x64x64xbf16> to vector<64x64xbf16>
    %13 = arith.truncf %10 : vector<64x128xf32> to vector<64x128xbf16>
    %cst_9 = arith.constant dense<0.000000e+00> : vector<64x128xf32>
    %14 = tpu.matmul %12, %13, %cst_9 {dimension_numbers = #tpu.dot_dimension_numbers<[1], [0], [0], [1], [0, 0, 1, 1], [], []>} : vector<64x64xbf16>, vector<64x128xbf16>, vector<64x128xf32> -> vector<64x128xf32>
    %15 = arith.addf %5, %14 : vector<64x128xf32>
    %c9_i32 = arith.constant 9 : i32
    %16 = tpu.dynamic_rotate %3 by %c9_i32 dim 1 : vector<64x128xf32>, i32 -> vector<64x128xf32>
    %17 = vector.extract_strided_slice %4 {offsets = [1, 0, 0], sizes = [1, 1, 128], strides = [1, 1, 1]} : vector<9x1x128xf32> to vector<1x1x128xf32>
    %18 = vector.shape_cast %17 : vector<1x1x128xf32> to vector<1x128xf32>
    %19 = vector.broadcast %18 : vector<1x128xf32> to vector<64x128xf32>
    %20 = arith.mulf %16, %19 : vector<64x128xf32>
    %c0_10 = arith.constant 0 : index
    %c1 = arith.constant 1 : index
    %c0_11 = arith.constant 0 : index
    %c0_12 = arith.constant 0 : index
    %21 = vector.load %arg14[%c0_10, %c1, %c0_11, %c0_12] : memref<1x9x64x64xbf16, #tpu.memory_space<vmem>>, vector<1x1x64x64xbf16>
    %22 = vector.shape_cast %21 : vector<1x1x64x64xbf16> to vector<64x64xbf16>
    %23 = arith.truncf %20 : vector<64x128xf32> to vector<64x128xbf16>
    %cst_13 = arith.constant dense<0.000000e+00> : vector<64x128xf32>
    %24 = tpu.matmul %22, %23, %cst_13 {dimension_numbers = #tpu.dot_dimension_numbers<[1], [0], [0], [1], [0, 0, 1, 1], [], []>} : vector<64x64xbf16>, vector<64x128xbf16>, vector<64x128xf32> -> vector<64x128xf32>
    %25 = arith.addf %15, %24 : vector<64x128xf32>
    %c8_i32 = arith.constant 8 : i32
    %26 = tpu.dynamic_rotate %3 by %c8_i32 dim 1 : vector<64x128xf32>, i32 -> vector<64x128xf32>
    %27 = vector.extract_strided_slice %4 {offsets = [2, 0, 0], sizes = [1, 1, 128], strides = [1, 1, 1]} : vector<9x1x128xf32> to vector<1x1x128xf32>
    %28 = vector.shape_cast %27 : vector<1x1x128xf32> to vector<1x128xf32>
    %29 = vector.broadcast %28 : vector<1x128xf32> to vector<64x128xf32>
    %30 = arith.mulf %26, %29 : vector<64x128xf32>
    %c0_14 = arith.constant 0 : index
    %c2 = arith.constant 2 : index
    %c0_15 = arith.constant 0 : index
    %c0_16 = arith.constant 0 : index
    %31 = vector.load %arg14[%c0_14, %c2, %c0_15, %c0_16] : memref<1x9x64x64xbf16, #tpu.memory_space<vmem>>, vector<1x1x64x64xbf16>
    %32 = vector.shape_cast %31 : vector<1x1x64x64xbf16> to vector<64x64xbf16>
    %33 = arith.truncf %30 : vector<64x128xf32> to vector<64x128xbf16>
    %cst_17 = arith.constant dense<0.000000e+00> : vector<64x128xf32>
    %34 = tpu.matmul %32, %33, %cst_17 {dimension_numbers = #tpu.dot_dimension_numbers<[1], [0], [0], [1], [0, 0, 1, 1], [], []>} : vector<64x64xbf16>, vector<64x128xbf16>, vector<64x128xf32> -> vector<64x128xf32>
    %35 = arith.addf %25, %34 : vector<64x128xf32>
    %c1_i32 = arith.constant 1 : i32
    %36 = tpu.dynamic_rotate %3 by %c1_i32 dim 1 : vector<64x128xf32>, i32 -> vector<64x128xf32>
    %37 = vector.extract_strided_slice %4 {offsets = [3, 0, 0], sizes = [1, 1, 128], strides = [1, 1, 1]} : vector<9x1x128xf32> to vector<1x1x128xf32>
    %38 = vector.shape_cast %37 : vector<1x1x128xf32> to vector<1x128xf32>
    %39 = vector.broadcast %38 : vector<1x128xf32> to vector<64x128xf32>
    %40 = arith.mulf %36, %39 : vector<64x128xf32>
    %c0_18 = arith.constant 0 : index
    %c3 = arith.constant 3 : index
    %c0_19 = arith.constant 0 : index
    %c0_20 = arith.constant 0 : index
    %41 = vector.load %arg14[%c0_18, %c3, %c0_19, %c0_20] : memref<1x9x64x64xbf16, #tpu.memory_space<vmem>>, vector<1x1x64x64xbf16>
    %42 = vector.shape_cast %41 : vector<1x1x64x64xbf16> to vector<64x64xbf16>
    %43 = arith.truncf %40 : vector<64x128xf32> to vector<64x128xbf16>
    %cst_21 = arith.constant dense<0.000000e+00> : vector<64x128xf32>
    %44 = tpu.matmul %42, %43, %cst_21 {dimension_numbers = #tpu.dot_dimension_numbers<[1], [0], [0], [1], [0, 0, 1, 1], [], []>} : vector<64x64xbf16>, vector<64x128xbf16>, vector<64x128xf32> -> vector<64x128xf32>
    %45 = arith.addf %35, %44 : vector<64x128xf32>
    %46 = vector.extract_strided_slice %4 {offsets = [4, 0, 0], sizes = [1, 1, 128], strides = [1, 1, 1]} : vector<9x1x128xf32> to vector<1x1x128xf32>
    %47 = vector.shape_cast %46 : vector<1x1x128xf32> to vector<1x128xf32>
    %48 = vector.broadcast %47 : vector<1x128xf32> to vector<64x128xf32>
    %49 = arith.mulf %3, %48 : vector<64x128xf32>
    %c0_22 = arith.constant 0 : index
    %c4 = arith.constant 4 : index
    %c0_23 = arith.constant 0 : index
    %c0_24 = arith.constant 0 : index
    %50 = vector.load %arg14[%c0_22, %c4, %c0_23, %c0_24] : memref<1x9x64x64xbf16, #tpu.memory_space<vmem>>, vector<1x1x64x64xbf16>
    %51 = vector.shape_cast %50 : vector<1x1x64x64xbf16> to vector<64x64xbf16>
    %52 = arith.truncf %49 : vector<64x128xf32> to vector<64x128xbf16>
    %cst_25 = arith.constant dense<0.000000e+00> : vector<64x128xf32>
    %53 = tpu.matmul %51, %52, %cst_25 {dimension_numbers = #tpu.dot_dimension_numbers<[1], [0], [0], [1], [0, 0, 1, 1], [], []>} : vector<64x64xbf16>, vector<64x128xbf16>, vector<64x128xf32> -> vector<64x128xf32>
    %54 = arith.addf %45, %53 : vector<64x128xf32>
    %c127_i32 = arith.constant 127 : i32
    %55 = tpu.dynamic_rotate %3 by %c127_i32 dim 1 : vector<64x128xf32>, i32 -> vector<64x128xf32>
    %56 = vector.extract_strided_slice %4 {offsets = [5, 0, 0], sizes = [1, 1, 128], strides = [1, 1, 1]} : vector<9x1x128xf32> to vector<1x1x128xf32>
    %57 = vector.shape_cast %56 : vector<1x1x128xf32> to vector<1x128xf32>
    %58 = vector.broadcast %57 : vector<1x128xf32> to vector<64x128xf32>
    %59 = arith.mulf %55, %58 : vector<64x128xf32>
    %c0_26 = arith.constant 0 : index
    %c5 = arith.constant 5 : index
    %c0_27 = arith.constant 0 : index
    %c0_28 = arith.constant 0 : index
    %60 = vector.load %arg14[%c0_26, %c5, %c0_27, %c0_28] : memref<1x9x64x64xbf16, #tpu.memory_space<vmem>>, vector<1x1x64x64xbf16>
    %61 = vector.shape_cast %60 : vector<1x1x64x64xbf16> to vector<64x64xbf16>
    %62 = arith.truncf %59 : vector<64x128xf32> to vector<64x128xbf16>
    %cst_29 = arith.constant dense<0.000000e+00> : vector<64x128xf32>
    %63 = tpu.matmul %61, %62, %cst_29 {dimension_numbers = #tpu.dot_dimension_numbers<[1], [0], [0], [1], [0, 0, 1, 1], [], []>} : vector<64x64xbf16>, vector<64x128xbf16>, vector<64x128xf32> -> vector<64x128xf32>
    %64 = arith.addf %54, %63 : vector<64x128xf32>
    %c120_i32 = arith.constant 120 : i32
    %65 = tpu.dynamic_rotate %3 by %c120_i32 dim 1 : vector<64x128xf32>, i32 -> vector<64x128xf32>
    %66 = vector.extract_strided_slice %4 {offsets = [6, 0, 0], sizes = [1, 1, 128], strides = [1, 1, 1]} : vector<9x1x128xf32> to vector<1x1x128xf32>
    %67 = vector.shape_cast %66 : vector<1x1x128xf32> to vector<1x128xf32>
    %68 = vector.broadcast %67 : vector<1x128xf32> to vector<64x128xf32>
    %69 = arith.mulf %65, %68 : vector<64x128xf32>
    %c0_30 = arith.constant 0 : index
    %c6 = arith.constant 6 : index
    %c0_31 = arith.constant 0 : index
    %c0_32 = arith.constant 0 : index
    %70 = vector.load %arg14[%c0_30, %c6, %c0_31, %c0_32] : memref<1x9x64x64xbf16, #tpu.memory_space<vmem>>, vector<1x1x64x64xbf16>
    %71 = vector.shape_cast %70 : vector<1x1x64x64xbf16> to vector<64x64xbf16>
    %72 = arith.truncf %69 : vector<64x128xf32> to vector<64x128xbf16>
    %cst_33 = arith.constant dense<0.000000e+00> : vector<64x128xf32>
    %73 = tpu.matmul %71, %72, %cst_33 {dimension_numbers = #tpu.dot_dimension_numbers<[1], [0], [0], [1], [0, 0, 1, 1], [], []>} : vector<64x64xbf16>, vector<64x128xbf16>, vector<64x128xf32> -> vector<64x128xf32>
    %74 = arith.addf %64, %73 : vector<64x128xf32>
    %c119_i32 = arith.constant 119 : i32
    %75 = tpu.dynamic_rotate %3 by %c119_i32 dim 1 : vector<64x128xf32>, i32 -> vector<64x128xf32>
    %76 = vector.extract_strided_slice %4 {offsets = [7, 0, 0], sizes = [1, 1, 128], strides = [1, 1, 1]} : vector<9x1x128xf32> to vector<1x1x128xf32>
    %77 = vector.shape_cast %76 : vector<1x1x128xf32> to vector<1x128xf32>
    %78 = vector.broadcast %77 : vector<1x128xf32> to vector<64x128xf32>
    %79 = arith.mulf %75, %78 : vector<64x128xf32>
    %c0_34 = arith.constant 0 : index
    %c7 = arith.constant 7 : index
    %c0_35 = arith.constant 0 : index
    %c0_36 = arith.constant 0 : index
    %80 = vector.load %arg14[%c0_34, %c7, %c0_35, %c0_36] : memref<1x9x64x64xbf16, #tpu.memory_space<vmem>>, vector<1x1x64x64xbf16>
    %81 = vector.shape_cast %80 : vector<1x1x64x64xbf16> to vector<64x64xbf16>
    %82 = arith.truncf %79 : vector<64x128xf32> to vector<64x128xbf16>
    %cst_37 = arith.constant dense<0.000000e+00> : vector<64x128xf32>
    %83 = tpu.matmul %81, %82, %cst_37 {dimension_numbers = #tpu.dot_dimension_numbers<[1], [0], [0], [1], [0, 0, 1, 1], [], []>} : vector<64x64xbf16>, vector<64x128xbf16>, vector<64x128xf32> -> vector<64x128xf32>
    %84 = arith.addf %74, %83 : vector<64x128xf32>
    %c118_i32 = arith.constant 118 : i32
    %85 = tpu.dynamic_rotate %3 by %c118_i32 dim 1 : vector<64x128xf32>, i32 -> vector<64x128xf32>
    %86 = vector.extract_strided_slice %4 {offsets = [8, 0, 0], sizes = [1, 1, 128], strides = [1, 1, 1]} : vector<9x1x128xf32> to vector<1x1x128xf32>
    %87 = vector.shape_cast %86 : vector<1x1x128xf32> to vector<1x128xf32>
    %88 = vector.broadcast %87 : vector<1x128xf32> to vector<64x128xf32>
    %89 = arith.mulf %85, %88 : vector<64x128xf32>
    %c0_38 = arith.constant 0 : index
    %c8 = arith.constant 8 : index
    %c0_39 = arith.constant 0 : index
    %c0_40 = arith.constant 0 : index
    %90 = vector.load %arg14[%c0_38, %c8, %c0_39, %c0_40] : memref<1x9x64x64xbf16, #tpu.memory_space<vmem>>, vector<1x1x64x64xbf16>
    %91 = vector.shape_cast %90 : vector<1x1x64x64xbf16> to vector<64x64xbf16>
    %92 = arith.truncf %89 : vector<64x128xf32> to vector<64x128xbf16>
    %cst_41 = arith.constant dense<0.000000e+00> : vector<64x128xf32>
    %93 = tpu.matmul %91, %92, %cst_41 {dimension_numbers = #tpu.dot_dimension_numbers<[1], [0], [0], [1], [0, 0, 1, 1], [], []>} : vector<64x64xbf16>, vector<64x128xbf16>, vector<64x128xf32> -> vector<64x128xf32>
    %94 = arith.addf %84, %93 : vector<64x128xf32>
    %c0_42 = arith.constant 0 : index
    %c0_43 = arith.constant 0 : index
    %c0_44 = arith.constant 0 : index
    %95 = vector.load %arg15[%c0_42, %c0_43, %c0_44] : memref<1x64x1xf32, #tpu.memory_space<vmem>>, vector<1x64x1xf32>
    %96 = vector.shape_cast %95 : vector<1x64x1xf32> to vector<64x1xf32>
    %97 = vector.broadcast %96 : vector<64x1xf32> to vector<64x128xf32>
    %98 = arith.addf %94, %97 : vector<64x128xf32>
    %c5_i32 = arith.constant 5 : i32
    %99 = arith.cmpi slt, %arg0, %c5_i32 : i32
    %100 = arith.extui %99 : i1 to i32
    %c0_i32_45 = arith.constant 0 : i32
    %101 = arith.cmpi ne, %100, %c0_i32_45 : i32
    scf.if %101 {
      %cst_48 = arith.constant 0.000000e+00 : f32
      %105 = vector.broadcast %cst_48 : f32 to vector<64x128xf32>
      %106 = arith.maximumf %98, %105 : vector<64x128xf32>
      %c0_49 = arith.constant 0 : index
      %c0_50 = arith.constant 0 : index
      %107 = vector.load %arg17[%c0_49, %c0_50] : memref<64x128xf32, #tpu.memory_space<vmem>>, vector<64x128xf32>
      tpu.vector_store %arg17[%c0_49, %c0_50], %106 {strides = array<i32>} : memref<64x128xf32, #tpu.memory_space<vmem>>, vector<64x128xf32>,
    } else {
    }
    %c5_i32_46 = arith.constant 5 : i32
    %102 = arith.cmpi eq, %arg0, %c5_i32_46 : i32
    %103 = arith.extui %102 : i1 to i32
    %c0_i32_47 = arith.constant 0 : i32
    %104 = arith.cmpi ne, %103, %c0_i32_47 : i32
    scf.if %104 {
      %105 = vector.extract_strided_slice %98 {offsets = [0, 0], sizes = [6, 81], strides = [1, 1]} : vector<64x128xf32> to vector<6x81xf32>
      %c0_48 = arith.constant 0 : index
      %c0_49 = arith.constant 0 : index
      %106 = vector.load %arg16[%c0_48, %c0_49] : memref<6x81xf32, #tpu.memory_space<vmem>>, vector<6x81xf32>
      tpu.vector_store %arg16[%c0_48, %c0_49], %105 {strides = array<i32>} : memref<6x81xf32, #tpu.memory_space<vmem>>, vector<6x81xf32>,
    } else {
    }
    return
  }
  func.func @transform_0(%arg0: i32) -> (i32, i32) {
    %c0_i32 = arith.constant 0 : i32
    %c0_i32_0 = arith.constant 0 : i32
    %c0_i32_1 = arith.constant 0 : i32
    return %c0_i32, %c0_i32_0 : i32, i32
  }
  func.func @transform_1(%arg0: i32) -> (i32, i32) {
    %c0_i32 = arith.constant 0 : i32
    %c0_i32_0 = arith.constant 0 : i32
    %c0_i32_1 = arith.constant 0 : i32
    return %c0_i32, %c0_i32_0 : i32, i32
  }
  func.func @transform_2(%arg0: i32) -> (i32, i32) {
    %c0_i32 = arith.constant 0 : i32
    %c0_i32_0 = arith.constant 0 : i32
    %c0_i32_1 = arith.constant 0 : i32
    return %c0_i32, %c0_i32_0 : i32, i32
  }
  func.func @transform_3(%arg0: i32) -> (i32, i32) {
    %c0_i32 = arith.constant 0 : i32
    %c0_i32_0 = arith.constant 0 : i32
    %c0_i32_1 = arith.constant 0 : i32
    return %c0_i32, %c0_i32_0 : i32, i32
  }
  func.func @transform_4(%arg0: i32) -> (i32, i32) {
    %c0_i32 = arith.constant 0 : i32
    %c0_i32_0 = arith.constant 0 : i32
    %c0_i32_1 = arith.constant 0 : i32
    return %c0_i32, %c0_i32_0 : i32, i32
  }
  func.func @transform_5(%arg0: i32) -> (i32, i32) {
    %c0_i32 = arith.constant 0 : i32
    %c0_i32_0 = arith.constant 0 : i32
    %c0_i32_1 = arith.constant 0 : i32
    return %c0_i32, %c0_i32_0 : i32, i32
  }
  func.func @transform_6(%arg0: i32) -> (i32, i32) {
    %c0_i32 = arith.constant 0 : i32
    %c0_i32_0 = arith.constant 0 : i32
    %c0_i32_1 = arith.constant 0 : i32
    return %c0_i32, %c0_i32_0 : i32, i32
  }
  func.func @transform_7(%arg0: i32) -> (i32, i32) {
    %c0_i32 = arith.constant 0 : i32
    %c0_i32_0 = arith.constant 0 : i32
    %c0_i32_1 = arith.constant 0 : i32
    return %c0_i32, %c0_i32_0 : i32, i32
  }
  func.func @transform_8(%arg0: i32) -> (i32, i32) {
    %c0_i32 = arith.constant 0 : i32
    %c0_i32_0 = arith.constant 0 : i32
    %c0_i32_1 = arith.constant 0 : i32
    return %c0_i32, %c0_i32_0 : i32, i32
  }
  func.func @transform_9(%arg0: i32) -> (i32, i32) {
    %c0_i32 = arith.constant 0 : i32
    %c0_i32_0 = arith.constant 0 : i32
    %c0_i32_1 = arith.constant 0 : i32
    return %c0_i32, %c0_i32_0 : i32, i32
  }
  func.func @transform_10(%arg0: i32) -> (i32, i32) {
    %c0_i32 = arith.constant 0 : i32
    %c0_i32_0 = arith.constant 0 : i32
    %c0_i32_1 = arith.constant 0 : i32
    return %c0_i32, %c0_i32_0 : i32, i32
  }
  func.func @transform_11(%arg0: i32) -> (i32, i32) {
    %c0_i32 = arith.constant 0 : i32
    %c0_i32_0 = arith.constant 0 : i32
    %c0_i32_1 = arith.constant 0 : i32
    return %c0_i32, %c0_i32_0 : i32, i32
  }
  func.func @transform_12(%arg0: i32) -> (i32, i32, i32) {
    %c0_i32 = arith.constant 0 : i32
    %c0_i32_0 = arith.constant 0 : i32
    %c0_i32_1 = arith.constant 0 : i32
    %c0_i32_2 = arith.constant 0 : i32
    return %c0_i32, %c0_i32_0, %c0_i32_1 : i32, i32, i32
  }
  func.func @transform_13(%arg0: i32) -> (i32, i32, i32, i32) {
    %c0_i32 = arith.constant 0 : i32
    %c0_i32_0 = arith.constant 0 : i32
    %c0_i32_1 = arith.constant 0 : i32
    %c0_i32_2 = arith.constant 0 : i32
    return %arg0, %c0_i32, %c0_i32_0, %c0_i32_1 : i32, i32, i32, i32
  }
  func.func @transform_14(%arg0: i32) -> (i32, i32, i32) {
    %c0_i32 = arith.constant 0 : i32
    %c0_i32_0 = arith.constant 0 : i32
    %c0_i32_1 = arith.constant 0 : i32
    return %arg0, %c0_i32, %c0_i32_0 : i32, i32, i32
  }
  func.func @transform_15(%arg0: i32) -> (i32, i32) {
    %c0_i32 = arith.constant 0 : i32
    %c0_i32_0 = arith.constant 0 : i32
    %c0_i32_1 = arith.constant 0 : i32
    return %c0_i32, %c0_i32_0 : i32, i32
  }
}

</mosaic_0001>

<llo_original>
// kernel: _lambda_.1
$region0: #{_lambda_.1}
  #allocation0 [shape = 'u32[]', space=smem, size = 0x4, offset = 0x4, fixed_abs, tag = 'smem constant byte address 0x4 - core index']
  #allocation1 [shape = 'u32[144,128]{1,0:T(1,128)}', space=vmem, size = 0x12000, scoped, tag = 'internal scratch']
  #allocation2 [shape = 'f32[64,128]{1,0:T(8,128)}', space=vmem, size = 0x8000, scoped, tag = 'scratch operand']
  %s0 = inlined_call_operand.hbm [shape: f32[6,81], index: 0, kind: input, shape index: {}]
  %s1 = inlined_call_operand.hbm [shape: f32[1,288], index: 1, kind: input, shape index: {}]
  %s2 = inlined_call_operand.hbm [shape: f32[81,288], index: 2, kind: input, shape index: {}]
  %s3 = inlined_call_operand.hbm [shape: f32[288,81], index: 3, kind: input, shape index: {}]
  %s4 = inlined_call_operand.hbm [shape: f32[64,1], index: 4, kind: input, shape index: {}]
  %s5 = inlined_call_operand.hbm [shape: f32[64,1], index: 5, kind: input, shape index: {}]
  %s6 = inlined_call_operand.hbm [shape: f32[48,64], index: 6, kind: input, shape index: {}]
  %s7 = inlined_call_operand.hbm [shape: f32[48,1], index: 7, kind: input, shape index: {}]
  %s8 = inlined_call_operand.hbm [shape: f32[48,6], index: 8, kind: input, shape index: {}]
  %s9 = inlined_call_operand.hbm [shape: f32[8,48], index: 9, kind: input, shape index: {}]
  %s10 = inlined_call_operand.hbm [shape: f32[8,6], index: 10, kind: input, shape index: {}]
  %s11 = inlined_call_operand.vmem [shape: f32[8,1], index: 11, kind: input, shape index: {}]
  %s12 = inlined_call_operand.vmem [shape: f32[9,1,128], index: 12, kind: input, shape index: {}]
  %s13 = inlined_call_operand.hbm [shape: bf16[6,9,64,64], index: 13, kind: input, shape index: {}]
  %s14 = inlined_call_operand.hbm [shape: f32[6,64,1], index: 14, kind: input, shape index: {}]
  %s15 = inlined_call_operand.vmem [shape: f32[6,81], index: 15, kind: output, shape index: {}]
  %s16 = sld [smem:[#allocation0]]
  $region157: #{_lambda_.1} parent=0
    _
  %s18 = ssub.s32 1, %s16
  %s19 = scalar_select 0, %s18, %s16
  $region1: #{_lambda_.1} parent=0
    #allocation3 [shape = 'u8[4096]{0}', space=vmem, size = 0x1000, scoped, tag = 'input window, operand 0, single buffered']
    #allocation4 [shape = 's32[2]{0}', space=sflag, size = 0x8, scoped, tag = 'scoped memory for _lambda_.1']
    #allocation5 [shape = 'u8[1536]{0}', space=vmem, size = 0x800, scoped, tag = 'input window, operand 1, single buffered']
    #allocation6 [shape = 's32[1]{0}', space=sflag, size = 0x4, scoped, tag = 'scoped memory for _lambda_.1']
    #allocation7 [shape = 'u8[135168]{0}', space=vmem, size = 0x21000, scoped, tag = 'input window, operand 2, single buffered']
    #allocation8 [shape = 'u8[147456]{0}', space=vmem, size = 0x24000, scoped, tag = 'input window, operand 3, single buffered']
    #allocation9 [shape = 's32[1]{0}', space=sflag, size = 0x4, scoped, tag = 'scoped memory for _lambda_.1']
    #allocation10 [shape = 'u8[32768]{0}', space=vmem, size = 0x8000, scoped, tag = 'input window, operand 4, single buffered']
    #allocation11 [shape = 'u8[32768]{0}', space=vmem, size = 0x8000, scoped, tag = 'input window, operand 5, single buffered']
    #allocation12 [shape = 's32[1]{0}', space=sflag, size = 0x4, scoped, tag = 'scoped memory for _lambda_.1']
    #allocation13 [shape = 'u8[24576]{0}', space=vmem, size = 0x6000, scoped, tag = 'input window, operand 6, single buffered']
    #allocation14 [shape = 'u8[24576]{0}', space=vmem, size = 0x6000, scoped, tag = 'input window, operand 7, single buffered']
    #allocation15 [shape = 's32[1]{0}', space=sflag, size = 0x4, scoped, tag = 'scoped memory for _lambda_.1']
    #allocation16 [shape = 'u8[24576]{0}', space=vmem, size = 0x6000, scoped, tag = 'input window, operand 8, single buffered']
    #allocation17 [shape = 'u8[4096]{0}', space=vmem, size = 0x1000, scoped, tag = 'input window, operand 9, single buffered']
    #allocation18 [shape = 's32[1]{0}', space=sflag, size = 0x4, scoped, tag = 'scoped memory for _lambda_.1']
    #allocation19 [shape = 'u8[4096]{0}', space=vmem, size = 0x1000, scoped, tag = 'input window, operand 10, single buffered']
    #allocation20 [shape = 'u8[294912]{0}', space=vmem, size = 0x48000, scoped, tag = 'input window, operand 13']
    #allocation21 [shape = 's32[2]{0}', space=sflag, size = 0x8, scoped, tag = 'scoped memory for _lambda_.1']
    #allocation22 [shape = 'u8[65536]{0}', space=vmem, size = 0x10000, scoped, tag = 'input window, operand 14']
    %20 = vsyncpa [#allocation4], 0
    %21 = vsyncpa [#allocation6], 0
    %22 = vsyncpa [#allocation9], 0
    %23 = vsyncpa [#allocation12], 0
    %24 = vsyncpa [#allocation15], 0
    %25 = vsyncpa [#allocation18], 0
    %26 = vsyncpa [#allocation21], 0
    %s27 = scalar_lea.sflag [#allocation21], 1
    %28 = vsyncpa %s27, 0
    loop: start=0, step=1, limit=8
    $region2: #{_lambda_.1} parent=1 // loop_pre_header
      _
    $region3: #{_lambda_.1} parent=1 // loop_header
      %s30 = sphi 0, %s34
      %p31 = scmp.ge.s32.totalorder %s30, 8
      %s38 = sphi 0, %s38
      %s40 = sphi 0, %s38
      %s41 = sphi 0, %s40
      %s55 = sphi 0, %s41
      %s59 = sphi 0, %s59
      %s61 = sphi 0, %s59
      %s62 = sphi 0, %s61
      %s76 = sphi 0, %s62
      %s80 = sphi 0, %s80
      %s82 = sphi 0, %s80
      %s83 = sphi 0, %s82
      %s97 = sphi 0, %s83
      %s101 = sphi 0, %s101
      %s103 = sphi 0, %s101
      %s104 = sphi 0, %s103
      %s118 = sphi 0, %s104
      %s122 = sphi 0, %s122
      %s124 = sphi 0, %s122
      %s125 = sphi 0, %s124
      %s139 = sphi 0, %s125
      %s143 = sphi 0, %s143
      %s145 = sphi 0, %s143
      %s146 = sphi 0, %s145
      %s160 = sphi 0, %s146
      %s164 = sphi 0, %s164
      %s166 = sphi 0, %s164
      %s167 = sphi 0, %s166
      %s181 = sphi 0, %s167
      %s185 = sphi 0, %s185
      %s187 = sphi 0, %s185
      %s188 = sphi 0, %s187
      %s202 = sphi 0, %s188
      %s206 = sphi 0, %s206
      %s208 = sphi 0, %s206
      %s209 = sphi 0, %s208
      %s223 = sphi 0, %s209
      %s227 = sphi 0, %s227
      %s229 = sphi 0, %s227
      %s230 = sphi 0, %s229
      %s244 = sphi 0, %s230
      %s248 = sphi 0, %s248
      %s250 = sphi 0, %s248
      %s251 = sphi 0, %s250
      %s265 = sphi 0, %s251
      %s269 = sphi 0, %s269
      %s271 = sphi 0, %s269
      %s272 = sphi 0, %s271
      %s286 = sphi 0, %s272
      %s290 = sphi 0, %s290
      %s292 = sphi 0, %s290
      %s293 = sphi 0, %s292
      %s307 = sphi 0, %s293
      %s313 = sphi 0, %s315
      %s316 = sphi 0, %s313
      %s317 = sphi 0, %s316
      %s333 = sphi 0, %s317
      %s339 = sphi 0, %s341
      %s342 = sphi 0, %s339
      %s343 = sphi 0, %s342
      %s359 = sphi 0, %s343
      %s363 = sphi 0, %s363
      %s365 = sphi 0, %s363
      %s366 = sphi 0, %s365
      %s380 = sphi 0, %s366
    $region4: #{_lambda_.1} parent=1 // loop_header_branch
      %33 = sbr.rel (%p31) target = $region8
    $region5: #{_lambda_.1} parent=1 // loop_body
      %s35 = ssub.s32 %s30, 1
      %s36 = ssub.s32 %s30, 2
      %s37 = sadd.s32 %s30, 1
      %s39 = sadd.s32 %s38, 1
      %p42 = scmp.eq.s32.totalorder %s30, 5
      %p43 = scmp.ne.s32.totalorder %s38, %s40
      %p44 = scmp.eq.s32.totalorder %s30, 0
      %p45 = por %p43, %p44
      %p46 = scmp.ne.s32.totalorder %s38, %s40
      %p47 = scmp.eq.s32.totalorder %s35, 5
      %p48 = por %p46, %p47
      %p49 = scmp.ne.s32.totalorder %s40, %s41
      %p50 = scmp.eq.s32.totalorder %s35, 0
      %p51 = por %p49, %p50
      %p52 = scmp.ne.s32.totalorder %s40, %s41
      %p53 = scmp.eq.s32.totalorder %s36, 5
      %p54 = por %p52, %p53
      %p56 = scmp.ne.s32.totalorder %s41, %s55
      %p57 = scmp.eq.s32.totalorder %s36, 0
      %p58 = por %p56, %p57
      %s60 = sadd.s32 %s59, 1
      %p63 = scmp.eq.s32.totalorder %s30, 5
      %p64 = scmp.ne.s32.totalorder %s59, %s61
      %p65 = scmp.eq.s32.totalorder %s30, 0
      %p66 = por %p64, %p65
      %p67 = scmp.ne.s32.totalorder %s59, %s61
      %p68 = scmp.eq.s32.totalorder %s35, 5
      %p69 = por %p67, %p68
      %p70 = scmp.ne.s32.totalorder %s61, %s62
      %p71 = scmp.eq.s32.totalorder %s35, 0
      %p72 = por %p70, %p71
      %p73 = scmp.ne.s32.totalorder %s61, %s62
      %p74 = scmp.eq.s32.totalorder %s36, 5
      %p75 = por %p73, %p74
      %p77 = scmp.ne.s32.totalorder %s62, %s76
      %p78 = scmp.eq.s32.totalorder %s36, 0
      %p79 = por %p77, %p78
      %s81 = sadd.s32 %s80, 1
      %p84 = scmp.eq.s32.totalorder %s30, 5
      %p85 = scmp.ne.s32.totalorder %s80, %s82
      %p86 = scmp.eq.s32.totalorder %s30, 0
      %p87 = por %p85, %p86
      %p88 = scmp.ne.s32.totalorder %s80, %s82
      %p89 = scmp.eq.s32.totalorder %s35, 5
      %p90 = por %p88, %p89
      %p91 = scmp.ne.s32.totalorder %s82, %s83
      %p92 = scmp.eq.s32.totalorder %s35, 0
      %p93 = por %p91, %p92
      %p94 = scmp.ne.s32.totalorder %s82, %s83
      %p95 = scmp.eq.s32.totalorder %s36, 5
      %p96 = por %p94, %p95
      %p98 = scmp.ne.s32.totalorder %s83, %s97
      %p99 = scmp.eq.s32.totalorder %s36, 0
      %p100 = por %p98, %p99
      %s102 = sadd.s32 %s101, 1
      %p105 = scmp.eq.s32.totalorder %s30, 5
      %p106 = scmp.ne.s32.totalorder %s101, %s103
      %p107 = scmp.eq.s32.totalorder %s30, 0
      %p108 = por %p106, %p107
      %p109 = scmp.ne.s32.totalorder %s101, %s103
      %p110 = scmp.eq.s32.totalorder %s35, 5
      %p111 = por %p109, %p110
      %p112 = scmp.ne.s32.totalorder %s103, %s104
      %p113 = scmp.eq.s32.totalorder %s35, 0
      %p114 = por %p112, %p113
      %p115 = scmp.ne.s32.totalorder %s103, %s104
      %p116 = scmp.eq.s32.totalorder %s36, 5
      %p117 = por %p115, %p116
      %p119 = scmp.ne.s32.totalorder %s104, %s118
      %p120 = scmp.eq.s32.totalorder %s36, 0
      %p121 = por %p119, %p120
      %s123 = sadd.s32 %s122, 1
      %p126 = scmp.eq.s32.totalorder %s30, 5
      %p127 = scmp.ne.s32.totalorder %s122, %s124
      %p128 = scmp.eq.s32.totalorder %s30, 0
      %p129 = por %p127, %p128
      %p130 = scmp.ne.s32.totalorder %s122, %s124
      %p131 = scmp.eq.s32.totalorder %s35, 5
      %p132 = por %p130, %p131
      %p133 = scmp.ne.s32.totalorder %s124, %s125
      %p134 = scmp.eq.s32.totalorder %s35, 0
      %p135 = por %p133, %p134
      %p136 = scmp.ne.s32.totalorder %s124, %s125
      %p137 = scmp.eq.s32.totalorder %s36, 5
      %p138 = por %p136, %p137
      %p140 = scmp.ne.s32.totalorder %s125, %s139
      %p141 = scmp.eq.s32.totalorder %s36, 0
      %p142 = por %p140, %p141
      %s144 = sadd.s32 %s143, 1
      %p147 = scmp.eq.s32.totalorder %s30, 5
      %p148 = scmp.ne.s32.totalorder %s143, %s145
      %p149 = scmp.eq.s32.totalorder %s30, 0
      %p150 = por %p148, %p149
      %p151 = scmp.ne.s32.totalorder %s143, %s145
      %p152 = scmp.eq.s32.totalorder %s35, 5
      %p153 = por %p151, %p152
      %p154 = scmp.ne.s32.totalorder %s145, %s146
      %p155 = scmp.eq.s32.totalorder %s35, 0
      %p156 = por %p154, %p155
      %p157 = scmp.ne.s32.totalorder %s145, %s146
      %p158 = scmp.eq.s32.totalorder %s36, 5
      %p159 = por %p157, %p158
      %p161 = scmp.ne.s32.totalorder %s146, %s160
      %p162 = scmp.eq.s32.totalorder %s36, 0
      %p163 = por %p161, %p162
      %s165 = sadd.s32 %s164, 1
      %p168 = scmp.eq.s32.totalorder %s30, 5
      %p169 = scmp.ne.s32.totalorder %s164, %s166
      %p170 = scmp.eq.s32.totalorder %s30, 0
      %p171 = por %p169, %p170
      %p172 = scmp.ne.s32.totalorder %s164, %s166
      %p173 = scmp.eq.s32.totalorder %s35, 5
      %p174 = por %p172, %p173
      %p175 = scmp.ne.s32.totalorder %s166, %s167
      %p176 = scmp.eq.s32.totalorder %s35, 0
      %p177 = por %p175, %p176
      %p178 = scmp.ne.s32.totalorder %s166, %s167
      %p179 = scmp.eq.s32.totalorder %s36, 5
      %p180 = por %p178, %p179
      %p182 = scmp.ne.s32.totalorder %s167, %s181
      %p183 = scmp.eq.s32.totalorder %s36, 0
      %p184 = por %p182, %p183
      %s186 = sadd.s32 %s185, 1
      %p189 = scmp.eq.s32.totalorder %s30, 5
      %p190 = scmp.ne.s32.totalorder %s185, %s187
      %p191 = scmp.eq.s32.totalorder %s30, 0
      %p192 = por %p190, %p191
      %p193 = scmp.ne.s32.totalorder %s185, %s187
      %p194 = scmp.eq.s32.totalorder %s35, 5
      %p195 = por %p193, %p194
      %p196 = scmp.ne.s32.totalorder %s187, %s188
      %p197 = scmp.eq.s32.totalorder %s35, 0
      %p198 = por %p196, %p197
      %p199 = scmp.ne.s32.totalorder %s187, %s188
      %p200 = scmp.eq.s32.totalorder %s36, 5
      %p201 = por %p199, %p200
      %p203 = scmp.ne.s32.totalorder %s188, %s202
      %p204 = scmp.eq.s32.totalorder %s36, 0
      %p205 = por %p203, %p204
      %s207 = sadd.s32 %s206, 1
      %p210 = scmp.eq.s32.totalorder %s30, 5
      %p211 = scmp.ne.s32.totalorder %s206, %s208
      %p212 = scmp.eq.s32.totalorder %s30, 0
      %p213 = por %p211, %p212
      %p214 = scmp.ne.s32.totalorder %s206, %s208
      %p215 = scmp.eq.s32.totalorder %s35, 5
      %p216 = por %p214, %p215
      %p217 = scmp.ne.s32.totalorder %s208, %s209
      %p218 = scmp.eq.s32.totalorder %s35, 0
      %p219 = por %p217, %p218
      %p220 = scmp.ne.s32.totalorder %s208, %s209
      %p221 = scmp.eq.s32.totalorder %s36, 5
      %p222 = por %p220, %p221
      %p224 = scmp.ne.s32.totalorder %s209, %s223
      %p225 = scmp.eq.s32.totalorder %s36, 0
      %p226 = por %p224, %p225
      %s228 = sadd.s32 %s227, 1
      %p231 = scmp.eq.s32.totalorder %s30, 5
      %p232 = scmp.ne.s32.totalorder %s227, %s229
      %p233 = scmp.eq.s32.totalorder %s30, 0
      %p234 = por %p232, %p233
      %p235 = scmp.ne.s32.totalorder %s227, %s229
      %p236 = scmp.eq.s32.totalorder %s35, 5
      %p237 = por %p235, %p236
      %p238 = scmp.ne.s32.totalorder %s229, %s230
      %p239 = scmp.eq.s32.totalorder %s35, 0
      %p240 = por %p238, %p239
      %p241 = scmp.ne.s32.totalorder %s229, %s230
      %p242 = scmp.eq.s32.totalorder %s36, 5
      %p243 = por %p241, %p242
      %p245 = scmp.ne.s32.totalorder %s230, %s244
      %p246 = scmp.eq.s32.totalorder %s36, 0
      %p247 = por %p245, %p246
      %s249 = sadd.s32 %s248, 1
      %p252 = scmp.eq.s32.totalorder %s30, 5
      %p253 = scmp.ne.s32.totalorder %s248, %s250
      %p254 = scmp.eq.s32.totalorder %s30, 0
      %p255 = por %p253, %p254
      %p256 = scmp.ne.s32.totalorder %s248, %s250
      %p257 = scmp.eq.s32.totalorder %s35, 5
      %p258 = por %p256, %p257
      %p259 = scmp.ne.s32.totalorder %s250, %s251
      %p260 = scmp.eq.s32.totalorder %s35, 0
      %p261 = por %p259, %p260
      %p262 = scmp.ne.s32.totalorder %s250, %s251
      %p263 = scmp.eq.s32.totalorder %s36, 5
      %p264 = por %p262, %p263
      %p266 = scmp.ne.s32.totalorder %s251, %s265
      %p267 = scmp.eq.s32.totalorder %s36, 0
      %p268 = por %p266, %p267
      %s270 = sadd.s32 %s269, 1
      %p273 = scmp.eq.s32.totalorder %s30, 5
      %p274 = scmp.ne.s32.totalorder %s269, %s271
      %p275 = scmp.eq.s32.totalorder %s30, 0
      %p276 = por %p274, %p275
      %p277 = scmp.ne.s32.totalorder %s269, %s271
      %p278 = scmp.eq.s32.totalorder %s35, 5
      %p279 = por %p277, %p278
      %p280 = scmp.ne.s32.totalorder %s271, %s272
      %p281 = scmp.eq.s32.totalorder %s35, 0
      %p282 = por %p280, %p281
      %p283 = scmp.ne.s32.totalorder %s271, %s272
      %p284 = scmp.eq.s32.totalorder %s36, 5
      %p285 = por %p283, %p284
      %p287 = scmp.ne.s32.totalorder %s272, %s286
      %p288 = scmp.eq.s32.totalorder %s36, 0
      %p289 = por %p287, %p288
      %s291 = sadd.s32 %s290, 1
      %p294 = scmp.eq.s32.totalorder %s30, 5
      %p295 = scmp.ne.s32.totalorder %s290, %s292
      %p296 = scmp.eq.s32.totalorder %s30, 0
      %p297 = por %p295, %p296
      %p298 = scmp.ne.s32.totalorder %s290, %s292
      %p299 = scmp.eq.s32.totalorder %s35, 5
      %p300 = por %p298, %p299
      %p301 = scmp.ne.s32.totalorder %s292, %s293
      %p302 = scmp.eq.s32.totalorder %s35, 0
      %p303 = por %p301, %p302
      %p304 = scmp.ne.s32.totalorder %s292, %s293
      %p305 = scmp.eq.s32.totalorder %s36, 5
      %p306 = por %p304, %p305
      %p308 = scmp.ne.s32.totalorder %s293, %s307
      %p309 = scmp.eq.s32.totalorder %s36, 0
      %p310 = por %p308, %p309
      %s311 = ssub.s32 %s30, %s37
      %p312 = scmp.eq.s32.totalorder %s311, 0
      %s314 = sadd.s32 %s313, 1
      %s315 = scalar_select %p312, %s313, %s314
      %p318 = pneg %p312
      %p319 = scmp.eq.s32.totalorder %s30, 5
      %p320 = por %p318, %p319
      %p321 = scmp.ne.s32.totalorder %s313, %s316
      %p322 = scmp.eq.s32.totalorder %s30, 0
      %p323 = por %p321, %p322
      %p324 = scmp.ne.s32.totalorder %s313, %s316
      %p325 = scmp.eq.s32.totalorder %s35, 5
      %p326 = por %p324, %p325
      %p327 = scmp.ne.s32.totalorder %s316, %s317
      %p328 = scmp.eq.s32.totalorder %s35, 0
      %p329 = por %p327, %p328
      %p330 = scmp.ne.s32.totalorder %s316, %s317
      %p331 = scmp.eq.s32.totalorder %s36, 5
      %p332 = por %p330, %p331
      %p334 = scmp.ne.s32.totalorder %s317, %s333
      %p335 = scmp.eq.s32.totalorder %s36, 0
      %p336 = por %p334, %p335
      %s337 = ssub.s32 %s30, %s37
      %p338 = scmp.eq.s32.totalorder %s337, 0
      %s340 = sadd.s32 %s339, 1
      %s341 = scalar_select %p338, %s339, %s340
      %p344 = pneg %p338
      %p345 = scmp.eq.s32.totalorder %s30, 5
      %p346 = por %p344, %p345
      %p347 = scmp.ne.s32.totalorder %s339, %s342
      %p348 = scmp.eq.s32.totalorder %s30, 0
      %p349 = por %p347, %p348
      %p350 = scmp.ne.s32.totalorder %s339, %s342
      %p351 = scmp.eq.s32.totalorder %s35, 5
      %p352 = por %p350, %p351
      %p353 = scmp.ne.s32.totalorder %s342, %s343
      %p354 = scmp.eq.s32.totalorder %s35, 0
      %p355 = por %p353, %p354
      %p356 = scmp.ne.s32.totalorder %s342, %s343
      %p357 = scmp.eq.s32.totalorder %s36, 5
      %p358 = por %p356, %p357
      %p360 = scmp.ne.s32.totalorder %s343, %s359
      %p361 = scmp.eq.s32.totalorder %s36, 0
      %p362 = por %p360, %p361
      %s364 = sadd.s32 %s363, 1
      %p367 = scmp.eq.s32.totalorder %s30, 5
      %p368 = scmp.ne.s32.totalorder %s363, %s365
      %p369 = scmp.eq.s32.totalorder %s30, 0
      %p370 = por %p368, %p369
      %p371 = scmp.ne.s32.totalorder %s363, %s365
      %p372 = scmp.eq.s32.totalorder %s35, 5
      %p373 = por %p371, %p372
      %p374 = scmp.ne.s32.totalorder %s365, %s366
      %p375 = scmp.eq.s32.totalorder %s35, 0
      %p376 = por %p374, %p375
      %p377 = scmp.ne.s32.totalorder %s365, %s366
      %p378 = scmp.eq.s32.totalorder %s36, 5
      %p379 = por %p377, %p378
      %p381 = scmp.ne.s32.totalorder %s366, %s380
      %p382 = scmp.eq.s32.totalorder %s36, 0
      %p383 = por %p381, %p382
      %p384 = scmp.le.s32.totalorder 1, %s30
      %p385 = scmp.lt.s32.totalorder %s30, 7
      %p386 = pnand %p384, %p385
      %p387 = pneg %p386
      // Predicated region
      $region9: #{_lambda_.1} parent=5 // pred_check
        _
      $region10: #{_lambda_.1} parent=5 // pred_check_branch
        %389 = sbr.rel (%p386) target = $region12
      $region11: #{_lambda_.1} parent=5 // pred_region
        %s390 = ssub.s32 %s30, 1
        // Predicated region
        $region13: #{_lambda_.1} parent=11 // pred_check
          %p391 = pneg %p51
        $region14: #{_lambda_.1} parent=11 // pred_check_branch
          %393 = sbr.rel (%p391) target = $region16
        $region15: #{_lambda_.1} parent=11 // pred_region
          %s395 = ssub.s32 128, 128
          %396 = vsyncadd [#allocation4], %s395
          %s398 = sshll.u32 [#allocation3], 4
          %s399 = int_to_ptr.vmem [resolvable:$true] %s398
          %401 = dma.hbm_to_vmem [thread:$0]  %s0, 128, %s399, [#allocation4]
        $region16: #{_lambda_.1} parent=11 // pred_fallthru
          _
        // Predicated region
        $region17: #{_lambda_.1} parent=11 // pred_check
          %p402 = pneg %p72
        $region18: #{_lambda_.1} parent=11 // pred_check_branch
          %404 = sbr.rel (%p402) target = $region20
        $region19: #{_lambda_.1} parent=11 // pred_region
          %s406 = ssub.s32 48, 48
          %407 = vsyncadd [#allocation6], %s406
          %s409 = sshll.u32 [#allocation5], 4
          %s410 = int_to_ptr.vmem [resolvable:$true] %s409
          %412 = dma.hbm_to_vmem [thread:$0]  %s1, 48, %s410, [#allocation6]
        $region20: #{_lambda_.1} parent=11 // pred_fallthru
          _
        // Predicated region
        $region21: #{_lambda_.1} parent=11 // pred_check
          %p413 = pneg %p93
        $region22: #{_lambda_.1} parent=11 // pred_check_branch
          %415 = sbr.rel (%p413) target = $region24
        $region23: #{_lambda_.1} parent=11 // pred_region
          %s417 = ssub.s32 4224, 4224
          %418 = vsyncadd [#allocation6], %s417
          %s419 = sshll.u32 [#allocation7], 4
          %s420 = int_to_ptr.vmem [resolvable:$true] %s419
          %425 = dma.hbm_to_vmem [thread:$0]  %s2, 4224, %s420, [#allocation6], 384, 384, 24
        $region24: #{_lambda_.1} parent=11 // pred_fallthru
          _
        // Predicated region
        $region25: #{_lambda_.1} parent=11 // pred_check
          %p426 = pneg %p114
        $region26: #{_lambda_.1} parent=11 // pred_check_branch
          %428 = sbr.rel (%p426) target = $region28
        $region27: #{_lambda_.1} parent=11 // pred_region
          %s430 = ssub.s32 4608, 4608
          %431 = vsyncadd [#allocation9], %s430
          %s432 = sshll.u32 [#allocation8], 4
          %s433 = int_to_ptr.vmem [resolvable:$true] %s432
          %438 = dma.hbm_to_vmem [thread:$0]  %s3, 4608, %s433, [#allocation9], 128, 128, 8
        $region28: #{_lambda_.1} parent=11 // pred_fallthru
          _
        // Predicated region
        $region29: #{_lambda_.1} parent=11 // pred_check
          %p439 = pneg %p135
        $region30: #{_lambda_.1} parent=11 // pred_check_branch
          %441 = sbr.rel (%p439) target = $region32
        $region31: #{_lambda_.1} parent=11 // pred_region
          %s443 = ssub.s32 1024, 1024
          %444 = vsyncadd [#allocation9], %s443
          %s445 = sshll.u32 [#allocation10], 4
          %s446 = int_to_ptr.vmem [resolvable:$true] %s445
          %451 = dma.hbm_to_vmem [thread:$0]  %s4, 1024, %s446, [#allocation9], 128, 128, 8
        $region32: #{_lambda_.1} parent=11 // pred_fallthru
          _
        // Predicated region
        $region33: #{_lambda_.1} parent=11 // pred_check
          %p452 = pneg %p156
        $region34: #{_lambda_.1} parent=11 // pred_check_branch
          %454 = sbr.rel (%p452) target = $region36
        $region35: #{_lambda_.1} parent=11 // pred_region
          %s456 = ssub.s32 1024, 1024
          %457 = vsyncadd [#allocation12], %s456
          %s458 = sshll.u32 [#allocation11], 4
          %s459 = int_to_ptr.vmem [resolvable:$true] %s458
          %464 = dma.hbm_to_vmem [thread:$0]  %s5, 1024, %s459, [#allocation12], 128, 128, 8
        $region36: #{_lambda_.1} parent=11 // pred_fallthru
          _
        // Predicated region
        $region37: #{_lambda_.1} parent=11 // pred_check
          %p465 = pneg %p177
        $region38: #{_lambda_.1} parent=11 // pred_check_branch
          %467 = sbr.rel (%p465) target = $region40
        $region39: #{_lambda_.1} parent=11 // pred_region
          %s469 = ssub.s32 768, 768
          %470 = vsyncadd [#allocation12], %s469
          %s471 = sshll.u32 [#allocation13], 4
          %s472 = int_to_ptr.vmem [resolvable:$true] %s471
          %477 = dma.hbm_to_vmem [thread:$0]  %s6, 768, %s472, [#allocation12], 128, 128, 8
        $region40: #{_lambda_.1} parent=11 // pred_fallthru
          _
        // Predicated region
        $region41: #{_lambda_.1} parent=11 // pred_check
          %p478 = pneg %p198
        $region42: #{_lambda_.1} parent=11 // pred_check_branch
          %480 = sbr.rel (%p478) target = $region44
        $region43: #{_lambda_.1} parent=11 // pred_region
          %s482 = ssub.s32 768, 768
          %483 = vsyncadd [#allocation15], %s482
          %s484 = sshll.u32 [#allocation14], 4
          %s485 = int_to_ptr.vmem [resolvable:$true] %s484
          %490 = dma.hbm_to_vmem [thread:$0]  %s7, 768, %s485, [#allocation15], 128, 128, 8
        $region44: #{_lambda_.1} parent=11 // pred_fallthru
          _
        // Predicated region
        $region45: #{_lambda_.1} parent=11 // pred_check
          %p491 = pneg %p219
        $region46: #{_lambda_.1} parent=11 // pred_check_branch
          %493 = sbr.rel (%p491) target = $region48
        $region47: #{_lambda_.1} parent=11 // pred_region
          %s495 = ssub.s32 768, 768
          %496 = vsyncadd [#allocation15], %s495
          %s497 = sshll.u32 [#allocation16], 4
          %s498 = int_to_ptr.vmem [resolvable:$true] %s497
          %503 = dma.hbm_to_vmem [thread:$0]  %s8, 768, %s498, [#allocation15], 128, 128, 8
        $region48: #{_lambda_.1} parent=11 // pred_fallthru
          _
        // Predicated region
        $region49: #{_lambda_.1} parent=11 // pred_check
          %p504 = pneg %p240
        $region50: #{_lambda_.1} parent=11 // pred_check_branch
          %506 = sbr.rel (%p504) target = $region52
        $region51: #{_lambda_.1} parent=11 // pred_region
          %s508 = ssub.s32 128, 128
          %509 = vsyncadd [#allocation18], %s508
          %s511 = sshll.u32 [#allocation17], 4
          %s512 = int_to_ptr.vmem [resolvable:$true] %s511
          %514 = dma.hbm_to_vmem [thread:$0]  %s9, 128, %s512, [#allocation18]
        $region52: #{_lambda_.1} parent=11 // pred_fallthru
          _
        // Predicated region
        $region53: #{_lambda_.1} parent=11 // pred_check
          %p515 = pneg %p261
        $region54: #{_lambda_.1} parent=11 // pred_check_branch
          %517 = sbr.rel (%p515) target = $region56
        $region55: #{_lambda_.1} parent=11 // pred_region
          %s519 = ssub.s32 128, 128
          %520 = vsyncadd [#allocation18], %s519
          %s522 = sshll.u32 [#allocation19], 4
          %s523 = int_to_ptr.vmem [resolvable:$true] %s522
          %525 = dma.hbm_to_vmem [thread:$0]  %s10, 128, %s523, [#allocation18]
        $region56: #{_lambda_.1} parent=11 // pred_fallthru
          _
        // Predicated region
        $region57: #{_lambda_.1} parent=11 // pred_check
          %p526 = pneg %p282
        $region58: #{_lambda_.1} parent=11 // pred_check_branch
          %528 = sbr.rel (%p526) target = $region60
        $region59: #{_lambda_.1} parent=11 // pred_region
          _
        $region60: #{_lambda_.1} parent=11 // pred_fallthru
          _
        // Predicated region
        $region61: #{_lambda_.1} parent=11 // pred_check
          %p529 = pneg %p303
        $region62: #{_lambda_.1} parent=11 // pred_check_branch
          %531 = sbr.rel (%p529) target = $region64
        $region63: #{_lambda_.1} parent=11 // pred_region
          _
        $region64: #{_lambda_.1} parent=11 // pred_fallthru
          _
      $region12: #{_lambda_.1} parent=5 // pred_fallthru
        _
      %p532 = scmp.lt.s32.totalorder %s30, 6
      // Predicated region
      $region65: #{_lambda_.1} parent=5 // pred_check
        %p533 = pneg %p532
      $region66: #{_lambda_.1} parent=5 // pred_check_branch
        %535 = sbr.rel (%p533) target = $region68
      $region67: #{_lambda_.1} parent=5 // pred_region
        // Predicated region
        $region69: #{_lambda_.1} parent=67 // pred_check
          %p536 = pneg %p323
        $region70: #{_lambda_.1} parent=67 // pred_check_branch
          %538 = sbr.rel (%p536) target = $region72
        $region71: #{_lambda_.1} parent=67 // pred_region
          %s539 = sand.u32 %s30, 1
          %s540 = scalar_lea.sflag [#allocation21], %s539
          %s541 = sand.u32 %s313, 1
          %s542 = smul.addr %s541, 288
          %s543 = scalar_lea.vmem [#allocation20], %s542
          %s545 = ssub.s32 4608, 4608
          %546 = vsyncadd %s540, %s545
          %s547 = smul.addr %s30, 72
          %s548 = smul.addr %s547, 64
          %s549 = scalar_lea.hbm %s13, %s548
          %s550 = sshll.u32 %s543, 4
          %s551 = int_to_ptr.vmem [resolvable:$true] %s550
          %556 = dma.hbm_to_vmem [thread:$0]  %s549, 4608, %s551, %s540, 64, 64, 4
        $region72: #{_lambda_.1} parent=67 // pred_fallthru
          _
        // Predicated region
        $region73: #{_lambda_.1} parent=67 // pred_check
          %p557 = pneg %p349
        $region74: #{_lambda_.1} parent=67 // pred_check_branch
          %559 = sbr.rel (%p557) target = $region76
        $region75: #{_lambda_.1} parent=67 // pred_region
          %s560 = sand.u32 %s30, 1
          %s561 = scalar_lea.sflag [#allocation21], %s560
          %s562 = sand.u32 %s339, 1
          %s563 = smul.addr %s562, 64
          %s564 = scalar_lea.vmem [#allocation22], %s563
          %s566 = ssub.s32 1024, 1024
          %567 = vsyncadd %s561, %s566
          %s568 = smul.addr %s30, 8
          %s569 = smul.addr %s568, 128
          %s570 = scalar_lea.hbm %s14, %s569
          %s571 = sshll.u32 %s564, 4
          %s572 = int_to_ptr.vmem [resolvable:$true] %s571
          %577 = dma.hbm_to_vmem [thread:$0]  %s570, 1024, %s572, %s561, 128, 128, 8
        $region76: #{_lambda_.1} parent=67 // pred_fallthru
          _
      $region68: #{_lambda_.1} parent=5 // pred_fallthru
        _
      %p578 = scmp.le.s32.totalorder 1, %s30
      %p579 = scmp.lt.s32.totalorder %s30, 7
      %p580 = pnand %p578, %p579
      %p581 = pneg %p580
      // Predicated region
      $region77: #{_lambda_.1} parent=5 // pred_check
        _
      $region78: #{_lambda_.1} parent=5 // pred_check_branch
        %583 = sbr.rel (%p580) target = $region80
      $region79: #{_lambda_.1} parent=5 // pred_region
        %s584 = ssub.s32 %s30, 1
        // Predicated region
        $region81: #{_lambda_.1} parent=79 // pred_check
          %p585 = pneg %p51
        $region82: #{_lambda_.1} parent=79 // pred_check_branch
          %587 = sbr.rel (%p585) target = $region84
        $region83: #{_lambda_.1} parent=79 // pred_region
          %588 = dma.done [#allocation4], 128
        $region84: #{_lambda_.1} parent=79 // pred_fallthru
          _
        // Predicated region
        $region85: #{_lambda_.1} parent=79 // pred_check
          %p589 = pneg %p72
        $region86: #{_lambda_.1} parent=79 // pred_check_branch
          %591 = sbr.rel (%p589) target = $region88
        $region87: #{_lambda_.1} parent=79 // pred_region
          %592 = dma.done [#allocation6], 48
        $region88: #{_lambda_.1} parent=79 // pred_fallthru
          _
        // Predicated region
        $region89: #{_lambda_.1} parent=79 // pred_check
          %p593 = pneg %p93
        $region90: #{_lambda_.1} parent=79 // pred_check_branch
          %595 = sbr.rel (%p593) target = $region92
        $region91: #{_lambda_.1} parent=79 // pred_region
          %596 = dma.done [#allocation6], 4224
        $region92: #{_lambda_.1} parent=79 // pred_fallthru
          _
        // Predicated region
        $region93: #{_lambda_.1} parent=79 // pred_check
          %p597 = pneg %p114
        $region94: #{_lambda_.1} parent=79 // pred_check_branch
          %599 = sbr.rel (%p597) target = $region96
        $region95: #{_lambda_.1} parent=79 // pred_region
          %600 = dma.done [#allocation9], 4608
        $region96: #{_lambda_.1} parent=79 // pred_fallthru
          _
        // Predicated region
        $region97: #{_lambda_.1} parent=79 // pred_check
          %p601 = pneg %p135
        $region98: #{_lambda_.1} parent=79 // pred_check_branch
          %603 = sbr.rel (%p601) target = $region100
        $region99: #{_lambda_.1} parent=79 // pred_region
          %604 = dma.done [#allocation9], 1024
        $region100: #{_lambda_.1} parent=79 // pred_fallthru
          _
        // Predicated region
        $region101: #{_lambda_.1} parent=79 // pred_check
          %p605 = pneg %p156
        $region102: #{_lambda_.1} parent=79 // pred_check_branch
          %607 = sbr.rel (%p605) target = $region104
        $region103: #{_lambda_.1} parent=79 // pred_region
          %608 = dma.done [#allocation12], 1024
        $region104: #{_lambda_.1} parent=79 // pred_fallthru
          _
        // Predicated region
        $region105: #{_lambda_.1} parent=79 // pred_check
          %p609 = pneg %p177
        $region106: #{_lambda_.1} parent=79 // pred_check_branch
          %611 = sbr.rel (%p609) target = $region108
        $region107: #{_lambda_.1} parent=79 // pred_region
          %612 = dma.done [#allocation12], 768
        $region108: #{_lambda_.1} parent=79 // pred_fallthru
          _
        // Predicated region
        $region109: #{_lambda_.1} parent=79 // pred_check
          %p613 = pneg %p198
        $region110: #{_lambda_.1} parent=79 // pred_check_branch
          %615 = sbr.rel (%p613) target = $region112
        $region111: #{_lambda_.1} parent=79 // pred_region
          %616 = dma.done [#allocation15], 768
        $region112: #{_lambda_.1} parent=79 // pred_fallthru
          _
        // Predicated region
        $region113: #{_lambda_.1} parent=79 // pred_check
          %p617 = pneg %p219
        $region114: #{_lambda_.1} parent=79 // pred_check_branch
          %619 = sbr.rel (%p617) target = $region116
        $region115: #{_lambda_.1} parent=79 // pred_region
          %620 = dma.done [#allocation15], 768
        $region116: #{_lambda_.1} parent=79 // pred_fallthru
          _
        // Predicated region
        $region117: #{_lambda_.1} parent=79 // pred_check
          %p621 = pneg %p240
        $region118: #{_lambda_.1} parent=79 // pred_check_branch
          %623 = sbr.rel (%p621) target = $region120
        $region119: #{_lambda_.1} parent=79 // pred_region
          %624 = dma.done [#allocation18], 128
        $region120: #{_lambda_.1} parent=79 // pred_fallthru
          _
        // Predicated region
        $region121: #{_lambda_.1} parent=79 // pred_check
          %p625 = pneg %p261
        $region122: #{_lambda_.1} parent=79 // pred_check_branch
          %627 = sbr.rel (%p625) target = $region124
        $region123: #{_lambda_.1} parent=79 // pred_region
          %628 = dma.done [#allocation18], 128
        $region124: #{_lambda_.1} parent=79 // pred_fallthru
          _
        %s629 = sand.u32 %s35, 1
        %s630 = scalar_lea.sflag [#allocation21], %s629
        %s631 = sand.u32 %s316, 1
        %s632 = smul.addr %s631, 288
        %s633 = scalar_lea.vmem [#allocation20], %s632
        // Predicated region
        $region125: #{_lambda_.1} parent=79 // pred_check
          %p634 = pneg %p329
        $region126: #{_lambda_.1} parent=79 // pred_check_branch
          %636 = sbr.rel (%p634) target = $region128
        $region127: #{_lambda_.1} parent=79 // pred_region
          %637 = dma.done %s630, 4608
        $region128: #{_lambda_.1} parent=79 // pred_fallthru
          _
        %s638 = sand.u32 %s35, 1
        %s639 = scalar_lea.sflag [#allocation21], %s638
        %s640 = sand.u32 %s342, 1
        %s641 = smul.addr %s640, 64
        %s642 = scalar_lea.vmem [#allocation22], %s641
        // Predicated region
        $region129: #{_lambda_.1} parent=79 // pred_check
          %p643 = pneg %p355
        $region130: #{_lambda_.1} parent=79 // pred_check_branch
          %645 = sbr.rel (%p643) target = $region132
        $region131: #{_lambda_.1} parent=79 // pred_region
          %646 = dma.done %s639, 1024
        $region132: #{_lambda_.1} parent=79 // pred_fallthru
          _
        %p647 = pneg %p51
        %p648 = pneg %p48
        %p649 = pneg %p72
        %p650 = pneg %p69
        %p651 = pneg %p93
        %p652 = pneg %p90
        %p653 = pneg %p114
        %p654 = pneg %p111
        %p655 = pneg %p135
        %p656 = pneg %p132
        %p657 = pneg %p156
        %p658 = pneg %p153
        %p659 = pneg %p177
        %p660 = pneg %p174
        %p661 = pneg %p198
        %p662 = pneg %p195
        %p663 = pneg %p219
        %p664 = pneg %p216
        %p665 = pneg %p240
        %p666 = pneg %p237
        %p667 = pneg %p261
        %p668 = pneg %p258
        %p669 = pneg %p282
        %p670 = pneg %p279
        %p671 = pneg %p303
        %p672 = pneg %p300
        %s673 = sand.u32 %s35, 1
        %s674 = scalar_lea.sflag [#allocation21], %s673
        %s675 = sand.u32 %s316, 1
        %s676 = smul.addr %s675, 288
        %s677 = scalar_lea.vmem [#allocation20], %s676
        %p678 = pneg %p329
        %p679 = pneg %p326
        %s680 = sand.u32 %s35, 1
        %s681 = scalar_lea.sflag [#allocation21], %s680
        %s682 = sand.u32 %s342, 1
        %s683 = smul.addr %s682, 64
        %s684 = scalar_lea.vmem [#allocation22], %s683
        %p685 = pneg %p355
        %p686 = pneg %p352
        %p687 = pneg %p376
        %p688 = pneg %p373
        %p690 = scmp.eq.s32.totalorder %s35, 0
        // Predicated region
        $region133: #{_lambda_.1} parent=79 // pred_check
          %p691 = pneg %p690
        $region134: #{_lambda_.1} parent=79 // pred_check_branch
          %693 = sbr.rel (%p691) target = $region136
        $region135: #{_lambda_.1} parent=79 // pred_region
          %v694 = vld [vmem:[#allocation3] sm:$0x3f]
          %v695 = vld [vmem:[#allocation10] sm:$0xff]
          %v696 = vld [vmem:[#allocation10 + $0x8] sm:$0xff]
          %v697 = vld [vmem:[#allocation10 + $0x10] sm:$0xff]
          %v698 = vld [vmem:[#allocation10 + $0x18] sm:$0xff]
          %v699 = vld [vmem:[#allocation10 + $0x20] sm:$0xff]
          %v700 = vld [vmem:[#allocation10 + $0x28] sm:$0xff]
          %v701 = vld [vmem:[#allocation10 + $0x30] sm:$0xff]
          %v702 = vld [vmem:[#allocation10 + $0x38] sm:$0xff]
          %v703 = vld [vmem:[#allocation5] sm:$0x7]
          %705 = vset.pattern.permute.xlu0 0
          %706 = vperm.xlu0 %705, %v695
          %v707 = vpop.permute.xlu0 %706
          %710 = vset.pattern.permute.xlu0 0
          %711 = vperm.xlu0 %710, %v696
          %v712 = vpop.permute.xlu0 %711
          %715 = vset.pattern.permute.xlu0 0
          %716 = vperm.xlu0 %715, %v697
          %v717 = vpop.permute.xlu0 %716
          %720 = vset.pattern.permute.xlu0 0
          %721 = vperm.xlu0 %720, %v698
          %v722 = vpop.permute.xlu0 %721
          %725 = vset.pattern.permute.xlu0 0
          %726 = vperm.xlu0 %725, %v699
          %v727 = vpop.permute.xlu0 %726
          %730 = vset.pattern.permute.xlu0 0
          %731 = vperm.xlu0 %730, %v700
          %v732 = vpop.permute.xlu0 %731
          %735 = vset.pattern.permute.xlu0 0
          %736 = vperm.xlu0 %735, %v701
          %v737 = vpop.permute.xlu0 %736
          %740 = vset.pattern.permute.xlu0 0
          %741 = vperm.xlu0 %740, %v702
          %v742 = vpop.permute.xlu0 %741
          %v745 = vlaneseq
          %v746 = vshrl.u32 %v745, 7
          %v747 = vsub.s32 0, %v746
          %v748 = vrot.slane %v703, %v747
          %v749 = vlaneseq
          %v750 = vshrl.u32 %v749, 7
          %v751 = vsub.s32 1, %v750
          %v752 = vrot.slane %v703, %v751
          %v753 = vlaneseq
          %v754 = vshrl.u32 %v753, 7
          %v755 = vsub.s32 2, %v754
          %v756 = vrot.slane %v703, %v755
          %v760 = vmul.f32 %v707, %v748
          %v761 = vmul.f32 %v707, %v752
          %v762 = vmul.f32 %v707, %v756
          %v763 = vmul.f32 %v712, %v748
          %v764 = vmul.f32 %v712, %v752
          %v765 = vmul.f32 %v712, %v756
          %v766 = vmul.f32 %v717, %v748
          %v767 = vmul.f32 %v717, %v752
          %v768 = vmul.f32 %v717, %v756
          %v769 = vmul.f32 %v722, %v748
          %v770 = vmul.f32 %v722, %v752
          %v771 = vmul.f32 %v722, %v756
          %v772 = vmul.f32 %v727, %v748
          %v773 = vmul.f32 %v727, %v752
          %v774 = vmul.f32 %v727, %v756
          %v775 = vmul.f32 %v732, %v748
          %v776 = vmul.f32 %v732, %v752
          %v777 = vmul.f32 %v732, %v756
          %v778 = vmul.f32 %v737, %v748
          %v779 = vmul.f32 %v737, %v752
          %v780 = vmul.f32 %v737, %v756
          %v781 = vmul.f32 %v742, %v748
          %v782 = vmul.f32 %v742, %v752
          %v783 = vmul.f32 %v742, %v756
          %v784 = vld [vmem:[#allocation11] sm:$0xff]
          %v785 = vld [vmem:[#allocation11 + $0x8] sm:$0xff]
          %v786 = vld [vmem:[#allocation11 + $0x10] sm:$0xff]
          %v787 = vld [vmem:[#allocation11 + $0x18] sm:$0xff]
          %v788 = vld [vmem:[#allocation11 + $0x20] sm:$0xff]
          %v789 = vld [vmem:[#allocation11 + $0x28] sm:$0xff]
          %v790 = vld [vmem:[#allocation11 + $0x30] sm:$0xff]
          %v791 = vld [vmem:[#allocation11 + $0x38] sm:$0xff]
          %793 = vset.pattern.permute.xlu0 0
          %794 = vperm.xlu0 %793, %v784
          %v795 = vpop.permute.xlu0 %794
          %798 = vset.pattern.permute.xlu0 0
          %799 = vperm.xlu0 %798, %v785
          %v800 = vpop.permute.xlu0 %799
          %803 = vset.pattern.permute.xlu0 0
          %804 = vperm.xlu0 %803, %v786
          %v805 = vpop.permute.xlu0 %804
          %808 = vset.pattern.permute.xlu0 0
          %809 = vperm.xlu0 %808, %v787
          %v810 = vpop.permute.xlu0 %809
          %813 = vset.pattern.permute.xlu0 0
          %814 = vperm.xlu0 %813, %v788
          %v815 = vpop.permute.xlu0 %814
          %818 = vset.pattern.permute.xlu0 0
          %819 = vperm.xlu0 %818, %v789
          %v820 = vpop.permute.xlu0 %819
          %823 = vset.pattern.permute.xlu0 0
          %824 = vperm.xlu0 %823, %v790
          %v825 = vpop.permute.xlu0 %824
          %828 = vset.pattern.permute.xlu0 0
          %829 = vperm.xlu0 %828, %v791
          %v830 = vpop.permute.xlu0 %829
          %v832 = vadd.f32 %v760, %v795
          %v833 = vadd.f32 %v761, %v795
          %v834 = vadd.f32 %v762, %v795
          %v835 = vadd.f32 %v763, %v800
          %v836 = vadd.f32 %v764, %v800
          %v837 = vadd.f32 %v765, %v800
          %v838 = vadd.f32 %v766, %v805
          %v839 = vadd.f32 %v767, %v805
          %v840 = vadd.f32 %v768, %v805
          %v841 = vadd.f32 %v769, %v810
          %v842 = vadd.f32 %v770, %v810
          %v843 = vadd.f32 %v771, %v810
          %v844 = vadd.f32 %v772, %v815
          %v845 = vadd.f32 %v773, %v815
          %v846 = vadd.f32 %v774, %v815
          %v847 = vadd.f32 %v775, %v820
          %v848 = vadd.f32 %v776, %v820
          %v849 = vadd.f32 %v777, %v820
          %v850 = vadd.f32 %v778, %v825
          %v851 = vadd.f32 %v779, %v825
          %v852 = vadd.f32 %v780, %v825
          %v853 = vadd.f32 %v781, %v830
          %v854 = vadd.f32 %v782, %v830
          %v855 = vadd.f32 %v783, %v830
          %v856 = vmax.f32 %v832, 0.0
          %v857 = vmax.f32 %v833, 0.0
          %v858 = vmax.f32 %v834, 0.0
          %v859 = vmax.f32 %v835, 0.0
          %v860 = vmax.f32 %v836, 0.0
          %v861 = vmax.f32 %v837, 0.0
          %v862 = vmax.f32 %v838, 0.0
          %v863 = vmax.f32 %v839, 0.0
          %v864 = vmax.f32 %v840, 0.0
          %v865 = vmax.f32 %v841, 0.0
          %v866 = vmax.f32 %v842, 0.0
          %v867 = vmax.f32 %v843, 0.0
          %v868 = vmax.f32 %v844, 0.0
          %v869 = vmax.f32 %v845, 0.0
          %v870 = vmax.f32 %v846, 0.0
          %v871 = vmax.f32 %v847, 0.0
          %v872 = vmax.f32 %v848, 0.0
          %v873 = vmax.f32 %v849, 0.0
          %v874 = vmax.f32 %v850, 0.0
          %v875 = vmax.f32 %v851, 0.0
          %v876 = vmax.f32 %v852, 0.0
          %v877 = vmax.f32 %v853, 0.0
          %v878 = vmax.f32 %v854, 0.0
          %v879 = vmax.f32 %v855, 0.0
          %v880 = vld [vmem:[#allocation13] sm:$0xff]
          %v881 = vld [vmem:[#allocation13 + $0x8] sm:$0xff]
          %v882 = vld [vmem:[#allocation13 + $0x10] sm:$0xff]
          %v883 = vld [vmem:[#allocation13 + $0x18] sm:$0xff]
          %v884 = vld [vmem:[#allocation13 + $0x20] sm:$0xff]
          %v885 = vld [vmem:[#allocation13 + $0x28] sm:$0xff]
          %v886 = vld [vmem:[#allocation14] sm:$0xff]
          %v887 = vld [vmem:[#allocation14 + $0x8] sm:$0xff]
          %v888 = vld [vmem:[#allocation14 + $0x10] sm:$0xff]
          %v889 = vld [vmem:[#allocation14 + $0x18] sm:$0xff]
          %v890 = vld [vmem:[#allocation14 + $0x20] sm:$0xff]
          %v891 = vld [vmem:[#allocation14 + $0x28] sm:$0xff]
          %893 = vset.pattern.permute.xlu0 0
          %894 = vperm.xlu0 %893, %v886
          %v895 = vpop.permute.xlu0 %894
          %898 = vset.pattern.permute.xlu0 0
          %899 = vperm.xlu0 %898, %v887
          %v900 = vpop.permute.xlu0 %899
          %903 = vset.pattern.permute.xlu0 0
          %904 = vperm.xlu0 %903, %v888
          %v905 = vpop.permute.xlu0 %904
          %908 = vset.pattern.permute.xlu0 0
          %909 = vperm.xlu0 %908, %v889
          %v910 = vpop.permute.xlu0 %909
          %913 = vset.pattern.permute.xlu0 0
          %914 = vperm.xlu0 %913, %v890
          %v915 = vpop.permute.xlu0 %914
          %918 = vset.pattern.permute.xlu0 0
          %919 = vperm.xlu0 %918, %v891
          %v920 = vpop.permute.xlu0 %919
          %vm922 = vcmask 523264
          %v924 = vsel %vm922, %v880, 0
          %v927 = vsel %vm922, %v881, 0
          %v930 = vsel %vm922, %v882, 0
          %v933 = vsel %vm922, %v883, 0
          %v936 = vsel %vm922, %v884, 0
          %v939 = vsel %vm922, %v885, 0
          %941 = vmatprep.subr.mxu0 0.0
          %942 = vmatpush1.msra.mxu0 0.0
          %943 = vmatprep.subr.mxu0 0.0
          %944 = vmatpush1.msra.mxu0 0.0
          %945 = vmatprep.subr.mxu0 0.0
          %946 = vmatpush1.msra.mxu0 0.0
          %947 = vmatprep.subr.mxu0 0.0
          %948 = vmatpush1.msra.mxu0 0.0
          %949 = vmatprep.subr.mxu0 0.0
          %950 = vmatpush1.msra.mxu0 0.0
          %951 = vmatprep.subr.mxu0 0.0
          %952 = vmatpush1.msra.mxu0 0.0
          %953 = vmatprep.subr.mxu0 0.0
          %954 = vmatpush1.msra.mxu0 0.0
          %955 = vmatprep.subr.mxu0 0.0
          %956 = vmatpush1.msra.mxu0 0.0
          %957 = vmatprep.subr.mxu0 %v878
          %958 = vmatpush1.msra.mxu0 %v877
          %959 = vmatprep.subr.mxu0 %v875
          %960 = vmatpush1.msra.mxu0 %v874
          %961 = vmatprep.subr.mxu0 %v872
          %962 = vmatpush1.msra.mxu0 %v871
          %963 = vmatprep.subr.mxu0 %v869
          %964 = vmatpush1.msra.mxu0 %v868
          %965 = vmatprep.subr.mxu0 %v866
          %966 = vmatpush1.msra.mxu0 %v865
          %967 = vmatprep.subr.mxu0 %v863
          %968 = vmatpush1.msra.mxu0 %v862
          %969 = vmatprep.subr.mxu0 %v860
          %970 = vmatpush1.msra.mxu0 %v859
          %971 = vmatprep.subr.mxu0 %v857
          %972 = vmatpush1.msra.mxu0 %v856
          %973 = vmatprep.subr.mxu0 0.0
          %974 = vmatpush2.msra.mxu0 0.0
          %975 = vmatprep.subr.mxu0 0.0
          %976 = vmatpush2.msra.mxu0 0.0
          %977 = vmatprep.subr.mxu0 0.0
          %978 = vmatpush2.msra.mxu0 0.0
          %979 = vmatprep.subr.mxu0 0.0
          %980 = vmatpush2.msra.mxu0 0.0
          %981 = vmatprep.subr.mxu0 0.0
          %982 = vmatpush2.msra.mxu0 0.0
          %983 = vmatprep.subr.mxu0 0.0
          %984 = vmatpush2.msra.mxu0 0.0
          %985 = vmatprep.subr.mxu0 0.0
          %986 = vmatpush2.msra.mxu0 0.0
          %987 = vmatprep.subr.mxu0 0.0
          %988 = vmatpush2.msra.mxu0 0.0
          %989 = vmatprep.subr.mxu0 0.0
          %990 = vmatpush2.msra.mxu0 0.0
          %991 = vmatprep.subr.mxu0 0.0
          %992 = vmatpush2.msra.mxu0 0.0
          %993 = vmatprep.subr.mxu0 0.0
          %994 = vmatpush2.msra.mxu0 0.0
          %995 = vmatprep.subr.mxu0 0.0
          %996 = vmatpush2.msra.mxu0 0.0
          %997 = vmatprep.subr.mxu0 0.0
          %998 = vmatpush2.msra.mxu0 0.0
          %999 = vmatprep.subr.mxu0 0.0
          %1000 = vmatpush2.msra.mxu0 0.0
          %1001 = vmatprep.subr.mxu0 0.0
          %1002 = vmatpush2.msra.mxu0 0.0
          %1003 = vmatprep.subr.mxu0 0.0
          %1004 = vmatpush2.msra.mxu0 0.0
          %1005 = vmatprep.mubr.f32.mxu0 0.0
          %1006 = vmatmul.mubr.f32.gmra.mxu0 %v924
          %v1007 = vpop.f32.mrf.mxu0
          %v1008 = vadd.f32 %v895, %v1007
          %v1009 = vpop.f32.mrf.mxu0
          %v1010 = vadd.f32 %v895, %v1009
          %1011 = vmatprep.mubr.f32.mxu0 0.0
          %1012 = vmatmul.mubr.f32.gmra.mxu0 %v927
          %v1013 = vpop.f32.mrf.mxu0
          %v1014 = vadd.f32 %v900, %v1013
          %v1015 = vpop.f32.mrf.mxu0
          %v1016 = vadd.f32 %v900, %v1015
          %1017 = vmatprep.mubr.f32.mxu0 0.0
          %1018 = vmatmul.mubr.f32.gmra.mxu0 %v930
          %v1019 = vpop.f32.mrf.mxu0
          %v1020 = vadd.f32 %v905, %v1019
          %v1021 = vpop.f32.mrf.mxu0
          %v1022 = vadd.f32 %v905, %v1021
          %1023 = vmatprep.mubr.f32.mxu0 0.0
          %1024 = vmatmul.mubr.f32.gmra.mxu0 %v933
          %v1025 = vpop.f32.mrf.mxu0
          %v1026 = vadd.f32 %v910, %v1025
          %v1027 = vpop.f32.mrf.mxu0
          %v1028 = vadd.f32 %v910, %v1027
          %1029 = vmatprep.mubr.f32.mxu0 0.0
          %1030 = vmatmul.mubr.f32.gmra.mxu0 %v936
          %v1031 = vpop.f32.mrf.mxu0
          %v1032 = vadd.f32 %v915, %v1031
          %v1033 = vpop.f32.mrf.mxu0
          %v1034 = vadd.f32 %v915, %v1033
          %1035 = vmatprep.mubr.f32.mxu0 0.0
          %1036 = vmatmul.mubr.f32.gmra.mxu0 %v939
          %v1037 = vpop.f32.mrf.mxu0
          %v1038 = vadd.f32 %v920, %v1037
          %v1039 = vpop.f32.mrf.mxu0
          %v1040 = vadd.f32 %v920, %v1039
          %1041 = vdwg.mxu0
          %1042 = vmatprep.subr.mxu0 0.0
          %1043 = vmatpush1.msra.mxu0 0.0
          %1044 = vmatprep.subr.mxu0 0.0
          %1045 = vmatpush1.msra.mxu0 0.0
          %1046 = vmatprep.subr.mxu0 0.0
          %1047 = vmatpush1.msra.mxu0 0.0
          %1048 = vmatprep.subr.mxu0 0.0
          %1049 = vmatpush1.msra.mxu0 0.0
          %1050 = vmatprep.subr.mxu0 0.0
          %1051 = vmatpush1.msra.mxu0 0.0
          %1052 = vmatprep.subr.mxu0 0.0
          %1053 = vmatpush1.msra.mxu0 0.0
          %1054 = vmatprep.subr.mxu0 0.0
          %1055 = vmatpush1.msra.mxu0 0.0
          %1056 = vmatprep.subr.mxu0 0.0
          %1057 = vmatpush1.msra.mxu0 0.0
          %1058 = vmatprep.subr.mxu0 0.0
          %1059 = vmatpush1.msra.mxu0 %v879
          %1060 = vmatprep.subr.mxu0 0.0
          %1061 = vmatpush1.msra.mxu0 %v876
          %1062 = vmatprep.subr.mxu0 0.0
          %1063 = vmatpush1.msra.mxu0 %v873
          %1064 = vmatprep.subr.mxu0 0.0
          %1065 = vmatpush1.msra.mxu0 %v870
          %1066 = vmatprep.subr.mxu0 0.0
          %1067 = vmatpush1.msra.mxu0 %v867
          %1068 = vmatprep.subr.mxu0 0.0
          %1069 = vmatpush1.msra.mxu0 %v864
          %1070 = vmatprep.subr.mxu0 0.0
          %1071 = vmatpush1.msra.mxu0 %v861
          %1072 = vmatprep.subr.mxu0 0.0
          %1073 = vmatpush1.msra.mxu0 %v858
          %1074 = vmatprep.subr.mxu0 0.0
          %1075 = vmatpush2.msra.mxu0 0.0
          %1076 = vmatprep.subr.mxu0 0.0
          %1077 = vmatpush2.msra.mxu0 0.0
          %1078 = vmatprep.subr.mxu0 0.0
          %1079 = vmatpush2.msra.mxu0 0.0
          %1080 = vmatprep.subr.mxu0 0.0
          %1081 = vmatpush2.msra.mxu0 0.0
          %1082 = vmatprep.subr.mxu0 0.0
          %1083 = vmatpush2.msra.mxu0 0.0
          %1084 = vmatprep.subr.mxu0 0.0
          %1085 = vmatpush2.msra.mxu0 0.0
          %1086 = vmatprep.subr.mxu0 0.0
          %1087 = vmatpush2.msra.mxu0 0.0
          %1088 = vmatprep.subr.mxu0 0.0
          %1089 = vmatpush2.msra.mxu0 0.0
          %1090 = vmatprep.subr.mxu0 0.0
          %1091 = vmatpush2.msra.mxu0 0.0
          %1092 = vmatprep.subr.mxu0 0.0
          %1093 = vmatpush2.msra.mxu0 0.0
          %1094 = vmatprep.subr.mxu0 0.0
          %1095 = vmatpush2.msra.mxu0 0.0
          %1096 = vmatprep.subr.mxu0 0.0
          %1097 = vmatpush2.msra.mxu0 0.0
          %1098 = vmatprep.subr.mxu0 0.0
          %1099 = vmatpush2.msra.mxu0 0.0
          %1100 = vmatprep.subr.mxu0 0.0
          %1101 = vmatpush2.msra.mxu0 0.0
          %1102 = vmatprep.subr.mxu0 0.0
          %1103 = vmatpush2.msra.mxu0 0.0
          %1104 = vmatprep.subr.mxu0 0.0
          %1105 = vmatpush2.msra.mxu0 0.0
          %1106 = vmatprep.mubr.f32.mxu0 0.0
          %1107 = vmatmul.mubr.f32.gmra.mxu0 %v924
          %v1108 = vpop.f32.mrf.mxu0
          %v1109 = vadd.f32 %v895, %v1108
          %v1110 = vpop.f32.mrf.mxu0
          %1111 = vmatprep.mubr.f32.mxu0 0.0
          %1112 = vmatmul.mubr.f32.gmra.mxu0 %v927
          %v1113 = vpop.f32.mrf.mxu0
          %v1114 = vadd.f32 %v900, %v1113
          %v1115 = vpop.f32.mrf.mxu0
          %1116 = vmatprep.mubr.f32.mxu0 0.0
          %1117 = vmatmul.mubr.f32.gmra.mxu0 %v930
          %v1118 = vpop.f32.mrf.mxu0
          %v1119 = vadd.f32 %v905, %v1118
          %v1120 = vpop.f32.mrf.mxu0
          %1121 = vmatprep.mubr.f32.mxu0 0.0
          %1122 = vmatmul.mubr.f32.gmra.mxu0 %v933
          %v1123 = vpop.f32.mrf.mxu0
          %v1124 = vadd.f32 %v910, %v1123
          %v1125 = vpop.f32.mrf.mxu0
          %1126 = vmatprep.mubr.f32.mxu0 0.0
          %1127 = vmatmul.mubr.f32.gmra.mxu0 %v936
          %v1128 = vpop.f32.mrf.mxu0
          %v1129 = vadd.f32 %v915, %v1128
          %v1130 = vpop.f32.mrf.mxu0
          %1131 = vmatprep.mubr.f32.mxu0 0.0
          %1132 = vmatmul.mubr.f32.gmra.mxu0 %v939
          %v1133 = vpop.f32.mrf.mxu0
          %v1134 = vadd.f32 %v920, %v1133
          %v1135 = vpop.f32.mrf.mxu0
          %1136 = vdwg.mxu0
          %v1137 = vld [vmem:[#allocation16] sm:$0xff]
          %v1138 = vld [vmem:[#allocation16 + $0x8] sm:$0xff]
          %v1139 = vld [vmem:[#allocation16 + $0x10] sm:$0xff]
          %v1140 = vld [vmem:[#allocation16 + $0x18] sm:$0xff]
          %v1141 = vld [vmem:[#allocation16 + $0x20] sm:$0xff]
          %v1142 = vld [vmem:[#allocation16 + $0x28] sm:$0xff]
          %vm1143 = vcmask 48128
          %v1145 = vsel %vm1143, %v1137, 0
          %v1148 = vsel %vm1143, %v1138, 0
          %v1151 = vsel %vm1143, %v1139, 0
          %v1154 = vsel %vm1143, %v1140, 0
          %v1157 = vsel %vm1143, %v1141, 0
          %v1160 = vsel %vm1143, %v1142, 0
          %vm1162 = vcmask 1045504
          %v1164 = vsel %vm1162, %v694, 0
          %1166 = vmatprep.subr.mxu0 0.0
          %1167 = vmatpush1.msra.mxu0 0.0
          %1168 = vmatprep.subr.mxu0 0.0
          %1169 = vmatpush1.msra.mxu0 0.0
          %1170 = vmatprep.subr.mxu0 0.0
          %1171 = vmatpush1.msra.mxu0 0.0
          %1172 = vmatprep.subr.mxu0 0.0
          %1173 = vmatpush1.msra.mxu0 0.0
          %1174 = vmatprep.subr.mxu0 0.0
          %1175 = vmatpush1.msra.mxu0 0.0
          %1176 = vmatprep.subr.mxu0 0.0
          %1177 = vmatpush1.msra.mxu0 0.0
          %1178 = vmatprep.subr.mxu0 0.0
          %1179 = vmatpush1.msra.mxu0 0.0
          %1180 = vmatprep.subr.mxu0 0.0
          %1181 = vmatpush1.msra.mxu0 0.0
          %1182 = vmatprep.subr.mxu0 0.0
          %1183 = vmatpush1.msra.mxu0 0.0
          %1184 = vmatprep.subr.mxu0 0.0
          %1185 = vmatpush1.msra.mxu0 0.0
          %1186 = vmatprep.subr.mxu0 0.0
          %1187 = vmatpush1.msra.mxu0 0.0
          %1188 = vmatprep.subr.mxu0 0.0
          %1189 = vmatpush1.msra.mxu0 0.0
          %1190 = vmatprep.subr.mxu0 0.0
          %1191 = vmatpush1.msra.mxu0 0.0
          %1192 = vmatprep.subr.mxu0 0.0
          %1193 = vmatpush1.msra.mxu0 0.0
          %1194 = vmatprep.subr.mxu0 0.0
          %1195 = vmatpush1.msra.mxu0 0.0
          %1196 = vmatprep.subr.mxu0 0.0
          %1197 = vmatpush1.msra.mxu0 %v1164
          %1198 = vmatprep.subr.mxu0 0.0
          %1199 = vmatpush2.msra.mxu0 0.0
          %1200 = vmatprep.subr.mxu0 0.0
          %1201 = vmatpush2.msra.mxu0 0.0
          %1202 = vmatprep.subr.mxu0 0.0
          %1203 = vmatpush2.msra.mxu0 0.0
          %1204 = vmatprep.subr.mxu0 0.0
          %1205 = vmatpush2.msra.mxu0 0.0
          %1206 = vmatprep.subr.mxu0 0.0
          %1207 = vmatpush2.msra.mxu0 0.0
          %1208 = vmatprep.subr.mxu0 0.0
          %1209 = vmatpush2.msra.mxu0 0.0
          %1210 = vmatprep.subr.mxu0 0.0
          %1211 = vmatpush2.msra.mxu0 0.0
          %1212 = vmatprep.subr.mxu0 0.0
          %1213 = vmatpush2.msra.mxu0 0.0
          %1214 = vmatprep.subr.mxu0 0.0
          %1215 = vmatpush2.msra.mxu0 0.0
          %1216 = vmatprep.subr.mxu0 0.0
          %1217 = vmatpush2.msra.mxu0 0.0
          %1218 = vmatprep.subr.mxu0 0.0
          %1219 = vmatpush2.msra.mxu0 0.0
          %1220 = vmatprep.subr.mxu0 0.0
          %1221 = vmatpush2.msra.mxu0 0.0
          %1222 = vmatprep.subr.mxu0 0.0
          %1223 = vmatpush2.msra.mxu0 0.0
          %1224 = vmatprep.subr.mxu0 0.0
          %1225 = vmatpush2.msra.mxu0 0.0
          %1226 = vmatprep.subr.mxu0 0.0
          %1227 = vmatpush2.msra.mxu0 0.0
          %1228 = vmatprep.subr.mxu0 0.0
          %1229 = vmatpush2.msra.mxu0 0.0
          %1230 = vmatprep.mubr.f32.mxu0 0.0
          %1231 = vmatmul.mubr.f32.gmra.mxu0 %v1145
          %v1232 = vpop.f32.mrf.mxu0
          %v1233 = vadd.f32 0.0, %v1232
          %v1234 = vpop.f32.mrf.mxu0
          %1235 = vmatprep.mubr.f32.mxu0 0.0
          %1236 = vmatmul.mubr.f32.gmra.mxu0 %v1148
          %v1237 = vpop.f32.mrf.mxu0
          %v1238 = vadd.f32 0.0, %v1237
          %v1239 = vpop.f32.mrf.mxu0
          %1240 = vmatprep.mubr.f32.mxu0 0.0
          %1241 = vmatmul.mubr.f32.gmra.mxu0 %v1151
          %v1242 = vpop.f32.mrf.mxu0
          %v1243 = vadd.f32 0.0, %v1242
          %v1244 = vpop.f32.mrf.mxu0
          %1245 = vmatprep.mubr.f32.mxu0 0.0
          %1246 = vmatmul.mubr.f32.gmra.mxu0 %v1154
          %v1247 = vpop.f32.mrf.mxu0
          %v1248 = vadd.f32 0.0, %v1247
          %v1249 = vpop.f32.mrf.mxu0
          %1250 = vmatprep.mubr.f32.mxu0 0.0
          %1251 = vmatmul.mubr.f32.gmra.mxu0 %v1157
          %v1252 = vpop.f32.mrf.mxu0
          %v1253 = vadd.f32 0.0, %v1252
          %v1254 = vpop.f32.mrf.mxu0
          %1255 = vmatprep.mubr.f32.mxu0 0.0
          %1256 = vmatmul.mubr.f32.gmra.mxu0 %v1160
          %v1257 = vpop.f32.mrf.mxu0
          %v1258 = vadd.f32 0.0, %v1257
          %v1259 = vpop.f32.mrf.mxu0
          %1260 = vdwg.mxu0
          %v1261 = vld [vmem:[#allocation7] sm:$0xff]
          %v1262 = vld [vmem:[#allocation7 + $0x8] sm:$0xff]
          %v1263 = vld [vmem:[#allocation7 + $0x10] sm:$0xff]
          %v1264 = vld [vmem:[#allocation7 + $0x18] sm:$0xff]
          %v1265 = vld [vmem:[#allocation7 + $0x20] sm:$0xff]
          %v1266 = vld [vmem:[#allocation7 + $0x28] sm:$0xff]
          %v1267 = vld [vmem:[#allocation7 + $0x30] sm:$0xff]
          %v1268 = vld [vmem:[#allocation7 + $0x38] sm:$0xff]
          %v1269 = vld [vmem:[#allocation7 + $0x40] sm:$0xff]
          %v1270 = vld [vmem:[#allocation7 + $0x48] sm:$0xff]
          %v1271 = vld [vmem:[#allocation7 + $0x50] sm:$0xff]
          %v1272 = vld [vmem:[#allocation7 + $0x58] sm:$0xff]
          %v1273 = vld [vmem:[#allocation7 + $0x60] sm:$0xff]
          %v1274 = vld [vmem:[#allocation7 + $0x68] sm:$0xff]
          %v1275 = vld [vmem:[#allocation7 + $0x70] sm:$0xff]
          %v1276 = vld [vmem:[#allocation7 + $0x78] sm:$0xff]
          %v1277 = vld [vmem:[#allocation7 + $0x80] sm:$0xff]
          %v1278 = vld [vmem:[#allocation7 + $0x88] sm:$0xff]
          %v1279 = vld [vmem:[#allocation7 + $0x90] sm:$0xff]
          %v1280 = vld [vmem:[#allocation7 + $0x98] sm:$0xff]
          %v1281 = vld [vmem:[#allocation7 + $0xa0] sm:$0xff]
          %v1282 = vld [vmem:[#allocation7 + $0xa8] sm:$0xff]
          %v1283 = vld [vmem:[#allocation7 + $0xb0] sm:$0xff]
          %v1284 = vld [vmem:[#allocation7 + $0xb8] sm:$0xff]
          %v1285 = vld [vmem:[#allocation7 + $0xc0] sm:$0xff]
          %v1286 = vld [vmem:[#allocation7 + $0xc8] sm:$0xff]
          %v1287 = vld [vmem:[#allocation7 + $0xd0] sm:$0xff]
          %v1288 = vld [vmem:[#allocation7 + $0xd8] sm:$0xff]
          %v1289 = vld [vmem:[#allocation7 + $0xe0] sm:$0xff]
          %v1290 = vld [vmem:[#allocation7 + $0xe8] sm:$0xff]
          %v1291 = vld [vmem:[#allocation7 + $0xf0] sm:$0x1]
          %v1292 = vld [vmem:[#allocation7 + $0xf8] sm:$0x1]
          %v1293 = vld [vmem:[#allocation7 + $0x100] sm:$0x1]
          %vm1294 = vcmask 662528
          %v1296 = vsel %vm1294, %v1233, 0
          %v1299 = vsel %vm1294, %v1238, 0
          %v1302 = vsel %vm1294, %v1243, 0
          %v1305 = vsel %vm1294, %v1248, 0
          %v1308 = vsel %vm1294, %v1253, 0
          %v1311 = vsel %vm1294, %v1258, 0
          %vm1313 = vcmask 1040384
          %v1315 = vsel %vm1313, %v1291, 0
          %v1318 = vsel %vm1313, %v1292, 0
          %v1321 = vsel %vm1313, %v1293, 0
          %1323 = vmatprep.subr.mxu0 0.0
          %1324 = vmatpush1.msra.mxu0 0.0
          %1325 = vmatprep.subr.mxu0 0.0
          %1326 = vmatpush1.msra.mxu0 0.0
          %1327 = vmatprep.subr.mxu0 0.0
          %1328 = vmatpush1.msra.mxu0 0.0
          %1329 = vmatprep.subr.mxu0 0.0
          %1330 = vmatpush1.msra.mxu0 0.0
          %1331 = vmatprep.subr.mxu0 0.0
          %1332 = vmatpush1.msra.mxu0 0.0
          %1333 = vmatprep.subr.mxu0 %v1318
          %1334 = vmatpush1.msra.mxu0 %v1315
          %1335 = vmatprep.subr.mxu0 %v1289
          %1336 = vmatpush1.msra.mxu0 %v1288
          %1337 = vmatprep.subr.mxu0 %v1286
          %1338 = vmatpush1.msra.mxu0 %v1285
          %1339 = vmatprep.subr.mxu0 %v1283
          %1340 = vmatpush1.msra.mxu0 %v1282
          %1341 = vmatprep.subr.mxu0 %v1280
          %1342 = vmatpush1.msra.mxu0 %v1279
          %1343 = vmatprep.subr.mxu0 %v1277
          %1344 = vmatpush1.msra.mxu0 %v1276
          %1345 = vmatprep.subr.mxu0 %v1274
          %1346 = vmatpush1.msra.mxu0 %v1273
          %1347 = vmatprep.subr.mxu0 %v1271
          %1348 = vmatpush1.msra.mxu0 %v1270
          %1349 = vmatprep.subr.mxu0 %v1268
          %1350 = vmatpush1.msra.mxu0 %v1267
          %1351 = vmatprep.subr.mxu0 %v1265
          %1352 = vmatpush1.msra.mxu0 %v1264
          %1353 = vmatprep.subr.mxu0 %v1262
          %1354 = vmatpush1.msra.mxu0 %v1261
          %1355 = vmatprep.subr.mxu0 0.0
          %1356 = vmatpush2.msra.mxu0 0.0
          %1357 = vmatprep.subr.mxu0 0.0
          %1358 = vmatpush2.msra.mxu0 0.0
          %1359 = vmatprep.subr.mxu0 0.0
          %1360 = vmatpush2.msra.mxu0 0.0
          %1361 = vmatprep.subr.mxu0 0.0
          %1362 = vmatpush2.msra.mxu0 0.0
          %1363 = vmatprep.subr.mxu0 0.0
          %1364 = vmatpush2.msra.mxu0 0.0
          %1365 = vmatprep.subr.mxu0 0.0
          %1366 = vmatpush2.msra.mxu0 0.0
          %1367 = vmatprep.subr.mxu0 0.0
          %1368 = vmatpush2.msra.mxu0 0.0
          %1369 = vmatprep.subr.mxu0 0.0
          %1370 = vmatpush2.msra.mxu0 0.0
          %1371 = vmatprep.subr.mxu0 0.0
          %1372 = vmatpush2.msra.mxu0 0.0
          %1373 = vmatprep.subr.mxu0 0.0
          %1374 = vmatpush2.msra.mxu0 0.0
          %1375 = vmatprep.subr.mxu0 0.0
          %1376 = vmatpush2.msra.mxu0 0.0
          %1377 = vmatprep.subr.mxu0 0.0
          %1378 = vmatpush2.msra.mxu0 0.0
          %1379 = vmatprep.subr.mxu0 0.0
          %1380 = vmatpush2.msra.mxu0 0.0
          %1381 = vmatprep.subr.mxu0 0.0
          %1382 = vmatpush2.msra.mxu0 0.0
          %1383 = vmatprep.subr.mxu0 0.0
          %1384 = vmatpush2.msra.mxu0 0.0
          %1385 = vmatprep.subr.mxu0 0.0
          %1386 = vmatpush2.msra.mxu0 0.0
          %1387 = vmatprep.mubr.f32.mxu0 0.0
          %1388 = vmatmul.mubr.f32.gmra.mxu0 %v1296
          %v1389 = vpop.f32.mrf.mxu0
          %v1390 = vadd.f32 0.0, %v1389
          %v1391 = vpop.f32.mrf.mxu0
          %v1392 = vadd.f32 0.0, %v1391
          %1393 = vmatprep.mubr.f32.mxu0 0.0
          %1394 = vmatmul.mubr.f32.gmra.mxu0 %v1299
          %v1395 = vpop.f32.mrf.mxu0
          %v1396 = vadd.f32 0.0, %v1395
          %v1397 = vpop.f32.mrf.mxu0
          %v1398 = vadd.f32 0.0, %v1397
          %1399 = vmatprep.mubr.f32.mxu0 0.0
          %1400 = vmatmul.mubr.f32.gmra.mxu0 %v1302
          %v1401 = vpop.f32.mrf.mxu0
          %v1402 = vadd.f32 0.0, %v1401
          %v1403 = vpop.f32.mrf.mxu0
          %v1404 = vadd.f32 0.0, %v1403
          %1405 = vmatprep.mubr.f32.mxu0 0.0
          %1406 = vmatmul.mubr.f32.gmra.mxu0 %v1305
          %v1407 = vpop.f32.mrf.mxu0
          %v1408 = vadd.f32 0.0, %v1407
          %v1409 = vpop.f32.mrf.mxu0
          %v1410 = vadd.f32 0.0, %v1409
          %1411 = vmatprep.mubr.f32.mxu0 0.0
          %1412 = vmatmul.mubr.f32.gmra.mxu0 %v1308
          %v1413 = vpop.f32.mrf.mxu0
          %v1414 = vadd.f32 0.0, %v1413
          %v1415 = vpop.f32.mrf.mxu0
          %v1416 = vadd.f32 0.0, %v1415
          %1417 = vmatprep.mubr.f32.mxu0 0.0
          %1418 = vmatmul.mubr.f32.gmra.mxu0 %v1311
          %v1419 = vpop.f32.mrf.mxu0
          %v1420 = vadd.f32 0.0, %v1419
          %v1421 = vpop.f32.mrf.mxu0
          %v1422 = vadd.f32 0.0, %v1421
          %1423 = vdwg.mxu0
          %1424 = vmatprep.subr.mxu0 0.0
          %1425 = vmatpush1.msra.mxu0 0.0
          %1426 = vmatprep.subr.mxu0 0.0
          %1427 = vmatpush1.msra.mxu0 0.0
          %1428 = vmatprep.subr.mxu0 0.0
          %1429 = vmatpush1.msra.mxu0 0.0
          %1430 = vmatprep.subr.mxu0 0.0
          %1431 = vmatpush1.msra.mxu0 0.0
          %1432 = vmatprep.subr.mxu0 0.0
          %1433 = vmatpush1.msra.mxu0 0.0
          %1434 = vmatprep.subr.mxu0 0.0
          %1435 = vmatpush1.msra.mxu0 %v1321
          %1436 = vmatprep.subr.mxu0 0.0
          %1437 = vmatpush1.msra.mxu0 %v1290
          %1438 = vmatprep.subr.mxu0 0.0
          %1439 = vmatpush1.msra.mxu0 %v1287
          %1440 = vmatprep.subr.mxu0 0.0
          %1441 = vmatpush1.msra.mxu0 %v1284
          %1442 = vmatprep.subr.mxu0 0.0
          %1443 = vmatpush1.msra.mxu0 %v1281
          %1444 = vmatprep.subr.mxu0 0.0
          %1445 = vmatpush1.msra.mxu0 %v1278
          %1446 = vmatprep.subr.mxu0 0.0
          %1447 = vmatpush1.msra.mxu0 %v1275
          %1448 = vmatprep.subr.mxu0 0.0
          %1449 = vmatpush1.msra.mxu0 %v1272
          %1450 = vmatprep.subr.mxu0 0.0
          %1451 = vmatpush1.msra.mxu0 %v1269
          %1452 = vmatprep.subr.mxu0 0.0
          %1453 = vmatpush1.msra.mxu0 %v1266
          %1454 = vmatprep.subr.mxu0 0.0
          %1455 = vmatpush1.msra.mxu0 %v1263
          %1456 = vmatprep.subr.mxu0 0.0
          %1457 = vmatpush2.msra.mxu0 0.0
          %1458 = vmatprep.subr.mxu0 0.0
          %1459 = vmatpush2.msra.mxu0 0.0
          %1460 = vmatprep.subr.mxu0 0.0
          %1461 = vmatpush2.msra.mxu0 0.0
          %1462 = vmatprep.subr.mxu0 0.0
          %1463 = vmatpush2.msra.mxu0 0.0
          %1464 = vmatprep.subr.mxu0 0.0
          %1465 = vmatpush2.msra.mxu0 0.0
          %1466 = vmatprep.subr.mxu0 0.0
          %1467 = vmatpush2.msra.mxu0 0.0
          %1468 = vmatprep.subr.mxu0 0.0
          %1469 = vmatpush2.msra.mxu0 0.0
          %1470 = vmatprep.subr.mxu0 0.0
          %1471 = vmatpush2.msra.mxu0 0.0
          %1472 = vmatprep.subr.mxu0 0.0
          %1473 = vmatpush2.msra.mxu0 0.0
          %1474 = vmatprep.subr.mxu0 0.0
          %1475 = vmatpush2.msra.mxu0 0.0
          %1476 = vmatprep.subr.mxu0 0.0
          %1477 = vmatpush2.msra.mxu0 0.0
          %1478 = vmatprep.subr.mxu0 0.0
          %1479 = vmatpush2.msra.mxu0 0.0
          %1480 = vmatprep.subr.mxu0 0.0
          %1481 = vmatpush2.msra.mxu0 0.0
          %1482 = vmatprep.subr.mxu0 0.0
          %1483 = vmatpush2.msra.mxu0 0.0
          %1484 = vmatprep.subr.mxu0 0.0
          %1485 = vmatpush2.msra.mxu0 0.0
          %1486 = vmatprep.subr.mxu0 0.0
          %1487 = vmatpush2.msra.mxu0 0.0
          %1488 = vmatprep.mubr.f32.mxu0 0.0
          %1489 = vmatmul.mubr.f32.gmra.mxu0 %v1296
          %v1490 = vpop.f32.mrf.mxu0
          %v1491 = vadd.f32 0.0, %v1490
          %v1492 = vpop.f32.mrf.mxu0
          %1493 = vmatprep.mubr.f32.mxu0 0.0
          %1494 = vmatmul.mubr.f32.gmra.mxu0 %v1299
          %v1495 = vpop.f32.mrf.mxu0
          %v1496 = vadd.f32 0.0, %v1495
          %v1497 = vpop.f32.mrf.mxu0
          %1498 = vmatprep.mubr.f32.mxu0 0.0
          %1499 = vmatmul.mubr.f32.gmra.mxu0 %v1302
          %v1500 = vpop.f32.mrf.mxu0
          %v1501 = vadd.f32 0.0, %v1500
          %v1502 = vpop.f32.mrf.mxu0
          %1503 = vmatprep.mubr.f32.mxu0 0.0
          %1504 = vmatmul.mubr.f32.gmra.mxu0 %v1305
          %v1505 = vpop.f32.mrf.mxu0
          %v1506 = vadd.f32 0.0, %v1505
          %v1507 = vpop.f32.mrf.mxu0
          %1508 = vmatprep.mubr.f32.mxu0 0.0
          %1509 = vmatmul.mubr.f32.gmra.mxu0 %v1308
          %v1510 = vpop.f32.mrf.mxu0
          %v1511 = vadd.f32 0.0, %v1510
          %v1512 = vpop.f32.mrf.mxu0
          %1513 = vmatprep.mubr.f32.mxu0 0.0
          %1514 = vmatmul.mubr.f32.gmra.mxu0 %v1311
          %v1515 = vpop.f32.mrf.mxu0
          %v1516 = vadd.f32 0.0, %v1515
          %v1517 = vpop.f32.mrf.mxu0
          %1518 = vdwg.mxu0
          %v1519 = vld [vmem:[#allocation17] sm:$0xff]
          %v1520 = vmul.f32 %v1008, %v1390
          %v1521 = vmul.f32 %v1010, %v1392
          %v1522 = vmul.f32 %v1109, %v1491
          %v1523 = vmul.f32 %v1014, %v1396
          %v1524 = vmul.f32 %v1016, %v1398
          %v1525 = vmul.f32 %v1114, %v1496
          %v1526 = vmul.f32 %v1020, %v1402
          %v1527 = vmul.f32 %v1022, %v1404
          %v1528 = vmul.f32 %v1119, %v1501
          %v1529 = vmul.f32 %v1026, %v1408
          %v1530 = vmul.f32 %v1028, %v1410
          %v1531 = vmul.f32 %v1124, %v1506
          %v1532 = vmul.f32 %v1032, %v1414
          %v1533 = vmul.f32 %v1034, %v1416
          %v1534 = vmul.f32 %v1129, %v1511
          %v1535 = vmul.f32 %v1038, %v1420
          %v1536 = vmul.f32 %v1040, %v1422
          %v1537 = vmul.f32 %v1134, %v1516
          %vm1538 = vcmask 392192
          %v1540 = vsel %vm1538, %v1519, 0
          %1542 = vmatprep.subr.mxu0 0.0
          %1543 = vmatpush1.msra.mxu0 0.0
          %1544 = vmatprep.subr.mxu0 0.0
          %1545 = vmatpush1.msra.mxu0 0.0
          %1546 = vmatprep.subr.mxu0 0.0
          %1547 = vmatpush1.msra.mxu0 0.0
          %1548 = vmatprep.subr.mxu0 0.0
          %1549 = vmatpush1.msra.mxu0 0.0
          %1550 = vmatprep.subr.mxu0 0.0
          %1551 = vmatpush1.msra.mxu0 0.0
          %1552 = vmatprep.subr.mxu0 0.0
          %1553 = vmatpush1.msra.mxu0 0.0
          %1554 = vmatprep.subr.mxu0 0.0
          %1555 = vmatpush1.msra.mxu0 0.0
          %1556 = vmatprep.subr.mxu0 0.0
          %1557 = vmatpush1.msra.mxu0 0.0
          %1558 = vmatprep.subr.mxu0 0.0
          %1559 = vmatpush1.msra.mxu0 0.0
          %1560 = vmatprep.subr.mxu0 0.0
          %1561 = vmatpush1.msra.mxu0 0.0
          %1562 = vmatprep.subr.mxu0 %v1536
          %1563 = vmatpush1.msra.mxu0 %v1535
          %1564 = vmatprep.subr.mxu0 %v1533
          %1565 = vmatpush1.msra.mxu0 %v1532
          %1566 = vmatprep.subr.mxu0 %v1530
          %1567 = vmatpush1.msra.mxu0 %v1529
          %1568 = vmatprep.subr.mxu0 %v1527
          %1569 = vmatpush1.msra.mxu0 %v1526
          %1570 = vmatprep.subr.mxu0 %v1524
          %1571 = vmatpush1.msra.mxu0 %v1523
          %1572 = vmatprep.subr.mxu0 %v1521
          %1573 = vmatpush1.msra.mxu0 %v1520
          %1574 = vmatprep.subr.mxu0 0.0
          %1575 = vmatpush2.msra.mxu0 0.0
          %1576 = vmatprep.subr.mxu0 0.0
          %1577 = vmatpush2.msra.mxu0 0.0
          %1578 = vmatprep.subr.mxu0 0.0
          %1579 = vmatpush2.msra.mxu0 0.0
          %1580 = vmatprep.subr.mxu0 0.0
          %1581 = vmatpush2.msra.mxu0 0.0
          %1582 = vmatprep.subr.mxu0 0.0
          %1583 = vmatpush2.msra.mxu0 0.0
          %1584 = vmatprep.subr.mxu0 0.0
          %1585 = vmatpush2.msra.mxu0 0.0
          %1586 = vmatprep.subr.mxu0 0.0
          %1587 = vmatpush2.msra.mxu0 0.0
          %1588 = vmatprep.subr.mxu0 0.0
          %1589 = vmatpush2.msra.mxu0 0.0
          %1590 = vmatprep.subr.mxu0 0.0
          %1591 = vmatpush2.msra.mxu0 0.0
          %1592 = vmatprep.subr.mxu0 0.0
          %1593 = vmatpush2.msra.mxu0 0.0
          %1594 = vmatprep.subr.mxu0 0.0
          %1595 = vmatpush2.msra.mxu0 0.0
          %1596 = vmatprep.subr.mxu0 0.0
          %1597 = vmatpush2.msra.mxu0 0.0
          %1598 = vmatprep.subr.mxu0 0.0
          %1599 = vmatpush2.msra.mxu0 0.0
          %1600 = vmatprep.subr.mxu0 0.0
          %1601 = vmatpush2.msra.mxu0 0.0
          %1602 = vmatprep.subr.mxu0 0.0
          %1603 = vmatpush2.msra.mxu0 0.0
          %1604 = vmatprep.subr.mxu0 0.0
          %1605 = vmatpush2.msra.mxu0 0.0
          %1606 = vmatprep.mubr.f32.mxu0 0.0
          %1607 = vmatmul.mubr.f32.gmra.mxu0 %v1540
          %v1608 = vpop.f32.mrf.mxu0
          %v1609 = vadd.f32 0.0, %v1608
          %v1610 = vpop.f32.mrf.mxu0
          %v1611 = vadd.f32 0.0, %v1610
          %1612 = vdwg.mxu0
          %1613 = vmatprep.subr.mxu0 0.0
          %1614 = vmatpush1.msra.mxu0 0.0
          %1615 = vmatprep.subr.mxu0 0.0
          %1616 = vmatpush1.msra.mxu0 0.0
          %1617 = vmatprep.subr.mxu0 0.0
          %1618 = vmatpush1.msra.mxu0 0.0
          %1619 = vmatprep.subr.mxu0 0.0
          %1620 = vmatpush1.msra.mxu0 0.0
          %1621 = vmatprep.subr.mxu0 0.0
          %1622 = vmatpush1.msra.mxu0 0.0
          %1623 = vmatprep.subr.mxu0 0.0
          %1624 = vmatpush1.msra.mxu0 0.0
          %1625 = vmatprep.subr.mxu0 0.0
          %1626 = vmatpush1.msra.mxu0 0.0
          %1627 = vmatprep.subr.mxu0 0.0
          %1628 = vmatpush1.msra.mxu0 0.0
          %1629 = vmatprep.subr.mxu0 0.0
          %1630 = vmatpush1.msra.mxu0 0.0
          %1631 = vmatprep.subr.mxu0 0.0
          %1632 = vmatpush1.msra.mxu0 0.0
          %1633 = vmatprep.subr.mxu0 0.0
          %1634 = vmatpush1.msra.mxu0 %v1537
          %1635 = vmatprep.subr.mxu0 0.0
          %1636 = vmatpush1.msra.mxu0 %v1534
          %1637 = vmatprep.subr.mxu0 0.0
          %1638 = vmatpush1.msra.mxu0 %v1531
          %1639 = vmatprep.subr.mxu0 0.0
          %1640 = vmatpush1.msra.mxu0 %v1528
          %1641 = vmatprep.subr.mxu0 0.0
          %1642 = vmatpush1.msra.mxu0 %v1525
          %1643 = vmatprep.subr.mxu0 0.0
          %1644 = vmatpush1.msra.mxu0 %v1522
          %1645 = vmatprep.subr.mxu0 0.0
          %1646 = vmatpush2.msra.mxu0 0.0
          %1647 = vmatprep.subr.mxu0 0.0
          %1648 = vmatpush2.msra.mxu0 0.0
          %1649 = vmatprep.subr.mxu0 0.0
          %1650 = vmatpush2.msra.mxu0 0.0
          %1651 = vmatprep.subr.mxu0 0.0
          %1652 = vmatpush2.msra.mxu0 0.0
          %1653 = vmatprep.subr.mxu0 0.0
          %1654 = vmatpush2.msra.mxu0 0.0
          %1655 = vmatprep.subr.mxu0 0.0
          %1656 = vmatpush2.msra.mxu0 0.0
          %1657 = vmatprep.subr.mxu0 0.0
          %1658 = vmatpush2.msra.mxu0 0.0
          %1659 = vmatprep.subr.mxu0 0.0
          %1660 = vmatpush2.msra.mxu0 0.0
          %1661 = vmatprep.subr.mxu0 0.0
          %1662 = vmatpush2.msra.mxu0 0.0
          %1663 = vmatprep.subr.mxu0 0.0
          %1664 = vmatpush2.msra.mxu0 0.0
          %1665 = vmatprep.subr.mxu0 0.0
          %1666 = vmatpush2.msra.mxu0 0.0
          %1667 = vmatprep.subr.mxu0 0.0
          %1668 = vmatpush2.msra.mxu0 0.0
          %1669 = vmatprep.subr.mxu0 0.0
          %1670 = vmatpush2.msra.mxu0 0.0
          %1671 = vmatprep.subr.mxu0 0.0
          %1672 = vmatpush2.msra.mxu0 0.0
          %1673 = vmatprep.subr.mxu0 0.0
          %1674 = vmatpush2.msra.mxu0 0.0
          %1675 = vmatprep.subr.mxu0 0.0
          %1676 = vmatpush2.msra.mxu0 0.0
          %1677 = vmatprep.mubr.f32.mxu0 0.0
          %1678 = vmatmul.mubr.f32.gmra.mxu0 %v1540
          %v1679 = vpop.f32.mrf.mxu0
          %v1680 = vadd.f32 0.0, %v1679
          %v1681 = vpop.f32.mrf.mxu0
          %1682 = vdwg.mxu0
          %v1683 = vld [vmem:[#allocation8] sm:$0xff]
          %v1684 = vld [vmem:[#allocation8 + $0x8] sm:$0xff]
          %v1685 = vld [vmem:[#allocation8 + $0x10] sm:$0xff]
          %v1686 = vld [vmem:[#allocation8 + $0x18] sm:$0xff]
          %v1687 = vld [vmem:[#allocation8 + $0x20] sm:$0xff]
          %v1688 = vld [vmem:[#allocation8 + $0x28] sm:$0xff]
          %v1689 = vld [vmem:[#allocation8 + $0x30] sm:$0xff]
          %v1690 = vld [vmem:[#allocation8 + $0x38] sm:$0xff]
          %v1691 = vld [vmem:[#allocation8 + $0x40] sm:$0xff]
          %v1692 = vld [vmem:[#allocation8 + $0x48] sm:$0xff]
          %v1693 = vld [vmem:[#allocation8 + $0x50] sm:$0xff]
          %v1694 = vld [vmem:[#allocation8 + $0x58] sm:$0xff]
          %v1695 = vld [vmem:[#allocation8 + $0x60] sm:$0xff]
          %v1696 = vld [vmem:[#allocation8 + $0x68] sm:$0xff]
          %v1697 = vld [vmem:[#allocation8 + $0x70] sm:$0xff]
          %v1698 = vld [vmem:[#allocation8 + $0x78] sm:$0xff]
          %v1699 = vld [vmem:[#allocation8 + $0x80] sm:$0xff]
          %v1700 = vld [vmem:[#allocation8 + $0x88] sm:$0xff]
          %v1701 = vld [vmem:[#allocation8 + $0x90] sm:$0xff]
          %v1702 = vld [vmem:[#allocation8 + $0x98] sm:$0xff]
          %v1703 = vld [vmem:[#allocation8 + $0xa0] sm:$0xff]
          %v1704 = vld [vmem:[#allocation8 + $0xa8] sm:$0xff]
          %v1705 = vld [vmem:[#allocation8 + $0xb0] sm:$0xff]
          %v1706 = vld [vmem:[#allocation8 + $0xb8] sm:$0xff]
          %v1707 = vld [vmem:[#allocation8 + $0xc0] sm:$0xff]
          %v1708 = vld [vmem:[#allocation8 + $0xc8] sm:$0xff]
          %v1709 = vld [vmem:[#allocation8 + $0xd0] sm:$0xff]
          %v1710 = vld [vmem:[#allocation8 + $0xd8] sm:$0xff]
          %v1711 = vld [vmem:[#allocation8 + $0xe0] sm:$0xff]
          %v1712 = vld [vmem:[#allocation8 + $0xe8] sm:$0xff]
          %v1713 = vld [vmem:[#allocation8 + $0xf0] sm:$0xff]
          %v1714 = vld [vmem:[#allocation8 + $0xf8] sm:$0xff]
          %v1715 = vld [vmem:[#allocation8 + $0x100] sm:$0xff]
          %v1716 = vld [vmem:[#allocation8 + $0x108] sm:$0xff]
          %v1717 = vld [vmem:[#allocation8 + $0x110] sm:$0xff]
          %v1718 = vld [vmem:[#allocation8 + $0x118] sm:$0xff]
          %v1719 = vld [vmem:[#allocation19] sm:$0xff]
          %v1721 = vsel %vm1143, %v1719, 0
          %1723 = vmatprep.subr.mxu0 0.0
          %1724 = vmatpush1.msra.mxu0 0.0
          %1725 = vmatprep.subr.mxu0 0.0
          %1726 = vmatpush1.msra.mxu0 0.0
          %1727 = vmatprep.subr.mxu0 0.0
          %1728 = vmatpush1.msra.mxu0 0.0
          %1729 = vmatprep.subr.mxu0 0.0
          %1730 = vmatpush1.msra.mxu0 0.0
          %1731 = vmatprep.subr.mxu0 0.0
          %1732 = vmatpush1.msra.mxu0 0.0
          %1733 = vmatprep.subr.mxu0 0.0
          %1734 = vmatpush1.msra.mxu0 0.0
          %1735 = vmatprep.subr.mxu0 0.0
          %1736 = vmatpush1.msra.mxu0 0.0
          %1737 = vmatprep.subr.mxu0 0.0
          %1738 = vmatpush1.msra.mxu0 0.0
          %1739 = vmatprep.subr.mxu0 0.0
          %1740 = vmatpush1.msra.mxu0 0.0
          %1741 = vmatprep.subr.mxu0 0.0
          %1742 = vmatpush1.msra.mxu0 0.0
          %1743 = vmatprep.subr.mxu0 0.0
          %1744 = vmatpush1.msra.mxu0 0.0
          %1745 = vmatprep.subr.mxu0 0.0
          %1746 = vmatpush1.msra.mxu0 0.0
          %1747 = vmatprep.subr.mxu0 0.0
          %1748 = vmatpush1.msra.mxu0 0.0
          %1749 = vmatprep.subr.mxu0 0.0
          %1750 = vmatpush1.msra.mxu0 0.0
          %1751 = vmatprep.subr.mxu0 0.0
          %1752 = vmatpush1.msra.mxu0 0.0
          %1753 = vmatprep.subr.mxu0 0.0
          %1754 = vmatpush1.msra.mxu0 %v1164
          %1755 = vmatprep.subr.mxu0 0.0
          %1756 = vmatpush2.msra.mxu0 0.0
          %1757 = vmatprep.subr.mxu0 0.0
          %1758 = vmatpush2.msra.mxu0 0.0
          %1759 = vmatprep.subr.mxu0 0.0
          %1760 = vmatpush2.msra.mxu0 0.0
          %1761 = vmatprep.subr.mxu0 0.0
          %1762 = vmatpush2.msra.mxu0 0.0
          %1763 = vmatprep.subr.mxu0 0.0
          %1764 = vmatpush2.msra.mxu0 0.0
          %1765 = vmatprep.subr.mxu0 0.0
          %1766 = vmatpush2.msra.mxu0 0.0
          %1767 = vmatprep.subr.mxu0 0.0
          %1768 = vmatpush2.msra.mxu0 0.0
          %1769 = vmatprep.subr.mxu0 0.0
          %1770 = vmatpush2.msra.mxu0 0.0
          %1771 = vmatprep.subr.mxu0 0.0
          %1772 = vmatpush2.msra.mxu0 0.0
          %1773 = vmatprep.subr.mxu0 0.0
          %1774 = vmatpush2.msra.mxu0 0.0
          %1775 = vmatprep.subr.mxu0 0.0
          %1776 = vmatpush2.msra.mxu0 0.0
          %1777 = vmatprep.subr.mxu0 0.0
          %1778 = vmatpush2.msra.mxu0 0.0
          %1779 = vmatprep.subr.mxu0 0.0
          %1780 = vmatpush2.msra.mxu0 0.0
          %1781 = vmatprep.subr.mxu0 0.0
          %1782 = vmatpush2.msra.mxu0 0.0
          %1783 = vmatprep.subr.mxu0 0.0
          %1784 = vmatpush2.msra.mxu0 0.0
          %1785 = vmatprep.subr.mxu0 0.0
          %1786 = vmatpush2.msra.mxu0 0.0
          %1787 = vmatprep.mubr.f32.mxu0 0.0
          %1788 = vmatmul.mubr.f32.gmra.mxu0 %v1721
          %v1789 = vpop.f32.mrf.mxu0
          %v1790 = vadd.f32 0.0, %v1789
          %v1791 = vpop.f32.mrf.mxu0
          %1792 = vdwg.mxu0
          %vm1793 = vcmask 261120
          %v1795 = vsel %vm1793, %v1680, 0
          %1797 = vmatprep.subr.mxu0 0.0
          %1798 = vmatpush1.msra.mxu0 %v1698
          %1799 = vmatprep.subr.mxu0 0.0
          %1800 = vmatpush1.msra.mxu0 %v1697
          %1801 = vmatprep.subr.mxu0 0.0
          %1802 = vmatpush1.msra.mxu0 %v1696
          %1803 = vmatprep.subr.mxu0 0.0
          %1804 = vmatpush1.msra.mxu0 %v1695
          %1805 = vmatprep.subr.mxu0 0.0
          %1806 = vmatpush1.msra.mxu0 %v1694
          %1807 = vmatprep.subr.mxu0 0.0
          %1808 = vmatpush1.msra.mxu0 %v1693
          %1809 = vmatprep.subr.mxu0 0.0
          %1810 = vmatpush1.msra.mxu0 %v1692
          %1811 = vmatprep.subr.mxu0 0.0
          %1812 = vmatpush1.msra.mxu0 %v1691
          %1813 = vmatprep.subr.mxu0 0.0
          %1814 = vmatpush1.msra.mxu0 %v1690
          %1815 = vmatprep.subr.mxu0 0.0
          %1816 = vmatpush1.msra.mxu0 %v1689
          %1817 = vmatprep.subr.mxu0 0.0
          %1818 = vmatpush1.msra.mxu0 %v1688
          %1819 = vmatprep.subr.mxu0 0.0
          %1820 = vmatpush1.msra.mxu0 %v1687
          %1821 = vmatprep.subr.mxu0 0.0
          %1822 = vmatpush1.msra.mxu0 %v1686
          %1823 = vmatprep.subr.mxu0 0.0
          %1824 = vmatpush1.msra.mxu0 %v1685
          %1825 = vmatprep.subr.mxu0 0.0
          %1826 = vmatpush1.msra.mxu0 %v1684
          %1827 = vmatprep.subr.mxu0 0.0
          %1828 = vmatpush1.msra.mxu0 %v1683
          %1829 = vmatprep.subr.mxu0 0.0
          %1830 = vmatpush2.msra.mxu0 %v1714
          %1831 = vmatprep.subr.mxu0 0.0
          %1832 = vmatpush2.msra.mxu0 %v1713
          %1833 = vmatprep.subr.mxu0 0.0
          %1834 = vmatpush2.msra.mxu0 %v1712
          %1835 = vmatprep.subr.mxu0 0.0
          %1836 = vmatpush2.msra.mxu0 %v1711
          %1837 = vmatprep.subr.mxu0 0.0
          %1838 = vmatpush2.msra.mxu0 %v1710
          %1839 = vmatprep.subr.mxu0 0.0
          %1840 = vmatpush2.msra.mxu0 %v1709
          %1841 = vmatprep.subr.mxu0 0.0
          %1842 = vmatpush2.msra.mxu0 %v1708
          %1843 = vmatprep.subr.mxu0 0.0
          %1844 = vmatpush2.msra.mxu0 %v1707
          %1845 = vmatprep.subr.mxu0 0.0
          %1846 = vmatpush2.msra.mxu0 %v1706
          %1847 = vmatprep.subr.mxu0 0.0
          %1848 = vmatpush2.msra.mxu0 %v1705
          %1849 = vmatprep.subr.mxu0 0.0
          %1850 = vmatpush2.msra.mxu0 %v1704
          %1851 = vmatprep.subr.mxu0 0.0
          %1852 = vmatpush2.msra.mxu0 %v1703
          %1853 = vmatprep.subr.mxu0 0.0
          %1854 = vmatpush2.msra.mxu0 %v1702
          %1855 = vmatprep.subr.mxu0 0.0
          %1856 = vmatpush2.msra.mxu0 %v1701
          %1857 = vmatprep.subr.mxu0 0.0
          %1858 = vmatpush2.msra.mxu0 %v1700
          %1859 = vmatprep.subr.mxu0 0.0
          %1860 = vmatpush2.msra.mxu0 %v1699
          %1861 = vmatprep.mubr.f32.mxu0 %v1611
          %1862 = vmatmul.mubr.f32.gmra.mxu0 %v1609
          %v1863 = vpop.f32.mrf.mxu0
          %v1864 = vadd.f32 %v1790, %v1863
          %v1865 = vpop.f32.mrf.mxu0
          %1866 = vdwg.mxu0
          %1867 = vmatprep.subr.mxu0 0.0
          %1868 = vmatpush1.msra.mxu0 0.0
          %1869 = vmatprep.subr.mxu0 0.0
          %1870 = vmatpush1.msra.mxu0 0.0
          %1871 = vmatprep.subr.mxu0 0.0
          %1872 = vmatpush1.msra.mxu0 0.0
          %1873 = vmatprep.subr.mxu0 0.0
          %1874 = vmatpush1.msra.mxu0 0.0
          %1875 = vmatprep.subr.mxu0 0.0
          %1876 = vmatpush1.msra.mxu0 0.0
          %1877 = vmatprep.subr.mxu0 0.0
          %1878 = vmatpush1.msra.mxu0 0.0
          %1879 = vmatprep.subr.mxu0 0.0
          %1880 = vmatpush1.msra.mxu0 0.0
          %1881 = vmatprep.subr.mxu0 0.0
          %1882 = vmatpush1.msra.mxu0 0.0
          %1883 = vmatprep.subr.mxu0 0.0
          %1884 = vmatpush1.msra.mxu0 0.0
          %1885 = vmatprep.subr.mxu0 0.0
          %1886 = vmatpush1.msra.mxu0 0.0
          %1887 = vmatprep.subr.mxu0 0.0
          %1888 = vmatpush1.msra.mxu0 0.0
          %1889 = vmatprep.subr.mxu0 0.0
          %1890 = vmatpush1.msra.mxu0 0.0
          %1891 = vmatprep.subr.mxu0 0.0
          %1892 = vmatpush1.msra.mxu0 %v1718
          %1893 = vmatprep.subr.mxu0 0.0
          %1894 = vmatpush1.msra.mxu0 %v1717
          %1895 = vmatprep.subr.mxu0 0.0
          %1896 = vmatpush1.msra.mxu0 %v1716
          %1897 = vmatprep.subr.mxu0 0.0
          %1898 = vmatpush1.msra.mxu0 %v1715
          %1899 = vmatprep.subr.mxu0 0.0
          %1900 = vmatpush2.msra.mxu0 0.0
          %1901 = vmatprep.subr.mxu0 0.0
          %1902 = vmatpush2.msra.mxu0 0.0
          %1903 = vmatprep.subr.mxu0 0.0
          %1904 = vmatpush2.msra.mxu0 0.0
          %1905 = vmatprep.subr.mxu0 0.0
          %1906 = vmatpush2.msra.mxu0 0.0
          %1907 = vmatprep.subr.mxu0 0.0
          %1908 = vmatpush2.msra.mxu0 0.0
          %1909 = vmatprep.subr.mxu0 0.0
          %1910 = vmatpush2.msra.mxu0 0.0
          %1911 = vmatprep.subr.mxu0 0.0
          %1912 = vmatpush2.msra.mxu0 0.0
          %1913 = vmatprep.subr.mxu0 0.0
          %1914 = vmatpush2.msra.mxu0 0.0
          %1915 = vmatprep.subr.mxu0 0.0
          %1916 = vmatpush2.msra.mxu0 0.0
          %1917 = vmatprep.subr.mxu0 0.0
          %1918 = vmatpush2.msra.mxu0 0.0
          %1919 = vmatprep.subr.mxu0 0.0
          %1920 = vmatpush2.msra.mxu0 0.0
          %1921 = vmatprep.subr.mxu0 0.0
          %1922 = vmatpush2.msra.mxu0 0.0
          %1923 = vmatprep.subr.mxu0 0.0
          %1924 = vmatpush2.msra.mxu0 0.0
          %1925 = vmatprep.subr.mxu0 0.0
          %1926 = vmatpush2.msra.mxu0 0.0
          %1927 = vmatprep.subr.mxu0 0.0
          %1928 = vmatpush2.msra.mxu0 0.0
          %1929 = vmatprep.subr.mxu0 0.0
          %1930 = vmatpush2.msra.mxu0 0.0
          %1931 = vmatprep.mubr.f32.mxu0 0.0
          %1932 = vmatmul.mubr.f32.gmra.mxu0 %v1795
          %v1933 = vpop.f32.mrf.mxu0
          %v1934 = vadd.f32 %v1864, %v1933
          %v1935 = vpop.f32.mrf.mxu0
          %1936 = vdwg.mxu0
          %v1937 = vld [vmem:[%s11] sm:$0xff]
          %1939 = vset.pattern.permute.xlu0 0
          %1940 = vperm.xlu0 %1939, %v1937
          %v1941 = vpop.permute.xlu0 %1940
          %v1943 = vadd.f32 %v1934, %v1941
          %1944 = vst [vmem:[#allocation2] sm:$0xff] 0.0
          %1945 = vst [vmem:[#allocation2 + $0x8] sm:$0xff] 0.0
          %1946 = vst [vmem:[#allocation2 + $0x10] sm:$0xff] 0.0
          %1947 = vst [vmem:[#allocation2 + $0x18] sm:$0xff] 0.0
          %1948 = vst [vmem:[#allocation2 + $0x20] sm:$0xff] 0.0
          %1949 = vst [vmem:[#allocation2 + $0x28] sm:$0xff] 0.0
          %1950 = vst [vmem:[#allocation2 + $0x30] sm:$0xff] 0.0
          %1951 = vst [vmem:[#allocation2 + $0x38] sm:$0xff] 0.0
          %1952 = vst.msk [vmem:[#allocation2] sm:$0xff] %vm1294, %v1943
        $region136: #{_lambda_.1} parent=79 // pred_fallthru
          _
        %v1953 = vld [vmem:[#allocation2] sm:$0xff]
        %v1954 = vld [vmem:[#allocation2 + $0x8] sm:$0xff]
        %v1955 = vld [vmem:[#allocation2 + $0x10] sm:$0xff]
        %v1956 = vld [vmem:[#allocation2 + $0x18] sm:$0xff]
        %v1957 = vld [vmem:[#allocation2 + $0x20] sm:$0xff]
        %v1958 = vld [vmem:[#allocation2 + $0x28] sm:$0xff]
        %v1959 = vld [vmem:[#allocation2 + $0x30] sm:$0xff]
        %v1960 = vld [vmem:[#allocation2 + $0x38] sm:$0xff]
        %v1961 = vld [vmem:[%s12] sm:$0x1]
        %v1962 = vld [vmem:[%s12 + $0x1] sm:$0x1]
        %v1963 = vld [vmem:[%s12 + $0x2] sm:$0x1]
        %v1964 = vld [vmem:[%s12 + $0x3] sm:$0x1]
        %v1965 = vld [vmem:[%s12 + $0x4] sm:$0x1]
        %v1966 = vld [vmem:[%s12 + $0x5] sm:$0x1]
        %v1967 = vld [vmem:[%s12 + $0x6] sm:$0x1]
        %v1968 = vld [vmem:[%s12 + $0x7] sm:$0x1]
        %v1969 = vld [vmem:[%s12 + $0x8] sm:$0x1]
        %1970 = vrot.lane.b32.xlu0 %v1953, 10
        %v1971 = vpop.permute.xlu0 %1970
        %1972 = vrot.lane.b32.xlu0 %v1954, 10
        %v1973 = vpop.permute.xlu0 %1972
        %1974 = vrot.lane.b32.xlu0 %v1955, 10
        %v1975 = vpop.permute.xlu0 %1974
        %1976 = vrot.lane.b32.xlu0 %v1956, 10
        %v1977 = vpop.permute.xlu0 %1976
        %1978 = vrot.lane.b32.xlu0 %v1957, 10
        %v1979 = vpop.permute.xlu0 %1978
        %1980 = vrot.lane.b32.xlu0 %v1958, 10
        %v1981 = vpop.permute.xlu0 %1980
        %1982 = vrot.lane.b32.xlu0 %v1959, 10
        %v1983 = vpop.permute.xlu0 %1982
        %1984 = vrot.lane.b32.xlu0 %v1960, 10
        %v1985 = vpop.permute.xlu0 %1984
        %v1987 = vlaneseq
        %v1988 = vshrl.u32 %v1987, 7
        %v1989 = vsub.s32 0, %v1988
        %v1990 = vrot.slane %v1961, %v1989
        %v1992 = vmul.f32 %v1971, %v1990
        %v1993 = vmul.f32 %v1973, %v1990
        %v1994 = vmul.f32 %v1975, %v1990
        %v1995 = vmul.f32 %v1977, %v1990
        %v1996 = vmul.f32 %v1979, %v1990
        %v1997 = vmul.f32 %v1981, %v1990
        %v1998 = vmul.f32 %v1983, %v1990
        %v1999 = vmul.f32 %v1985, %v1990
        %v2000 = vld [vmem:[%s633] sm:$0xf]
        %v2001 = vld [vmem:[%s633 + $0x4] sm:$0xf]
        %v2002 = vld [vmem:[%s633 + $0x8] sm:$0xf]
        %v2003 = vld [vmem:[%s633 + $0xc] sm:$0xf]
        %v2004 = vld [vmem:[%s633 + $0x10] sm:$0xf]
        %v2005 = vld [vmem:[%s633 + $0x14] sm:$0xf]
        %v2006 = vld [vmem:[%s633 + $0x18] sm:$0xf]
        %v2007 = vld [vmem:[%s633 + $0x1c] sm:$0xf]
        %v2008 = vpack.c.bf16 %v1993, %v1992
        %v2009 = vpack.c.bf16 %v1995, %v1994
        %v2010 = vpack.c.bf16 %v1997, %v1996
        %v2011 = vpack.c.bf16 %v1999, %v1998
        %2012 = vrot.lane.b32.xlu0 %v1953, 9
        %v2013 = vpop.permute.xlu0 %2012
        %2014 = vrot.lane.b32.xlu0 %v1954, 9
        %v2015 = vpop.permute.xlu0 %2014
        %2016 = vrot.lane.b32.xlu0 %v1955, 9
        %v2017 = vpop.permute.xlu0 %2016
        %2018 = vrot.lane.b32.xlu0 %v1956, 9
        %v2019 = vpop.permute.xlu0 %2018
        %2020 = vrot.lane.b32.xlu0 %v1957, 9
        %v2021 = vpop.permute.xlu0 %2020
        %2022 = vrot.lane.b32.xlu0 %v1958, 9
        %v2023 = vpop.permute.xlu0 %2022
        %2024 = vrot.lane.b32.xlu0 %v1959, 9
        %v2025 = vpop.permute.xlu0 %2024
        %2026 = vrot.lane.b32.xlu0 %v1960, 9
        %v2027 = vpop.permute.xlu0 %2026
        %v2029 = vlaneseq
        %v2030 = vshrl.u32 %v2029, 7
        %v2031 = vsub.s32 0, %v2030
        %v2032 = vrot.slane %v1962, %v2031
        %v2034 = vmul.f32 %v2013, %v2032
        %v2035 = vmul.f32 %v2015, %v2032
        %v2036 = vmul.f32 %v2017, %v2032
        %v2037 = vmul.f32 %v2019, %v2032
        %v2038 = vmul.f32 %v2021, %v2032
        %v2039 = vmul.f32 %v2023, %v2032
        %v2040 = vmul.f32 %v2025, %v2032
        %v2041 = vmul.f32 %v2027, %v2032
        %s2042 = scalar_lea.vmem %s633, 32 [#allocation20]
        %v2043 = vld [vmem:[%s2042] sm:$0xf]
        %v2044 = vld [vmem:[%s2042 + $0x4] sm:$0xf]
        %v2045 = vld [vmem:[%s2042 + $0x8] sm:$0xf]
        %v2046 = vld [vmem:[%s2042 + $0xc] sm:$0xf]
        %v2047 = vld [vmem:[%s2042 + $0x10] sm:$0xf]
        %v2048 = vld [vmem:[%s2042 + $0x14] sm:$0xf]
        %v2049 = vld [vmem:[%s2042 + $0x18] sm:$0xf]
        %v2050 = vld [vmem:[%s2042 + $0x1c] sm:$0xf]
        %v2051 = vpack.c.bf16 %v2035, %v2034
        %v2052 = vpack.c.bf16 %v2037, %v2036
        %v2053 = vpack.c.bf16 %v2039, %v2038
        %v2054 = vpack.c.bf16 %v2041, %v2040
        %v2063 = vunpack.c.l.b16 %v2043
        %v2064 = vunpack.c.l.b16 %v2044
        %v2065 = vunpack.c.l.b16 %v2045
        %v2066 = vunpack.c.l.b16 %v2046
        %v2067 = vunpack.c.l.b16 %v2047
        %v2068 = vunpack.c.l.b16 %v2048
        %v2069 = vunpack.c.l.b16 %v2049
        %v2070 = vunpack.c.l.b16 %v2050
        %v2071 = vpack.c.b16 %v2064, %v2063
        %v2072 = vpack.c.b16 %v2066, %v2065
        %v2073 = vpack.c.b16 %v2068, %v2067
        %v2074 = vpack.c.b16 %v2070, %v2069
        %vm2075 = vcmask 523264
        %v2077 = vsel %vm2075, %v2071, 0
        %v2080 = vsel %vm2075, %v2072, 0
        %v2083 = vsel %vm2075, %v2073, 0
        %v2086 = vsel %vm2075, %v2074, 0
        %2088 = vmatprep.subr.bf16.mxu0 0
        %2089 = vmatpush1.bf16.msra.mxu0 0
        %2090 = vmatprep.subr.bf16.mxu0 0
        %2091 = vmatpush1.bf16.msra.mxu0 0
        %2092 = vmatprep.subr.bf16.mxu0 0
        %2093 = vmatpush1.bf16.msra.mxu0 0
        %2094 = vmatprep.subr.bf16.mxu0 0
        %2095 = vmatpush1.bf16.msra.mxu0 0
        %2096 = vmatprep.subr.bf16.mxu0 0
        %2097 = vmatpush1.bf16.msra.mxu0 %v2054
        %2098 = vmatprep.subr.bf16.mxu0 0
        %2099 = vmatpush1.bf16.msra.mxu0 %v2053
        %2100 = vmatprep.subr.bf16.mxu0 0
        %2101 = vmatpush1.bf16.msra.mxu0 %v2052
        %2102 = vmatprep.subr.bf16.mxu0 0
        %2103 = vmatpush1.bf16.msra.mxu0 %v2051
        %2104 = vmatprep.subr.bf16.mxu0 0
        %2105 = vmatpush2.bf16.msra.mxu0 0
        %2106 = vmatprep.subr.bf16.mxu0 0
        %2107 = vmatpush2.bf16.msra.mxu0 0
        %2108 = vmatprep.subr.bf16.mxu0 0
        %2109 = vmatpush2.bf16.msra.mxu0 0
        %2110 = vmatprep.subr.bf16.mxu0 0
        %2111 = vmatpush2.bf16.msra.mxu0 0
        %2112 = vmatprep.subr.bf16.mxu0 0
        %2113 = vmatpush2.bf16.msra.mxu0 0
        %2114 = vmatprep.subr.bf16.mxu0 0
        %2115 = vmatpush2.bf16.msra.mxu0 0
        %2116 = vmatprep.subr.bf16.mxu0 0
        %2117 = vmatpush2.bf16.msra.mxu0 0
        %2118 = vmatprep.subr.bf16.mxu0 0
        %2119 = vmatpush2.bf16.msra.mxu0 0
        %2120 = vmatprep.mubr.bf16.mxu0 0
        %2121 = vmatmul.mubr.bf16.gmra.mxu0 %v2077
        %v2122 = vpop.f32.mrf.mxu0
        %v2123 = vadd.f32 0.0, %v2122
        %v2124 = vpop.f32.mrf.mxu0
        %v2125 = vpop.f32.mrf.mxu0
        %v2126 = vadd.f32 0.0, %v2125
        %v2127 = vpop.f32.mrf.mxu0
        %2128 = vmatprep.mubr.bf16.mxu0 0
        %2129 = vmatmul.mubr.bf16.gmra.mxu0 %v2080
        %v2130 = vpop.f32.mrf.mxu0
        %v2131 = vadd.f32 0.0, %v2130
        %v2132 = vpop.f32.mrf.mxu0
        %v2133 = vpop.f32.mrf.mxu0
        %v2134 = vadd.f32 0.0, %v2133
        %v2135 = vpop.f32.mrf.mxu0
        %2136 = vmatprep.mubr.bf16.mxu0 0
        %2137 = vmatmul.mubr.bf16.gmra.mxu0 %v2083
        %v2138 = vpop.f32.mrf.mxu0
        %v2139 = vadd.f32 0.0, %v2138
        %v2140 = vpop.f32.mrf.mxu0
        %v2141 = vpop.f32.mrf.mxu0
        %v2142 = vadd.f32 0.0, %v2141
        %v2143 = vpop.f32.mrf.mxu0
        %2144 = vmatprep.mubr.bf16.mxu0 0
        %2145 = vmatmul.mubr.bf16.gmra.mxu0 %v2086
        %v2146 = vpop.f32.mrf.mxu0
        %v2147 = vadd.f32 0.0, %v2146
        %v2148 = vpop.f32.mrf.mxu0
        %v2149 = vpop.f32.mrf.mxu0
        %v2150 = vadd.f32 0.0, %v2149
        %v2151 = vpop.f32.mrf.mxu0
        %2152 = vdwg.mxu0
        %v2161 = vunpack.c.l.b16 %v2000
        %v2162 = vunpack.c.l.b16 %v2001
        %v2163 = vunpack.c.l.b16 %v2002
        %v2164 = vunpack.c.l.b16 %v2003
        %v2165 = vunpack.c.l.b16 %v2004
        %v2166 = vunpack.c.l.b16 %v2005
        %v2167 = vunpack.c.l.b16 %v2006
        %v2168 = vunpack.c.l.b16 %v2007
        %v2169 = vpack.c.b16 %v2162, %v2161
        %v2170 = vpack.c.b16 %v2164, %v2163
        %v2171 = vpack.c.b16 %v2166, %v2165
        %v2172 = vpack.c.b16 %v2168, %v2167
        %v2174 = vsel %vm2075, %v2169, 0
        %v2177 = vsel %vm2075, %v2170, 0
        %v2180 = vsel %vm2075, %v2171, 0
        %v2183 = vsel %vm2075, %v2172, 0
        %2185 = vmatprep.subr.bf16.mxu0 0
        %2186 = vmatpush1.bf16.msra.mxu0 0
        %2187 = vmatprep.subr.bf16.mxu0 0
        %2188 = vmatpush1.bf16.msra.mxu0 0
        %2189 = vmatprep.subr.bf16.mxu0 0
        %2190 = vmatpush1.bf16.msra.mxu0 0
        %2191 = vmatprep.subr.bf16.mxu0 0
        %2192 = vmatpush1.bf16.msra.mxu0 0
        %2193 = vmatprep.subr.bf16.mxu0 0
        %2194 = vmatpush1.bf16.msra.mxu0 %v2011
        %2195 = vmatprep.subr.bf16.mxu0 0
        %2196 = vmatpush1.bf16.msra.mxu0 %v2010
        %2197 = vmatprep.subr.bf16.mxu0 0
        %2198 = vmatpush1.bf16.msra.mxu0 %v2009
        %2199 = vmatprep.subr.bf16.mxu0 0
        %2200 = vmatpush1.bf16.msra.mxu0 %v2008
        %2201 = vmatprep.subr.bf16.mxu0 0
        %2202 = vmatpush2.bf16.msra.mxu0 0
        %2203 = vmatprep.subr.bf16.mxu0 0
        %2204 = vmatpush2.bf16.msra.mxu0 0
        %2205 = vmatprep.subr.bf16.mxu0 0
        %2206 = vmatpush2.bf16.msra.mxu0 0
        %2207 = vmatprep.subr.bf16.mxu0 0
        %2208 = vmatpush2.bf16.msra.mxu0 0
        %2209 = vmatprep.subr.bf16.mxu0 0
        %2210 = vmatpush2.bf16.msra.mxu0 0
        %2211 = vmatprep.subr.bf16.mxu0 0
        %2212 = vmatpush2.bf16.msra.mxu0 0
        %2213 = vmatprep.subr.bf16.mxu0 0
        %2214 = vmatpush2.bf16.msra.mxu0 0
        %2215 = vmatprep.subr.bf16.mxu0 0
        %2216 = vmatpush2.bf16.msra.mxu0 0
        %2217 = vmatprep.mubr.bf16.mxu0 0
        %2218 = vmatmul.mubr.bf16.gmra.mxu0 %v2174
        %v2219 = vpop.f32.mrf.mxu0
        %v2220 = vadd.f32 %v2123, %v2219
        %v2221 = vpop.f32.mrf.mxu0
        %v2222 = vpop.f32.mrf.mxu0
        %v2223 = vadd.f32 %v2126, %v2222
        %v2224 = vpop.f32.mrf.mxu0
        %2225 = vmatprep.mubr.bf16.mxu0 0
        %2226 = vmatmul.mubr.bf16.gmra.mxu0 %v2177
        %v2227 = vpop.f32.mrf.mxu0
        %v2228 = vadd.f32 %v2131, %v2227
        %v2229 = vpop.f32.mrf.mxu0
        %v2230 = vpop.f32.mrf.mxu0
        %v2231 = vadd.f32 %v2134, %v2230
        %v2232 = vpop.f32.mrf.mxu0
        %2233 = vmatprep.mubr.bf16.mxu0 0
        %2234 = vmatmul.mubr.bf16.gmra.mxu0 %v2180
        %v2235 = vpop.f32.mrf.mxu0
        %v2236 = vadd.f32 %v2139, %v2235
        %v2237 = vpop.f32.mrf.mxu0
        %v2238 = vpop.f32.mrf.mxu0
        %v2239 = vadd.f32 %v2142, %v2238
        %v2240 = vpop.f32.mrf.mxu0
        %2241 = vmatprep.mubr.bf16.mxu0 0
        %2242 = vmatmul.mubr.bf16.gmra.mxu0 %v2183
        %v2243 = vpop.f32.mrf.mxu0
        %v2244 = vadd.f32 %v2147, %v2243
        %v2245 = vpop.f32.mrf.mxu0
        %v2246 = vpop.f32.mrf.mxu0
        %v2247 = vadd.f32 %v2150, %v2246
        %v2248 = vpop.f32.mrf.mxu0
        %2249 = vdwg.mxu0
        %2250 = vrot.lane.b32.xlu0 %v1953, 8
        %v2251 = vpop.permute.xlu0 %2250
        %2252 = vrot.lane.b32.xlu0 %v1954, 8
        %v2253 = vpop.permute.xlu0 %2252
        %2254 = vrot.lane.b32.xlu0 %v1955, 8
        %v2255 = vpop.permute.xlu0 %2254
        %2256 = vrot.lane.b32.xlu0 %v1956, 8
        %v2257 = vpop.permute.xlu0 %2256
        %2258 = vrot.lane.b32.xlu0 %v1957, 8
        %v2259 = vpop.permute.xlu0 %2258
        %2260 = vrot.lane.b32.xlu0 %v1958, 8
        %v2261 = vpop.permute.xlu0 %2260
        %2262 = vrot.lane.b32.xlu0 %v1959, 8
        %v2263 = vpop.permute.xlu0 %2262
        %2264 = vrot.lane.b32.xlu0 %v1960, 8
        %v2265 = vpop.permute.xlu0 %2264
        %v2267 = vlaneseq
        %v2268 = vshrl.u32 %v2267, 7
        %v2269 = vsub.s32 0, %v2268
        %v2270 = vrot.slane %v1963, %v2269
        %v2272 = vmul.f32 %v2251, %v2270
        %v2273 = vmul.f32 %v2253, %v2270
        %v2274 = vmul.f32 %v2255, %v2270
        %v2275 = vmul.f32 %v2257, %v2270
        %v2276 = vmul.f32 %v2259, %v2270
        %v2277 = vmul.f32 %v2261, %v2270
        %v2278 = vmul.f32 %v2263, %v2270
        %v2279 = vmul.f32 %v2265, %v2270
        %s2280 = scalar_lea.vmem %s633, 64 [#allocation20]
        %v2281 = vld [vmem:[%s2280] sm:$0xf]
        %v2282 = vld [vmem:[%s2280 + $0x4] sm:$0xf]
        %v2283 = vld [vmem:[%s2280 + $0x8] sm:$0xf]
        %v2284 = vld [vmem:[%s2280 + $0xc] sm:$0xf]
        %v2285 = vld [vmem:[%s2280 + $0x10] sm:$0xf]
        %v2286 = vld [vmem:[%s2280 + $0x14] sm:$0xf]
        %v2287 = vld [vmem:[%s2280 + $0x18] sm:$0xf]
        %v2288 = vld [vmem:[%s2280 + $0x1c] sm:$0xf]
        %v2289 = vpack.c.bf16 %v2273, %v2272
        %v2290 = vpack.c.bf16 %v2275, %v2274
        %v2291 = vpack.c.bf16 %v2277, %v2276
        %v2292 = vpack.c.bf16 %v2279, %v2278
        %v2301 = vunpack.c.l.b16 %v2281
        %v2302 = vunpack.c.l.b16 %v2282
        %v2303 = vunpack.c.l.b16 %v2283
        %v2304 = vunpack.c.l.b16 %v2284
        %v2305 = vunpack.c.l.b16 %v2285
        %v2306 = vunpack.c.l.b16 %v2286
        %v2307 = vunpack.c.l.b16 %v2287
        %v2308 = vunpack.c.l.b16 %v2288
        %v2309 = vpack.c.b16 %v2302, %v2301
        %v2310 = vpack.c.b16 %v2304, %v2303
        %v2311 = vpack.c.b16 %v2306, %v2305
        %v2312 = vpack.c.b16 %v2308, %v2307
        %v2314 = vsel %vm2075, %v2309, 0
        %v2317 = vsel %vm2075, %v2310, 0
        %v2320 = vsel %vm2075, %v2311, 0
        %v2323 = vsel %vm2075, %v2312, 0
        %2325 = vmatprep.subr.bf16.mxu0 0
        %2326 = vmatpush1.bf16.msra.mxu0 0
        %2327 = vmatprep.subr.bf16.mxu0 0
        %2328 = vmatpush1.bf16.msra.mxu0 0
        %2329 = vmatprep.subr.bf16.mxu0 0
        %2330 = vmatpush1.bf16.msra.mxu0 0
        %2331 = vmatprep.subr.bf16.mxu0 0
        %2332 = vmatpush1.bf16.msra.mxu0 0
        %2333 = vmatprep.subr.bf16.mxu0 0
        %2334 = vmatpush1.bf16.msra.mxu0 %v2292
        %2335 = vmatprep.subr.bf16.mxu0 0
        %2336 = vmatpush1.bf16.msra.mxu0 %v2291
        %2337 = vmatprep.subr.bf16.mxu0 0
        %2338 = vmatpush1.bf16.msra.mxu0 %v2290
        %2339 = vmatprep.subr.bf16.mxu0 0
        %2340 = vmatpush1.bf16.msra.mxu0 %v2289
        %2341 = vmatprep.subr.bf16.mxu0 0
        %2342 = vmatpush2.bf16.msra.mxu0 0
        %2343 = vmatprep.subr.bf16.mxu0 0
        %2344 = vmatpush2.bf16.msra.mxu0 0
        %2345 = vmatprep.subr.bf16.mxu0 0
        %2346 = vmatpush2.bf16.msra.mxu0 0
        %2347 = vmatprep.subr.bf16.mxu0 0
        %2348 = vmatpush2.bf16.msra.mxu0 0
        %2349 = vmatprep.subr.bf16.mxu0 0
        %2350 = vmatpush2.bf16.msra.mxu0 0
        %2351 = vmatprep.subr.bf16.mxu0 0
        %2352 = vmatpush2.bf16.msra.mxu0 0
        %2353 = vmatprep.subr.bf16.mxu0 0
        %2354 = vmatpush2.bf16.msra.mxu0 0
        %2355 = vmatprep.subr.bf16.mxu0 0
        %2356 = vmatpush2.bf16.msra.mxu0 0
        %2357 = vmatprep.mubr.bf16.mxu0 0
        %2358 = vmatmul.mubr.bf16.gmra.mxu0 %v2314
        %v2359 = vpop.f32.mrf.mxu0
        %v2360 = vadd.f32 0.0, %v2359
        %v2361 = vpop.f32.mrf.mxu0
        %v2362 = vpop.f32.mrf.mxu0
        %v2363 = vadd.f32 0.0, %v2362
        %v2364 = vpop.f32.mrf.mxu0
        %2365 = vmatprep.mubr.bf16.mxu0 0
        %2366 = vmatmul.mubr.bf16.gmra.mxu0 %v2317
        %v2367 = vpop.f32.mrf.mxu0
        %v2368 = vadd.f32 0.0, %v2367
        %v2369 = vpop.f32.mrf.mxu0
        %v2370 = vpop.f32.mrf.mxu0
        %v2371 = vadd.f32 0.0, %v2370
        %v2372 = vpop.f32.mrf.mxu0
        %2373 = vmatprep.mubr.bf16.mxu0 0
        %2374 = vmatmul.mubr.bf16.gmra.mxu0 %v2320
        %v2375 = vpop.f32.mrf.mxu0
        %v2376 = vadd.f32 0.0, %v2375
        %v2377 = vpop.f32.mrf.mxu0
        %v2378 = vpop.f32.mrf.mxu0
        %v2379 = vadd.f32 0.0, %v2378
        %v2380 = vpop.f32.mrf.mxu0
        %2381 = vmatprep.mubr.bf16.mxu0 0
        %2382 = vmatmul.mubr.bf16.gmra.mxu0 %v2323
        %v2383 = vpop.f32.mrf.mxu0
        %v2384 = vadd.f32 0.0, %v2383
        %v2385 = vpop.f32.mrf.mxu0
        %v2386 = vpop.f32.mrf.mxu0
        %v2387 = vadd.f32 0.0, %v2386
        %v2388 = vpop.f32.mrf.mxu0
        %2389 = vdwg.mxu0
        %v2390 = vadd.f32 %v2220, %v2360
        %v2391 = vadd.f32 %v2223, %v2363
        %v2392 = vadd.f32 %v2228, %v2368
        %v2393 = vadd.f32 %v2231, %v2371
        %v2394 = vadd.f32 %v2236, %v2376
        %v2395 = vadd.f32 %v2239, %v2379
        %v2396 = vadd.f32 %v2244, %v2384
        %v2397 = vadd.f32 %v2247, %v2387
        %2398 = vrot.lane.b32.xlu0 %v1953, 1
        %v2399 = vpop.permute.xlu0 %2398
        %2400 = vrot.lane.b32.xlu0 %v1954, 1
        %v2401 = vpop.permute.xlu0 %2400
        %2402 = vrot.lane.b32.xlu0 %v1955, 1
        %v2403 = vpop.permute.xlu0 %2402
        %2404 = vrot.lane.b32.xlu0 %v1956, 1
        %v2405 = vpop.permute.xlu0 %2404
        %2406 = vrot.lane.b32.xlu0 %v1957, 1
        %v2407 = vpop.permute.xlu0 %2406
        %2408 = vrot.lane.b32.xlu0 %v1958, 1
        %v2409 = vpop.permute.xlu0 %2408
        %2410 = vrot.lane.b32.xlu0 %v1959, 1
        %v2411 = vpop.permute.xlu0 %2410
        %2412 = vrot.lane.b32.xlu0 %v1960, 1
        %v2413 = vpop.permute.xlu0 %2412
        %v2415 = vlaneseq
        %v2416 = vshrl.u32 %v2415, 7
        %v2417 = vsub.s32 0, %v2416
        %v2418 = vrot.slane %v1964, %v2417
        %v2420 = vmul.f32 %v2399, %v2418
        %v2421 = vmul.f32 %v2401, %v2418
        %v2422 = vmul.f32 %v2403, %v2418
        %v2423 = vmul.f32 %v2405, %v2418
        %v2424 = vmul.f32 %v2407, %v2418
        %v2425 = vmul.f32 %v2409, %v2418
        %v2426 = vmul.f32 %v2411, %v2418
        %v2427 = vmul.f32 %v2413, %v2418
        %s2428 = scalar_lea.vmem %s633, 96 [#allocation20]
        %v2429 = vld [vmem:[%s2428] sm:$0xf]
        %v2430 = vld [vmem:[%s2428 + $0x4] sm:$0xf]
        %v2431 = vld [vmem:[%s2428 + $0x8] sm:$0xf]
        %v2432 = vld [vmem:[%s2428 + $0xc] sm:$0xf]
        %v2433 = vld [vmem:[%s2428 + $0x10] sm:$0xf]
        %v2434 = vld [vmem:[%s2428 + $0x14] sm:$0xf]
        %v2435 = vld [vmem:[%s2428 + $0x18] sm:$0xf]
        %v2436 = vld [vmem:[%s2428 + $0x1c] sm:$0xf]
        %v2437 = vpack.c.bf16 %v2421, %v2420
        %v2438 = vpack.c.bf16 %v2423, %v2422
        %v2439 = vpack.c.bf16 %v2425, %v2424
        %v2440 = vpack.c.bf16 %v2427, %v2426
        %v2449 = vunpack.c.l.b16 %v2429
        %v2450 = vunpack.c.l.b16 %v2430
        %v2451 = vunpack.c.l.b16 %v2431
        %v2452 = vunpack.c.l.b16 %v2432
        %v2453 = vunpack.c.l.b16 %v2433
        %v2454 = vunpack.c.l.b16 %v2434
        %v2455 = vunpack.c.l.b16 %v2435
        %v2456 = vunpack.c.l.b16 %v2436
        %v2457 = vpack.c.b16 %v2450, %v2449
        %v2458 = vpack.c.b16 %v2452, %v2451
        %v2459 = vpack.c.b16 %v2454, %v2453
        %v2460 = vpack.c.b16 %v2456, %v2455
        %v2462 = vsel %vm2075, %v2457, 0
        %v2465 = vsel %vm2075, %v2458, 0
        %v2468 = vsel %vm2075, %v2459, 0
        %v2471 = vsel %vm2075, %v2460, 0
        %2473 = vmatprep.subr.bf16.mxu0 0
        %2474 = vmatpush1.bf16.msra.mxu0 0
        %2475 = vmatprep.subr.bf16.mxu0 0
        %2476 = vmatpush1.bf16.msra.mxu0 0
        %2477 = vmatprep.subr.bf16.mxu0 0
        %2478 = vmatpush1.bf16.msra.mxu0 0
        %2479 = vmatprep.subr.bf16.mxu0 0
        %2480 = vmatpush1.bf16.msra.mxu0 0
        %2481 = vmatprep.subr.bf16.mxu0 0
        %2482 = vmatpush1.bf16.msra.mxu0 %v2440
        %2483 = vmatprep.subr.bf16.mxu0 0
        %2484 = vmatpush1.bf16.msra.mxu0 %v2439
        %2485 = vmatprep.subr.bf16.mxu0 0
        %2486 = vmatpush1.bf16.msra.mxu0 %v2438
        %2487 = vmatprep.subr.bf16.mxu0 0
        %2488 = vmatpush1.bf16.msra.mxu0 %v2437
        %2489 = vmatprep.subr.bf16.mxu0 0
        %2490 = vmatpush2.bf16.msra.mxu0 0
        %2491 = vmatprep.subr.bf16.mxu0 0
        %2492 = vmatpush2.bf16.msra.mxu0 0
        %2493 = vmatprep.subr.bf16.mxu0 0
        %2494 = vmatpush2.bf16.msra.mxu0 0
        %2495 = vmatprep.subr.bf16.mxu0 0
        %2496 = vmatpush2.bf16.msra.mxu0 0
        %2497 = vmatprep.subr.bf16.mxu0 0
        %2498 = vmatpush2.bf16.msra.mxu0 0
        %2499 = vmatprep.subr.bf16.mxu0 0
        %2500 = vmatpush2.bf16.msra.mxu0 0
        %2501 = vmatprep.subr.bf16.mxu0 0
        %2502 = vmatpush2.bf16.msra.mxu0 0
        %2503 = vmatprep.subr.bf16.mxu0 0
        %2504 = vmatpush2.bf16.msra.mxu0 0
        %2505 = vmatprep.mubr.bf16.mxu0 0
        %2506 = vmatmul.mubr.bf16.gmra.mxu0 %v2462
        %v2507 = vpop.f32.mrf.mxu0
        %v2508 = vadd.f32 0.0, %v2507
        %v2509 = vpop.f32.mrf.mxu0
        %v2510 = vpop.f32.mrf.mxu0
        %v2511 = vadd.f32 0.0, %v2510
        %v2512 = vpop.f32.mrf.mxu0
        %2513 = vmatprep.mubr.bf16.mxu0 0
        %2514 = vmatmul.mubr.bf16.gmra.mxu0 %v2465
        %v2515 = vpop.f32.mrf.mxu0
        %v2516 = vadd.f32 0.0, %v2515
        %v2517 = vpop.f32.mrf.mxu0
        %v2518 = vpop.f32.mrf.mxu0
        %v2519 = vadd.f32 0.0, %v2518
        %v2520 = vpop.f32.mrf.mxu0
        %2521 = vmatprep.mubr.bf16.mxu0 0
        %2522 = vmatmul.mubr.bf16.gmra.mxu0 %v2468
        %v2523 = vpop.f32.mrf.mxu0
        %v2524 = vadd.f32 0.0, %v2523
        %v2525 = vpop.f32.mrf.mxu0
        %v2526 = vpop.f32.mrf.mxu0
        %v2527 = vadd.f32 0.0, %v2526
        %v2528 = vpop.f32.mrf.mxu0
        %2529 = vmatprep.mubr.bf16.mxu0 0
        %2530 = vmatmul.mubr.bf16.gmra.mxu0 %v2471
        %v2531 = vpop.f32.mrf.mxu0
        %v2532 = vadd.f32 0.0, %v2531
        %v2533 = vpop.f32.mrf.mxu0
        %v2534 = vpop.f32.mrf.mxu0
        %v2535 = vadd.f32 0.0, %v2534
        %v2536 = vpop.f32.mrf.mxu0
        %2537 = vdwg.mxu0
        %v2538 = vadd.f32 %v2390, %v2508
        %v2539 = vadd.f32 %v2391, %v2511
        %v2540 = vadd.f32 %v2392, %v2516
        %v2541 = vadd.f32 %v2393, %v2519
        %v2542 = vadd.f32 %v2394, %v2524
        %v2543 = vadd.f32 %v2395, %v2527
        %v2544 = vadd.f32 %v2396, %v2532
        %v2545 = vadd.f32 %v2397, %v2535
        %v2547 = vlaneseq
        %v2548 = vshrl.u32 %v2547, 7
        %v2549 = vsub.s32 0, %v2548
        %v2550 = vrot.slane %v1965, %v2549
        %v2552 = vmul.f32 %v1953, %v2550
        %v2553 = vmul.f32 %v1954, %v2550
        %v2554 = vmul.f32 %v1955, %v2550
        %v2555 = vmul.f32 %v1956, %v2550
        %v2556 = vmul.f32 %v1957, %v2550
        %v2557 = vmul.f32 %v1958, %v2550
        %v2558 = vmul.f32 %v1959, %v2550
        %v2559 = vmul.f32 %v1960, %v2550
        %s2560 = scalar_lea.vmem %s633, 128 [#allocation20]
        %v2561 = vld [vmem:[%s2560] sm:$0xf]
        %v2562 = vld [vmem:[%s2560 + $0x4] sm:$0xf]
        %v2563 = vld [vmem:[%s2560 + $0x8] sm:$0xf]
        %v2564 = vld [vmem:[%s2560 + $0xc] sm:$0xf]
        %v2565 = vld [vmem:[%s2560 + $0x10] sm:$0xf]
        %v2566 = vld [vmem:[%s2560 + $0x14] sm:$0xf]
        %v2567 = vld [vmem:[%s2560 + $0x18] sm:$0xf]
        %v2568 = vld [vmem:[%s2560 + $0x1c] sm:$0xf]
        %v2569 = vpack.c.bf16 %v2553, %v2552
        %v2570 = vpack.c.bf16 %v2555, %v2554
        %v2571 = vpack.c.bf16 %v2557, %v2556
        %v2572 = vpack.c.bf16 %v2559, %v2558
        %v2581 = vunpack.c.l.b16 %v2561
        %v2582 = vunpack.c.l.b16 %v2562
        %v2583 = vunpack.c.l.b16 %v2563
        %v2584 = vunpack.c.l.b16 %v2564
        %v2585 = vunpack.c.l.b16 %v2565
        %v2586 = vunpack.c.l.b16 %v2566
        %v2587 = vunpack.c.l.b16 %v2567
        %v2588 = vunpack.c.l.b16 %v2568
        %v2589 = vpack.c.b16 %v2582, %v2581
        %v2590 = vpack.c.b16 %v2584, %v2583
        %v2591 = vpack.c.b16 %v2586, %v2585
        %v2592 = vpack.c.b16 %v2588, %v2587
        %v2594 = vsel %vm2075, %v2589, 0
        %v2597 = vsel %vm2075, %v2590, 0
        %v2600 = vsel %vm2075, %v2591, 0
        %v2603 = vsel %vm2075, %v2592, 0
        %2605 = vmatprep.subr.bf16.mxu0 0
        %2606 = vmatpush1.bf16.msra.mxu0 0
        %2607 = vmatprep.subr.bf16.mxu0 0
        %2608 = vmatpush1.bf16.msra.mxu0 0
        %2609 = vmatprep.subr.bf16.mxu0 0
        %2610 = vmatpush1.bf16.msra.mxu0 0
        %2611 = vmatprep.subr.bf16.mxu0 0
        %2612 = vmatpush1.bf16.msra.mxu0 0
        %2613 = vmatprep.subr.bf16.mxu0 0
        %2614 = vmatpush1.bf16.msra.mxu0 %v2572
        %2615 = vmatprep.subr.bf16.mxu0 0
        %2616 = vmatpush1.bf16.msra.mxu0 %v2571
        %2617 = vmatprep.subr.bf16.mxu0 0
        %2618 = vmatpush1.bf16.msra.mxu0 %v2570
        %2619 = vmatprep.subr.bf16.mxu0 0
        %2620 = vmatpush1.bf16.msra.mxu0 %v2569
        %2621 = vmatprep.subr.bf16.mxu0 0
        %2622 = vmatpush2.bf16.msra.mxu0 0
        %2623 = vmatprep.subr.bf16.mxu0 0
        %2624 = vmatpush2.bf16.msra.mxu0 0
        %2625 = vmatprep.subr.bf16.mxu0 0
        %2626 = vmatpush2.bf16.msra.mxu0 0
        %2627 = vmatprep.subr.bf16.mxu0 0
        %2628 = vmatpush2.bf16.msra.mxu0 0
        %2629 = vmatprep.subr.bf16.mxu0 0
        %2630 = vmatpush2.bf16.msra.mxu0 0
        %2631 = vmatprep.subr.bf16.mxu0 0
        %2632 = vmatpush2.bf16.msra.mxu0 0
        %2633 = vmatprep.subr.bf16.mxu0 0
        %2634 = vmatpush2.bf16.msra.mxu0 0
        %2635 = vmatprep.subr.bf16.mxu0 0
        %2636 = vmatpush2.bf16.msra.mxu0 0
        %2637 = vmatprep.mubr.bf16.mxu0 0
        %2638 = vmatmul.mubr.bf16.gmra.mxu0 %v2594
        %v2639 = vpop.f32.mrf.mxu0
        %v2640 = vadd.f32 0.0, %v2639
        %v2641 = vpop.f32.mrf.mxu0
        %v2642 = vpop.f32.mrf.mxu0
        %v2643 = vadd.f32 0.0, %v2642
        %v2644 = vpop.f32.mrf.mxu0
        %2645 = vmatprep.mubr.bf16.mxu0 0
        %2646 = vmatmul.mubr.bf16.gmra.mxu0 %v2597
        %v2647 = vpop.f32.mrf.mxu0
        %v2648 = vadd.f32 0.0, %v2647
        %v2649 = vpop.f32.mrf.mxu0
        %v2650 = vpop.f32.mrf.mxu0
        %v2651 = vadd.f32 0.0, %v2650
        %v2652 = vpop.f32.mrf.mxu0
        %2653 = vmatprep.mubr.bf16.mxu0 0
        %2654 = vmatmul.mubr.bf16.gmra.mxu0 %v2600
        %v2655 = vpop.f32.mrf.mxu0
        %v2656 = vadd.f32 0.0, %v2655
        %v2657 = vpop.f32.mrf.mxu0
        %v2658 = vpop.f32.mrf.mxu0
        %v2659 = vadd.f32 0.0, %v2658
        %v2660 = vpop.f32.mrf.mxu0
        %2661 = vmatprep.mubr.bf16.mxu0 0
        %2662 = vmatmul.mubr.bf16.gmra.mxu0 %v2603
        %v2663 = vpop.f32.mrf.mxu0
        %v2664 = vadd.f32 0.0, %v2663
        %v2665 = vpop.f32.mrf.mxu0
        %v2666 = vpop.f32.mrf.mxu0
        %v2667 = vadd.f32 0.0, %v2666
        %v2668 = vpop.f32.mrf.mxu0
        %2669 = vdwg.mxu0
        %v2670 = vadd.f32 %v2538, %v2640
        %v2671 = vadd.f32 %v2539, %v2643
        %v2672 = vadd.f32 %v2540, %v2648
        %v2673 = vadd.f32 %v2541, %v2651
        %v2674 = vadd.f32 %v2542, %v2656
        %v2675 = vadd.f32 %v2543, %v2659
        %v2676 = vadd.f32 %v2544, %v2664
        %v2677 = vadd.f32 %v2545, %v2667
        %2678 = vrot.lane.b32.xlu0 %v1953, 127
        %v2679 = vpop.permute.xlu0 %2678
        %2680 = vrot.lane.b32.xlu0 %v1954, 127
        %v2681 = vpop.permute.xlu0 %2680
        %2682 = vrot.lane.b32.xlu0 %v1955, 127
        %v2683 = vpop.permute.xlu0 %2682
        %2684 = vrot.lane.b32.xlu0 %v1956, 127
        %v2685 = vpop.permute.xlu0 %2684
        %2686 = vrot.lane.b32.xlu0 %v1957, 127
        %v2687 = vpop.permute.xlu0 %2686
        %2688 = vrot.lane.b32.xlu0 %v1958, 127
        %v2689 = vpop.permute.xlu0 %2688
        %2690 = vrot.lane.b32.xlu0 %v1959, 127
        %v2691 = vpop.permute.xlu0 %2690
        %2692 = vrot.lane.b32.xlu0 %v1960, 127
        %v2693 = vpop.permute.xlu0 %2692
        %v2695 = vlaneseq
        %v2696 = vshrl.u32 %v2695, 7
        %v2697 = vsub.s32 0, %v2696
        %v2698 = vrot.slane %v1966, %v2697
        %v2700 = vmul.f32 %v2679, %v2698
        %v2701 = vmul.f32 %v2681, %v2698
        %v2702 = vmul.f32 %v2683, %v2698
        %v2703 = vmul.f32 %v2685, %v2698
        %v2704 = vmul.f32 %v2687, %v2698
        %v2705 = vmul.f32 %v2689, %v2698
        %v2706 = vmul.f32 %v2691, %v2698
        %v2707 = vmul.f32 %v2693, %v2698
        %s2708 = scalar_lea.vmem %s633, 160 [#allocation20]
        %v2709 = vld [vmem:[%s2708] sm:$0xf]
        %v2710 = vld [vmem:[%s2708 + $0x4] sm:$0xf]
        %v2711 = vld [vmem:[%s2708 + $0x8] sm:$0xf]
        %v2712 = vld [vmem:[%s2708 + $0xc] sm:$0xf]
        %v2713 = vld [vmem:[%s2708 + $0x10] sm:$0xf]
        %v2714 = vld [vmem:[%s2708 + $0x14] sm:$0xf]
        %v2715 = vld [vmem:[%s2708 + $0x18] sm:$0xf]
        %v2716 = vld [vmem:[%s2708 + $0x1c] sm:$0xf]
        %v2717 = vpack.c.bf16 %v2701, %v2700
        %v2718 = vpack.c.bf16 %v2703, %v2702
        %v2719 = vpack.c.bf16 %v2705, %v2704
        %v2720 = vpack.c.bf16 %v2707, %v2706
        %v2729 = vunpack.c.l.b16 %v2709
        %v2730 = vunpack.c.l.b16 %v2710
        %v2731 = vunpack.c.l.b16 %v2711
        %v2732 = vunpack.c.l.b16 %v2712
        %v2733 = vunpack.c.l.b16 %v2713
        %v2734 = vunpack.c.l.b16 %v2714
        %v2735 = vunpack.c.l.b16 %v2715
        %v2736 = vunpack.c.l.b16 %v2716
        %v2737 = vpack.c.b16 %v2730, %v2729
        %v2738 = vpack.c.b16 %v2732, %v2731
        %v2739 = vpack.c.b16 %v2734, %v2733
        %v2740 = vpack.c.b16 %v2736, %v2735
        %v2742 = vsel %vm2075, %v2737, 0
        %v2745 = vsel %vm2075, %v2738, 0
        %v2748 = vsel %vm2075, %v2739, 0
        %v2751 = vsel %vm2075, %v2740, 0
        %2753 = vmatprep.subr.bf16.mxu0 0
        %2754 = vmatpush1.bf16.msra.mxu0 0
        %2755 = vmatprep.subr.bf16.mxu0 0
        %2756 = vmatpush1.bf16.msra.mxu0 0
        %2757 = vmatprep.subr.bf16.mxu0 0
        %2758 = vmatpush1.bf16.msra.mxu0 0
        %2759 = vmatprep.subr.bf16.mxu0 0
        %2760 = vmatpush1.bf16.msra.mxu0 0
        %2761 = vmatprep.subr.bf16.mxu0 0
        %2762 = vmatpush1.bf16.msra.mxu0 %v2720
        %2763 = vmatprep.subr.bf16.mxu0 0
        %2764 = vmatpush1.bf16.msra.mxu0 %v2719
        %2765 = vmatprep.subr.bf16.mxu0 0
        %2766 = vmatpush1.bf16.msra.mxu0 %v2718
        %2767 = vmatprep.subr.bf16.mxu0 0
        %2768 = vmatpush1.bf16.msra.mxu0 %v2717
        %2769 = vmatprep.subr.bf16.mxu0 0
        %2770 = vmatpush2.bf16.msra.mxu0 0
        %2771 = vmatprep.subr.bf16.mxu0 0
        %2772 = vmatpush2.bf16.msra.mxu0 0
        %2773 = vmatprep.subr.bf16.mxu0 0
        %2774 = vmatpush2.bf16.msra.mxu0 0
        %2775 = vmatprep.subr.bf16.mxu0 0
        %2776 = vmatpush2.bf16.msra.mxu0 0
        %2777 = vmatprep.subr.bf16.mxu0 0
        %2778 = vmatpush2.bf16.msra.mxu0 0
        %2779 = vmatprep.subr.bf16.mxu0 0
        %2780 = vmatpush2.bf16.msra.mxu0 0
        %2781 = vmatprep.subr.bf16.mxu0 0
        %2782 = vmatpush2.bf16.msra.mxu0 0
        %2783 = vmatprep.subr.bf16.mxu0 0
        %2784 = vmatpush2.bf16.msra.mxu0 0
        %2785 = vmatprep.mubr.bf16.mxu0 0
        %2786 = vmatmul.mubr.bf16.gmra.mxu0 %v2742
        %v2787 = vpop.f32.mrf.mxu0
        %v2788 = vadd.f32 0.0, %v2787
        %v2789 = vpop.f32.mrf.mxu0
        %v2790 = vpop.f32.mrf.mxu0
        %v2791 = vadd.f32 0.0, %v2790
        %v2792 = vpop.f32.mrf.mxu0
        %2793 = vmatprep.mubr.bf16.mxu0 0
        %2794 = vmatmul.mubr.bf16.gmra.mxu0 %v2745
        %v2795 = vpop.f32.mrf.mxu0
        %v2796 = vadd.f32 0.0, %v2795
        %v2797 = vpop.f32.mrf.mxu0
        %v2798 = vpop.f32.mrf.mxu0
        %v2799 = vadd.f32 0.0, %v2798
        %v2800 = vpop.f32.mrf.mxu0
        %2801 = vmatprep.mubr.bf16.mxu0 0
        %2802 = vmatmul.mubr.bf16.gmra.mxu0 %v2748
        %v2803 = vpop.f32.mrf.mxu0
        %v2804 = vadd.f32 0.0, %v2803
        %v2805 = vpop.f32.mrf.mxu0
        %v2806 = vpop.f32.mrf.mxu0
        %v2807 = vadd.f32 0.0, %v2806
        %v2808 = vpop.f32.mrf.mxu0
        %2809 = vmatprep.mubr.bf16.mxu0 0
        %2810 = vmatmul.mubr.bf16.gmra.mxu0 %v2751
        %v2811 = vpop.f32.mrf.mxu0
        %v2812 = vadd.f32 0.0, %v2811
        %v2813 = vpop.f32.mrf.mxu0
        %v2814 = vpop.f32.mrf.mxu0
        %v2815 = vadd.f32 0.0, %v2814
        %v2816 = vpop.f32.mrf.mxu0
        %2817 = vdwg.mxu0
        %v2818 = vadd.f32 %v2670, %v2788
        %v2819 = vadd.f32 %v2671, %v2791
        %v2820 = vadd.f32 %v2672, %v2796
        %v2821 = vadd.f32 %v2673, %v2799
        %v2822 = vadd.f32 %v2674, %v2804
        %v2823 = vadd.f32 %v2675, %v2807
        %v2824 = vadd.f32 %v2676, %v2812
        %v2825 = vadd.f32 %v2677, %v2815
        %2826 = vrot.lane.b32.xlu0 %v1953, 120
        %v2827 = vpop.permute.xlu0 %2826
        %2828 = vrot.lane.b32.xlu0 %v1954, 120
        %v2829 = vpop.permute.xlu0 %2828
        %2830 = vrot.lane.b32.xlu0 %v1955, 120
        %v2831 = vpop.permute.xlu0 %2830
        %2832 = vrot.lane.b32.xlu0 %v1956, 120
        %v2833 = vpop.permute.xlu0 %2832
        %2834 = vrot.lane.b32.xlu0 %v1957, 120
        %v2835 = vpop.permute.xlu0 %2834
        %2836 = vrot.lane.b32.xlu0 %v1958, 120
        %v2837 = vpop.permute.xlu0 %2836
        %2838 = vrot.lane.b32.xlu0 %v1959, 120
        %v2839 = vpop.permute.xlu0 %2838
        %2840 = vrot.lane.b32.xlu0 %v1960, 120
        %v2841 = vpop.permute.xlu0 %2840
        %v2843 = vlaneseq
        %v2844 = vshrl.u32 %v2843, 7
        %v2845 = vsub.s32 0, %v2844
        %v2846 = vrot.slane %v1967, %v2845
        %v2848 = vmul.f32 %v2827, %v2846
        %v2849 = vmul.f32 %v2829, %v2846
        %v2850 = vmul.f32 %v2831, %v2846
        %v2851 = vmul.f32 %v2833, %v2846
        %v2852 = vmul.f32 %v2835, %v2846
        %v2853 = vmul.f32 %v2837, %v2846
        %v2854 = vmul.f32 %v2839, %v2846
        %v2855 = vmul.f32 %v2841, %v2846
        %s2856 = scalar_lea.vmem %s633, 192 [#allocation20]
        %v2857 = vld [vmem:[%s2856] sm:$0xf]
        %v2858 = vld [vmem:[%s2856 + $0x4] sm:$0xf]
        %v2859 = vld [vmem:[%s2856 + $0x8] sm:$0xf]
        %v2860 = vld [vmem:[%s2856 + $0xc] sm:$0xf]
        %v2861 = vld [vmem:[%s2856 + $0x10] sm:$0xf]
        %v2862 = vld [vmem:[%s2856 + $0x14] sm:$0xf]
        %v2863 = vld [vmem:[%s2856 + $0x18] sm:$0xf]
        %v2864 = vld [vmem:[%s2856 + $0x1c] sm:$0xf]
        %v2865 = vpack.c.bf16 %v2849, %v2848
        %v2866 = vpack.c.bf16 %v2851, %v2850
        %v2867 = vpack.c.bf16 %v2853, %v2852
        %v2868 = vpack.c.bf16 %v2855, %v2854
        %v2877 = vunpack.c.l.b16 %v2857
        %v2878 = vunpack.c.l.b16 %v2858
        %v2879 = vunpack.c.l.b16 %v2859
        %v2880 = vunpack.c.l.b16 %v2860
        %v2881 = vunpack.c.l.b16 %v2861
        %v2882 = vunpack.c.l.b16 %v2862
        %v2883 = vunpack.c.l.b16 %v2863
        %v2884 = vunpack.c.l.b16 %v2864
        %v2885 = vpack.c.b16 %v2878, %v2877
        %v2886 = vpack.c.b16 %v2880, %v2879
        %v2887 = vpack.c.b16 %v2882, %v2881
        %v2888 = vpack.c.b16 %v2884, %v2883
        %v2890 = vsel %vm2075, %v2885, 0
        %v2893 = vsel %vm2075, %v2886, 0
        %v2896 = vsel %vm2075, %v2887, 0
        %v2899 = vsel %vm2075, %v2888, 0
        %2901 = vmatprep.subr.bf16.mxu0 0
        %2902 = vmatpush1.bf16.msra.mxu0 0
        %2903 = vmatprep.subr.bf16.mxu0 0
        %2904 = vmatpush1.bf16.msra.mxu0 0
        %2905 = vmatprep.subr.bf16.mxu0 0
        %2906 = vmatpush1.bf16.msra.mxu0 0
        %2907 = vmatprep.subr.bf16.mxu0 0
        %2908 = vmatpush1.bf16.msra.mxu0 0
        %2909 = vmatprep.subr.bf16.mxu0 0
        %2910 = vmatpush1.bf16.msra.mxu0 %v2868
        %2911 = vmatprep.subr.bf16.mxu0 0
        %2912 = vmatpush1.bf16.msra.mxu0 %v2867
        %2913 = vmatprep.subr.bf16.mxu0 0
        %2914 = vmatpush1.bf16.msra.mxu0 %v2866
        %2915 = vmatprep.subr.bf16.mxu0 0
        %2916 = vmatpush1.bf16.msra.mxu0 %v2865
        %2917 = vmatprep.subr.bf16.mxu0 0
        %2918 = vmatpush2.bf16.msra.mxu0 0
        %2919 = vmatprep.subr.bf16.mxu0 0
        %2920 = vmatpush2.bf16.msra.mxu0 0
        %2921 = vmatprep.subr.bf16.mxu0 0
        %2922 = vmatpush2.bf16.msra.mxu0 0
        %2923 = vmatprep.subr.bf16.mxu0 0
        %2924 = vmatpush2.bf16.msra.mxu0 0
        %2925 = vmatprep.subr.bf16.mxu0 0
        %2926 = vmatpush2.bf16.msra.mxu0 0
        %2927 = vmatprep.subr.bf16.mxu0 0
        %2928 = vmatpush2.bf16.msra.mxu0 0
        %2929 = vmatprep.subr.bf16.mxu0 0
        %2930 = vmatpush2.bf16.msra.mxu0 0
        %2931 = vmatprep.subr.bf16.mxu0 0
        %2932 = vmatpush2.bf16.msra.mxu0 0
        %2933 = vmatprep.mubr.bf16.mxu0 0
        %2934 = vmatmul.mubr.bf16.gmra.mxu0 %v2890
        %v2935 = vpop.f32.mrf.mxu0
        %v2936 = vadd.f32 0.0, %v2935
        %v2937 = vpop.f32.mrf.mxu0
        %v2938 = vpop.f32.mrf.mxu0
        %v2939 = vadd.f32 0.0, %v2938
        %v2940 = vpop.f32.mrf.mxu0
        %2941 = vmatprep.mubr.bf16.mxu0 0
        %2942 = vmatmul.mubr.bf16.gmra.mxu0 %v2893
        %v2943 = vpop.f32.mrf.mxu0
        %v2944 = vadd.f32 0.0, %v2943
        %v2945 = vpop.f32.mrf.mxu0
        %v2946 = vpop.f32.mrf.mxu0
        %v2947 = vadd.f32 0.0, %v2946
        %v2948 = vpop.f32.mrf.mxu0
        %2949 = vmatprep.mubr.bf16.mxu0 0
        %2950 = vmatmul.mubr.bf16.gmra.mxu0 %v2896
        %v2951 = vpop.f32.mrf.mxu0
        %v2952 = vadd.f32 0.0, %v2951
        %v2953 = vpop.f32.mrf.mxu0
        %v2954 = vpop.f32.mrf.mxu0
        %v2955 = vadd.f32 0.0, %v2954
        %v2956 = vpop.f32.mrf.mxu0
        %2957 = vmatprep.mubr.bf16.mxu0 0
        %2958 = vmatmul.mubr.bf16.gmra.mxu0 %v2899
        %v2959 = vpop.f32.mrf.mxu0
        %v2960 = vadd.f32 0.0, %v2959
        %v2961 = vpop.f32.mrf.mxu0
        %v2962 = vpop.f32.mrf.mxu0
        %v2963 = vadd.f32 0.0, %v2962
        %v2964 = vpop.f32.mrf.mxu0
        %2965 = vdwg.mxu0
        %v2966 = vadd.f32 %v2818, %v2936
        %v2967 = vadd.f32 %v2819, %v2939
        %v2968 = vadd.f32 %v2820, %v2944
        %v2969 = vadd.f32 %v2821, %v2947
        %v2970 = vadd.f32 %v2822, %v2952
        %v2971 = vadd.f32 %v2823, %v2955
        %v2972 = vadd.f32 %v2824, %v2960
        %v2973 = vadd.f32 %v2825, %v2963
        %2974 = vrot.lane.b32.xlu0 %v1953, 119
        %v2975 = vpop.permute.xlu0 %2974
        %2976 = vrot.lane.b32.xlu0 %v1954, 119
        %v2977 = vpop.permute.xlu0 %2976
        %2978 = vrot.lane.b32.xlu0 %v1955, 119
        %v2979 = vpop.permute.xlu0 %2978
        %2980 = vrot.lane.b32.xlu0 %v1956, 119
        %v2981 = vpop.permute.xlu0 %2980
        %2982 = vrot.lane.b32.xlu0 %v1957, 119
        %v2983 = vpop.permute.xlu0 %2982
        %2984 = vrot.lane.b32.xlu0 %v1958, 119
        %v2985 = vpop.permute.xlu0 %2984
        %2986 = vrot.lane.b32.xlu0 %v1959, 119
        %v2987 = vpop.permute.xlu0 %2986
        %2988 = vrot.lane.b32.xlu0 %v1960, 119
        %v2989 = vpop.permute.xlu0 %2988
        %v2991 = vlaneseq
        %v2992 = vshrl.u32 %v2991, 7
        %v2993 = vsub.s32 0, %v2992
        %v2994 = vrot.slane %v1968, %v2993
        %v2996 = vmul.f32 %v2975, %v2994
        %v2997 = vmul.f32 %v2977, %v2994
        %v2998 = vmul.f32 %v2979, %v2994
        %v2999 = vmul.f32 %v2981, %v2994
        %v3000 = vmul.f32 %v2983, %v2994
        %v3001 = vmul.f32 %v2985, %v2994
        %v3002 = vmul.f32 %v2987, %v2994
        %v3003 = vmul.f32 %v2989, %v2994
        %s3004 = scalar_lea.vmem %s633, 224 [#allocation20]
        %v3005 = vld [vmem:[%s3004] sm:$0xf]
        %v3006 = vld [vmem:[%s3004 + $0x4] sm:$0xf]
        %v3007 = vld [vmem:[%s3004 + $0x8] sm:$0xf]
        %v3008 = vld [vmem:[%s3004 + $0xc] sm:$0xf]
        %v3009 = vld [vmem:[%s3004 + $0x10] sm:$0xf]
        %v3010 = vld [vmem:[%s3004 + $0x14] sm:$0xf]
        %v3011 = vld [vmem:[%s3004 + $0x18] sm:$0xf]
        %v3012 = vld [vmem:[%s3004 + $0x1c] sm:$0xf]
        %v3013 = vpack.c.bf16 %v2997, %v2996
        %v3014 = vpack.c.bf16 %v2999, %v2998
        %v3015 = vpack.c.bf16 %v3001, %v3000
        %v3016 = vpack.c.bf16 %v3003, %v3002
        %v3025 = vunpack.c.l.b16 %v3005
        %v3026 = vunpack.c.l.b16 %v3006
        %v3027 = vunpack.c.l.b16 %v3007
        %v3028 = vunpack.c.l.b16 %v3008
        %v3029 = vunpack.c.l.b16 %v3009
        %v3030 = vunpack.c.l.b16 %v3010
        %v3031 = vunpack.c.l.b16 %v3011
        %v3032 = vunpack.c.l.b16 %v3012
        %v3033 = vpack.c.b16 %v3026, %v3025
        %v3034 = vpack.c.b16 %v3028, %v3027
        %v3035 = vpack.c.b16 %v3030, %v3029
        %v3036 = vpack.c.b16 %v3032, %v3031
        %v3038 = vsel %vm2075, %v3033, 0
        %v3041 = vsel %vm2075, %v3034, 0
        %v3044 = vsel %vm2075, %v3035, 0
        %v3047 = vsel %vm2075, %v3036, 0
        %3049 = vmatprep.subr.bf16.mxu0 0
        %3050 = vmatpush1.bf16.msra.mxu0 0
        %3051 = vmatprep.subr.bf16.mxu0 0
        %3052 = vmatpush1.bf16.msra.mxu0 0
        %3053 = vmatprep.subr.bf16.mxu0 0
        %3054 = vmatpush1.bf16.msra.mxu0 0
        %3055 = vmatprep.subr.bf16.mxu0 0
        %3056 = vmatpush1.bf16.msra.mxu0 0
        %3057 = vmatprep.subr.bf16.mxu0 0
        %3058 = vmatpush1.bf16.msra.mxu0 %v3016
        %3059 = vmatprep.subr.bf16.mxu0 0
        %3060 = vmatpush1.bf16.msra.mxu0 %v3015
        %3061 = vmatprep.subr.bf16.mxu0 0
        %3062 = vmatpush1.bf16.msra.mxu0 %v3014
        %3063 = vmatprep.subr.bf16.mxu0 0
        %3064 = vmatpush1.bf16.msra.mxu0 %v3013
        %3065 = vmatprep.subr.bf16.mxu0 0
        %3066 = vmatpush2.bf16.msra.mxu0 0
        %3067 = vmatprep.subr.bf16.mxu0 0
        %3068 = vmatpush2.bf16.msra.mxu0 0
        %3069 = vmatprep.subr.bf16.mxu0 0
        %3070 = vmatpush2.bf16.msra.mxu0 0
        %3071 = vmatprep.subr.bf16.mxu0 0
        %3072 = vmatpush2.bf16.msra.mxu0 0
        %3073 = vmatprep.subr.bf16.mxu0 0
        %3074 = vmatpush2.bf16.msra.mxu0 0
        %3075 = vmatprep.subr.bf16.mxu0 0
        %3076 = vmatpush2.bf16.msra.mxu0 0
        %3077 = vmatprep.subr.bf16.mxu0 0
        %3078 = vmatpush2.bf16.msra.mxu0 0
        %3079 = vmatprep.subr.bf16.mxu0 0
        %3080 = vmatpush2.bf16.msra.mxu0 0
        %3081 = vmatprep.mubr.bf16.mxu0 0
        %3082 = vmatmul.mubr.bf16.gmra.mxu0 %v3038
        %v3083 = vpop.f32.mrf.mxu0
        %v3084 = vadd.f32 0.0, %v3083
        %v3085 = vpop.f32.mrf.mxu0
        %v3086 = vpop.f32.mrf.mxu0
        %v3087 = vadd.f32 0.0, %v3086
        %v3088 = vpop.f32.mrf.mxu0
        %3089 = vmatprep.mubr.bf16.mxu0 0
        %3090 = vmatmul.mubr.bf16.gmra.mxu0 %v3041
        %v3091 = vpop.f32.mrf.mxu0
        %v3092 = vadd.f32 0.0, %v3091
        %v3093 = vpop.f32.mrf.mxu0
        %v3094 = vpop.f32.mrf.mxu0
        %v3095 = vadd.f32 0.0, %v3094
        %v3096 = vpop.f32.mrf.mxu0
        %3097 = vmatprep.mubr.bf16.mxu0 0
        %3098 = vmatmul.mubr.bf16.gmra.mxu0 %v3044
        %v3099 = vpop.f32.mrf.mxu0
        %v3100 = vadd.f32 0.0, %v3099
        %v3101 = vpop.f32.mrf.mxu0
        %v3102 = vpop.f32.mrf.mxu0
        %v3103 = vadd.f32 0.0, %v3102
        %v3104 = vpop.f32.mrf.mxu0
        %3105 = vmatprep.mubr.bf16.mxu0 0
        %3106 = vmatmul.mubr.bf16.gmra.mxu0 %v3047
        %v3107 = vpop.f32.mrf.mxu0
        %v3108 = vadd.f32 0.0, %v3107
        %v3109 = vpop.f32.mrf.mxu0
        %v3110 = vpop.f32.mrf.mxu0
        %v3111 = vadd.f32 0.0, %v3110
        %v3112 = vpop.f32.mrf.mxu0
        %3113 = vdwg.mxu0
        %v3114 = vadd.f32 %v2966, %v3084
        %v3115 = vadd.f32 %v2967, %v3087
        %v3116 = vadd.f32 %v2968, %v3092
        %v3117 = vadd.f32 %v2969, %v3095
        %v3118 = vadd.f32 %v2970, %v3100
        %v3119 = vadd.f32 %v2971, %v3103
        %v3120 = vadd.f32 %v2972, %v3108
        %v3121 = vadd.f32 %v2973, %v3111
        %3122 = vrot.lane.b32.xlu0 %v1953, 118
        %v3123 = vpop.permute.xlu0 %3122
        %3124 = vrot.lane.b32.xlu0 %v1954, 118
        %v3125 = vpop.permute.xlu0 %3124
        %3126 = vrot.lane.b32.xlu0 %v1955, 118
        %v3127 = vpop.permute.xlu0 %3126
        %3128 = vrot.lane.b32.xlu0 %v1956, 118
        %v3129 = vpop.permute.xlu0 %3128
        %3130 = vrot.lane.b32.xlu0 %v1957, 118
        %v3131 = vpop.permute.xlu0 %3130
        %3132 = vrot.lane.b32.xlu0 %v1958, 118
        %v3133 = vpop.permute.xlu0 %3132
        %3134 = vrot.lane.b32.xlu0 %v1959, 118
        %v3135 = vpop.permute.xlu0 %3134
        %3136 = vrot.lane.b32.xlu0 %v1960, 118
        %v3137 = vpop.permute.xlu0 %3136
        %v3139 = vlaneseq
        %v3140 = vshrl.u32 %v3139, 7
        %v3141 = vsub.s32 0, %v3140
        %v3142 = vrot.slane %v1969, %v3141
        %v3144 = vmul.f32 %v3123, %v3142
        %v3145 = vmul.f32 %v3125, %v3142
        %v3146 = vmul.f32 %v3127, %v3142
        %v3147 = vmul.f32 %v3129, %v3142
        %v3148 = vmul.f32 %v3131, %v3142
        %v3149 = vmul.f32 %v3133, %v3142
        %v3150 = vmul.f32 %v3135, %v3142
        %v3151 = vmul.f32 %v3137, %v3142
        %s3152 = scalar_lea.vmem %s633, 256 [#allocation20]
        %v3153 = vld [vmem:[%s3152] sm:$0xf]
        %v3154 = vld [vmem:[%s3152 + $0x4] sm:$0xf]
        %v3155 = vld [vmem:[%s3152 + $0x8] sm:$0xf]
        %v3156 = vld [vmem:[%s3152 + $0xc] sm:$0xf]
        %v3157 = vld [vmem:[%s3152 + $0x10] sm:$0xf]
        %v3158 = vld [vmem:[%s3152 + $0x14] sm:$0xf]
        %v3159 = vld [vmem:[%s3152 + $0x18] sm:$0xf]
        %v3160 = vld [vmem:[%s3152 + $0x1c] sm:$0xf]
        %v3161 = vpack.c.bf16 %v3145, %v3144
        %v3162 = vpack.c.bf16 %v3147, %v3146
        %v3163 = vpack.c.bf16 %v3149, %v3148
        %v3164 = vpack.c.bf16 %v3151, %v3150
        %v3173 = vunpack.c.l.b16 %v3153
        %v3174 = vunpack.c.l.b16 %v3154
        %v3175 = vunpack.c.l.b16 %v3155
        %v3176 = vunpack.c.l.b16 %v3156
        %v3177 = vunpack.c.l.b16 %v3157
        %v3178 = vunpack.c.l.b16 %v3158
        %v3179 = vunpack.c.l.b16 %v3159
        %v3180 = vunpack.c.l.b16 %v3160
        %v3181 = vpack.c.b16 %v3174, %v3173
        %v3182 = vpack.c.b16 %v3176, %v3175
        %v3183 = vpack.c.b16 %v3178, %v3177
        %v3184 = vpack.c.b16 %v3180, %v3179
        %v3186 = vsel %vm2075, %v3181, 0
        %v3189 = vsel %vm2075, %v3182, 0
        %v3192 = vsel %vm2075, %v3183, 0
        %v3195 = vsel %vm2075, %v3184, 0
        %3197 = vmatprep.subr.bf16.mxu0 0
        %3198 = vmatpush1.bf16.msra.mxu0 0
        %3199 = vmatprep.subr.bf16.mxu0 0
        %3200 = vmatpush1.bf16.msra.mxu0 0
        %3201 = vmatprep.subr.bf16.mxu0 0
        %3202 = vmatpush1.bf16.msra.mxu0 0
        %3203 = vmatprep.subr.bf16.mxu0 0
        %3204 = vmatpush1.bf16.msra.mxu0 0
        %3205 = vmatprep.subr.bf16.mxu0 0
        %3206 = vmatpush1.bf16.msra.mxu0 %v3164
        %3207 = vmatprep.subr.bf16.mxu0 0
        %3208 = vmatpush1.bf16.msra.mxu0 %v3163
        %3209 = vmatprep.subr.bf16.mxu0 0
        %3210 = vmatpush1.bf16.msra.mxu0 %v3162
        %3211 = vmatprep.subr.bf16.mxu0 0
        %3212 = vmatpush1.bf16.msra.mxu0 %v3161
        %3213 = vmatprep.subr.bf16.mxu0 0
        %3214 = vmatpush2.bf16.msra.mxu0 0
        %3215 = vmatprep.subr.bf16.mxu0 0
        %3216 = vmatpush2.bf16.msra.mxu0 0
        %3217 = vmatprep.subr.bf16.mxu0 0
        %3218 = vmatpush2.bf16.msra.mxu0 0
        %3219 = vmatprep.subr.bf16.mxu0 0
        %3220 = vmatpush2.bf16.msra.mxu0 0
        %3221 = vmatprep.subr.bf16.mxu0 0
        %3222 = vmatpush2.bf16.msra.mxu0 0
        %3223 = vmatprep.subr.bf16.mxu0 0
        %3224 = vmatpush2.bf16.msra.mxu0 0
        %3225 = vmatprep.subr.bf16.mxu0 0
        %3226 = vmatpush2.bf16.msra.mxu0 0
        %3227 = vmatprep.subr.bf16.mxu0 0
        %3228 = vmatpush2.bf16.msra.mxu0 0
        %3229 = vmatprep.mubr.bf16.mxu0 0
        %3230 = vmatmul.mubr.bf16.gmra.mxu0 %v3186
        %v3231 = vpop.f32.mrf.mxu0
        %v3232 = vadd.f32 0.0, %v3231
        %v3233 = vpop.f32.mrf.mxu0
        %v3234 = vpop.f32.mrf.mxu0
        %v3235 = vadd.f32 0.0, %v3234
        %v3236 = vpop.f32.mrf.mxu0
        %3237 = vmatprep.mubr.bf16.mxu0 0
        %3238 = vmatmul.mubr.bf16.gmra.mxu0 %v3189
        %v3239 = vpop.f32.mrf.mxu0
        %v3240 = vadd.f32 0.0, %v3239
        %v3241 = vpop.f32.mrf.mxu0
        %v3242 = vpop.f32.mrf.mxu0
        %v3243 = vadd.f32 0.0, %v3242
        %v3244 = vpop.f32.mrf.mxu0
        %3245 = vmatprep.mubr.bf16.mxu0 0
        %3246 = vmatmul.mubr.bf16.gmra.mxu0 %v3192
        %v3247 = vpop.f32.mrf.mxu0
        %v3248 = vadd.f32 0.0, %v3247
        %v3249 = vpop.f32.mrf.mxu0
        %v3250 = vpop.f32.mrf.mxu0
        %v3251 = vadd.f32 0.0, %v3250
        %v3252 = vpop.f32.mrf.mxu0
        %3253 = vmatprep.mubr.bf16.mxu0 0
        %3254 = vmatmul.mubr.bf16.gmra.mxu0 %v3195
        %v3255 = vpop.f32.mrf.mxu0
        %v3256 = vadd.f32 0.0, %v3255
        %v3257 = vpop.f32.mrf.mxu0
        %v3258 = vpop.f32.mrf.mxu0
        %v3259 = vadd.f32 0.0, %v3258
        %v3260 = vpop.f32.mrf.mxu0
        %3261 = vdwg.mxu0
        %v3262 = vadd.f32 %v3114, %v3232
        %v3263 = vadd.f32 %v3115, %v3235
        %v3264 = vadd.f32 %v3116, %v3240
        %v3265 = vadd.f32 %v3117, %v3243
        %v3266 = vadd.f32 %v3118, %v3248
        %v3267 = vadd.f32 %v3119, %v3251
        %v3268 = vadd.f32 %v3120, %v3256
        %v3269 = vadd.f32 %v3121, %v3259
        %v3270 = vld [vmem:[%s642] sm:$0xff]
        %v3271 = vld [vmem:[%s642 + $0x8] sm:$0xff]
        %v3272 = vld [vmem:[%s642 + $0x10] sm:$0xff]
        %v3273 = vld [vmem:[%s642 + $0x18] sm:$0xff]
        %v3274 = vld [vmem:[%s642 + $0x20] sm:$0xff]
        %v3275 = vld [vmem:[%s642 + $0x28] sm:$0xff]
        %v3276 = vld [vmem:[%s642 + $0x30] sm:$0xff]
        %v3277 = vld [vmem:[%s642 + $0x38] sm:$0xff]
        %3279 = vset.pattern.permute.xlu0 0
        %3280 = vperm.xlu0 %3279, %v3270
        %v3281 = vpop.permute.xlu0 %3280
        %3284 = vset.pattern.permute.xlu0 0
        %3285 = vperm.xlu0 %3284, %v3271
        %v3286 = vpop.permute.xlu0 %3285
        %3289 = vset.pattern.permute.xlu0 0
        %3290 = vperm.xlu0 %3289, %v3272
        %v3291 = vpop.permute.xlu0 %3290
        %3294 = vset.pattern.permute.xlu0 0
        %3295 = vperm.xlu0 %3294, %v3273
        %v3296 = vpop.permute.xlu0 %3295
        %3299 = vset.pattern.permute.xlu0 0
        %3300 = vperm.xlu0 %3299, %v3274
        %v3301 = vpop.permute.xlu0 %3300
        %3304 = vset.pattern.permute.xlu0 0
        %3305 = vperm.xlu0 %3304, %v3275
        %v3306 = vpop.permute.xlu0 %3305
        %3309 = vset.pattern.permute.xlu0 0
        %3310 = vperm.xlu0 %3309, %v3276
        %v3311 = vpop.permute.xlu0 %3310
        %3314 = vset.pattern.permute.xlu0 0
        %3315 = vperm.xlu0 %3314, %v3277
        %v3316 = vpop.permute.xlu0 %3315
        %v3318 = vadd.f32 %v3262, %v3281
        %v3319 = vadd.f32 %v3263, %v3286
        %v3320 = vadd.f32 %v3264, %v3291
        %v3321 = vadd.f32 %v3265, %v3296
        %v3322 = vadd.f32 %v3266, %v3301
        %v3323 = vadd.f32 %v3267, %v3306
        %v3324 = vadd.f32 %v3268, %v3311
        %v3325 = vadd.f32 %v3269, %v3316
        %p3326 = scmp.lt.s32.totalorder %s35, 5
        // Predicated region
        $region137: #{_lambda_.1} parent=79 // pred_check
          %p3327 = pneg %p3326
        $region138: #{_lambda_.1} parent=79 // pred_check_branch
          %3329 = sbr.rel (%p3327) target = $region140
        $region139: #{_lambda_.1} parent=79 // pred_region
          %v3330 = vmax.f32 %v3318, 0.0
          %v3331 = vmax.f32 %v3319, 0.0
          %v3332 = vmax.f32 %v3320, 0.0
          %v3333 = vmax.f32 %v3321, 0.0
          %v3334 = vmax.f32 %v3322, 0.0
          %v3335 = vmax.f32 %v3323, 0.0
          %v3336 = vmax.f32 %v3324, 0.0
          %v3337 = vmax.f32 %v3325, 0.0
          %3338 = vst [vmem:[#allocation2] sm:$0xff] %v3330
          %3339 = vst [vmem:[#allocation2 + $0x8] sm:$0xff] %v3331
          %3340 = vst [vmem:[#allocation2 + $0x10] sm:$0xff] %v3332
          %3341 = vst [vmem:[#allocation2 + $0x18] sm:$0xff] %v3333
          %3342 = vst [vmem:[#allocation2 + $0x20] sm:$0xff] %v3334
          %3343 = vst [vmem:[#allocation2 + $0x28] sm:$0xff] %v3335
          %3344 = vst [vmem:[#allocation2 + $0x30] sm:$0xff] %v3336
          %3345 = vst [vmem:[#allocation2 + $0x38] sm:$0xff] %v3337
        $region140: #{_lambda_.1} parent=79 // pred_fallthru
          _
        %p3346 = scmp.eq.s32.totalorder %s35, 5
        // Predicated region
        $region141: #{_lambda_.1} parent=79 // pred_check
          %p3347 = pneg %p3346
        $region142: #{_lambda_.1} parent=79 // pred_check_branch
          %3349 = sbr.rel (%p3347) target = $region144
        $region143: #{_lambda_.1} parent=79 // pred_region
          %vm3350 = vcmask 660480
          %3351 = vst.msk [vmem:[%s15] sm:$0x3f] %vm3350, %v3318
        $region144: #{_lambda_.1} parent=79 // pred_fallthru
          _
        // Predicated region
        $region145: #{_lambda_.1} parent=79 // pred_check
          %p3352 = pneg %p373
        $region146: #{_lambda_.1} parent=79 // pred_check_branch
          %3354 = sbr.rel (%p3352) target = $region148
        $region147: #{_lambda_.1} parent=79 // pred_region
          _
        $region148: #{_lambda_.1} parent=79 // pred_fallthru
          _
        // Predicated region
        $region149: #{_lambda_.1} parent=79 // pred_check
          %p3355 = pneg %p373
        $region150: #{_lambda_.1} parent=79 // pred_check_branch
          %3357 = sbr.rel (%p3355) target = $region152
        $region151: #{_lambda_.1} parent=79 // pred_region
          _
        $region152: #{_lambda_.1} parent=79 // pred_fallthru
          _
      $region80: #{_lambda_.1} parent=5 // pred_fallthru
        _
      %p3358 = scmp.le.s32.totalorder 2, %s30
      // Predicated region
      $region153: #{_lambda_.1} parent=5 // pred_check
        %p3359 = pneg %p3358
      $region154: #{_lambda_.1} parent=5 // pred_check_branch
        %3361 = sbr.rel (%p3359) target = $region156
      $region155: #{_lambda_.1} parent=5 // pred_region
        %s3362 = ssub.s32 %s30, 2
      $region156: #{_lambda_.1} parent=5 // pred_fallthru
        _
    $region6: #{_lambda_.1} parent=1 // loop_footer
      %s34 = sadd.s32 1, %s30
    $region7: #{_lambda_.1} parent=1 // loop_footer_branch
      %29 = sbr.rel target = $region3
    $region8: #{_lambda_.1} parent=1 // loop_exit
      _
    %3363 = vsyncpa [#allocation4], 1
    %s3364 = scalar_lea.sflag [#allocation4], 1
    %3365 = vsyncpa %s3364, 1
    %3366 = vsyncpa [#allocation6], 1
    %3367 = vsyncpa [#allocation9], 1
    %3368 = vsyncpa [#allocation12], 1
    %3369 = vsyncpa [#allocation15], 1
    %3370 = vsyncpa [#allocation18], 1
    %3371 = vsyncpa [#allocation21], 1
    %s3372 = scalar_lea.sflag [#allocation21], 1
    %3373 = vsyncpa %s3372, 1

</llo_original>
